<compile_context>
chip_gen: v5e
topology: v5e:2x2
jax: 0.10.0
libtpu: 0.0.40
codegen_flags: <defaults>
</compile_context>

<pallas_src>
import math
from functools import partial

import jax
import jax.numpy as jnp
from jax.experimental import pallas as pl
from jax.experimental.pallas import tpu as pltpu

# ---------------- model hyper-parameters (small, TPU-friendly test shape) -----
SEQUENCE_LENGTH = 16   # module uses 95
NUM_TOKENS = 16        # module has len(tokens) == 0 (degenerate); see NOTE
INPUT_DIM = 32
NUM_HEADS = 4
DIM_FEEDFORWARD = 64
NUM_LAYERS = 2
BATCH = 2
LN_EPS = 1e-5
OUT_PAD = 128          # lane-dense padded width of the final projection output


# ------------------------------- fused Pallas kernel --------------------------
def transformer_encoder_kernel(
        x_ref, pe_ref,
        qkvw_ref, qkvb_ref, ow_ref, ob_ref,
        ln1g_ref, ln1b_ref, w1_ref, b1_ref, w2_ref, b2_ref,
        ln2g_ref, ln2b_ref,
        outw_ref, outb_ref,
        o_ref,
        vals_ref,
        *, num_heads, num_layers):
    """Entire TransformerEncoder forward for the whole batch in one invocation.

    Activations stay in VMEM/vregs as a (B*S, D) slab (batch folded into the
    sublane axis).  Per-layer weights are stacked on a leading axis and indexed
    with a static python loop.
    """
    B, S, D = x_ref.shape
    hd = D // num_heads
    scale = 1.0 / math.sqrt(hd)

    def layer_norm(t, g, b):
        mean = jnp.mean(t, axis=-1, keepdims=True)
        var = jnp.mean((t - mean) ** 2, axis=-1, keepdims=True)
        return (t - mean) * jax.lax.rsqrt(var + LN_EPS) * g + b

    # positional encoding, then fold batch into the sublane axis
    x = x_ref[...] + pe_ref[...][None, :, :]                     # (B, S, D)
    xb = x.reshape(B * S, D)                                     # (B*S, D)

    for l in range(num_layers):
        # ---- multi-head self-attention ---------------------------------------
        qkv = jnp.dot(xb, qkvw_ref[l], preferred_element_type=jnp.float32)
        qkv = qkv + qkvb_ref[l]                                  # (B*S, 3D) [Q|K|V]
        qkv3 = qkv.reshape(B, S, 3 * D)
        for h in range(num_heads):                               # static loop, H=4
            q = qkv3[:, :, h * hd:(h + 1) * hd]                  # (B, S, hd)
            k = qkv3[:, :, D + h * hd:D + (h + 1) * hd]
            v = qkv3[:, :, 2 * D + h * hd:2 * D + (h + 1) * hd]
            logits = jnp.einsum('bqd,bkd->bqk', q, k,
                                preferred_element_type=jnp.float32) * scale
            logits = logits - jnp.max(logits, axis=-1, keepdims=True)
            p = jnp.exp(logits)
            attn = p * pl.reciprocal(jnp.sum(p, axis=-1, keepdims=True),
                                     approx=True)
            head_out = jnp.einsum('bqk,bkd->bqd', attn, v,
                                  preferred_element_type=jnp.float32)
            # write each head straight into its lane slot (no concatenate)
            vals_ref[:, :, h * hd:(h + 1) * hd] = head_out
        vals = vals_ref[...].reshape(B * S, D)
        attn_out = jnp.dot(vals, ow_ref[l],
                           preferred_element_type=jnp.float32) + ob_ref[l]

        # ---- residual + LayerNorm 1 -------------------------------------------
        xb = layer_norm(xb + attn_out, ln1g_ref[l], ln1b_ref[l])

        # ---- feed-forward (Linear -> ReLU -> Linear), dropout p=0 is identity --
        h1 = jnp.dot(xb, w1_ref[l], preferred_element_type=jnp.float32) + b1_ref[l]
        h1 = jnp.maximum(h1, 0.0)
        ff = jnp.dot(h1, w2_ref[l], preferred_element_type=jnp.float32) + b2_ref[l]

        # ---- residual + LayerNorm 2 -------------------------------------------
        xb = layer_norm(xb + ff, ln2g_ref[l], ln2b_ref[l])

    # ---- final linear over the flattened (B, S*D) activations -----------------
    # out[b, t] = sum_{s,d} x[b, s, d] * W[s*D + d, t]   (== x.view(-1, D*S) @ W)
    # Realized as an unrolled sum over s of (B, D) @ (D, OUT_PAD) matmuls so the
    # kernel never needs a sublane->lane reshape; xb is staged via VMEM scratch.
    vals_ref[...] = xb.reshape(B, S, D)
    t_pad = outw_ref.shape[-1]
    acc = jnp.zeros((B, t_pad), jnp.float32) + outb_ref[...]
    for s in range(S):                                           # static loop, S=16
        acc = acc + jnp.dot(vals_ref[:, s, :], outw_ref[s],
                            preferred_element_type=jnp.float32)
    o_ref[...] = acc                                             # lane-dense (B, 128)


# ------------------------------- host-side packing ----------------------------
def _repack_qkv(w, b, num_heads):
    """Permute qkv_proj columns from the module's per-head interleaved
    [q_h | k_h | v_h] layout (what qkv.reshape(B,S,H,3*hd) implies) into a
    [Q | K | V] layout (head-major inside each block), so the kernel slices
    q/k/v for head h at lane offsets h*hd / D+h*hd / 2D+h*hd."""
    d_in, three_d = w.shape
    hd = (three_d // 3) // num_heads
    w_r = w.reshape(d_in, num_heads, 3, hd).transpose(0, 2, 1, 3).reshape(d_in, three_d)
    b_r = b.reshape(1, num_heads, 3, hd).transpose(0, 2, 1, 3).reshape(1, three_d)
    return w_r, b_r


def pack_params(layer_params, out_w, out_b, num_heads):
    """One-time host-side packing: stack per-layer weights on a leading layer
    axis, repack QKV columns, reshape + lane-pad the output projection."""
    stack = lambda name: jnp.stack([p[name] for p in layer_params], axis=0)
    repacked = [_repack_qkv(p["qkv_w"], p["qkv_b"], num_heads) for p in layer_params]
    d_model = layer_params[0]["qkv_w"].shape[0]
    seq = out_w.shape[0] // d_model
    t = out_w.shape[1]
    out_w3 = jnp.pad(out_w.reshape(seq, d_model, t),
                     ((0, 0), (0, 0), (0, OUT_PAD - t)))          # (S, D, 128)
    out_b_p = jnp.pad(out_b, ((0, 0), (0, OUT_PAD - t)))          # (1, 128)
    return dict(
        qkv_w=jnp.stack([w for w, _ in repacked]),                # (L, D, 3D)
        qkv_b=jnp.stack([b for _, b in repacked]),                # (L, 1, 3D)
        o_w=stack("o_w"), o_b=stack("o_b"),
        ln1_g=stack("ln1_g"), ln1_b=stack("ln1_b"),
        w1=stack("w1"), b1=stack("b1"),
        w2=stack("w2"), b2=stack("b2"),
        ln2_g=stack("ln2_g"), ln2_b=stack("ln2_b"),
        out_w=out_w3, out_b=out_b_p,
    )


# ------------------------------- wrapper ---------------------------------------
def transformer_encoder_forward(x, pe, packed, num_heads=NUM_HEADS):
    """Full forward pass as a single fused pallas_call."""
    B, S, D = x.shape
    L = packed["qkv_w"].shape[0]
    inputs = (x, pe,
              packed["qkv_w"], packed["qkv_b"], packed["o_w"], packed["o_b"],
              packed["ln1_g"], packed["ln1_b"], packed["w1"], packed["b1"],
              packed["w2"], packed["b2"], packed["ln2_g"], packed["ln2_b"],
              packed["out_w"], packed["out_b"])

    def full_spec(a):
        nd = a.ndim
        return pl.BlockSpec(a.shape, lambda i, nd=nd: (0,) * nd)

    out_padded = pl.pallas_call(
        partial(transformer_encoder_kernel, num_heads=num_heads, num_layers=L),
        out_shape=jax.ShapeDtypeStruct((B, OUT_PAD), jnp.float32),
        grid=(1,),
        in_specs=[full_spec(a) for a in inputs],
        out_specs=pl.BlockSpec((B, OUT_PAD), lambda i: (0, 0)),
        scratch_shapes=[pltpu.VMEM((B, S, D), jnp.float32)],
        compiler_params=pltpu.CompilerParams(
            dimension_semantics=("arbitrary",)),
    )(*inputs)
    return out_padded[:, :NUM_TOKENS]


# ------------------------------- parameter init --------------------------------
def xavier_uniform(key, shape_in_out):
    fan_in, fan_out = shape_in_out
    bound = math.sqrt(6.0 / (fan_in + fan_out))
    return jax.random.uniform(key, (fan_in, fan_out), jnp.float32, -bound, bound)


def make_params(key):
    D, F = INPUT_DIM, DIM_FEEDFORWARD
    layers = []
    for _ in range(NUM_LAYERS):
        key, k1, k2, k3, k4 = jax.random.split(key, 5)
        layers.append(dict(
            # attention (xavier weights, zero bias — matches _reset_parameters)
            qkv_w=xavier_uniform(k1, (D, 3 * D)),       # stored transposed [in, out]
            qkv_b=jnp.zeros((1, 3 * D), jnp.float32),
            o_w=xavier_uniform(k2, (D, D)),
            o_b=jnp.zeros((1, D), jnp.float32),
            # feed-forward (deterministic init)
            w1=xavier_uniform(k3, (D, F)),
            b1=jnp.zeros((1, F), jnp.float32),
            w2=xavier_uniform(k4, (F, D)),
            b2=jnp.zeros((1, D), jnp.float32),
            # layer norms
            ln1_g=jnp.ones((1, D), jnp.float32),
            ln1_b=jnp.zeros((1, D), jnp.float32),
            ln2_g=jnp.ones((1, D), jnp.float32),
            ln2_b=jnp.zeros((1, D), jnp.float32),
        ))
    key, ko = jax.random.split(key)
    out_w = xavier_uniform(ko, (INPUT_DIM * SEQUENCE_LENGTH, NUM_TOKENS))
    out_b = jnp.zeros((1, NUM_TOKENS), jnp.float32)
    return layers, out_w, out_b


def positional_encoding(d_model, max_len):
    position = jnp.arange(max_len, dtype=jnp.float32)[:, None]
    div_term = jnp.exp(jnp.arange(0, d_model, 2, dtype=jnp.float32)
                       * (-math.log(10000.0) / d_model))
    pe = jnp.zeros((max_len, d_model), jnp.float32)
    pe = pe.at[:, 0::2].set(jnp.sin(position * div_term))
    pe = pe.at[:, 1::2].set(jnp.cos(position * div_term))
    return pe  # (max_len, d_model)


# ------------------------------- pure-JAX reference ----------------------------
def _layer_norm_ref(t, g, b):
    m = jnp.mean(t, axis=-1, keepdims=True)
    v = jnp.mean((t - m) ** 2, axis=-1, keepdims=True)
    return (t - m) * jax.lax.rsqrt(v + LN_EPS) * g + b


def reference_forward(x, layer_params, out_w, out_b, pe, num_heads):
    """Direct transcription of the PyTorch module (module-native layouts)."""
    B, S, D = x.shape
    hd = D // num_heads
    x = x + pe[None, :S, :]
    for p in layer_params:
        qkv = x @ p["qkv_w"] + p["qkv_b"][0]
        qkv = qkv.reshape(B, S, num_heads, 3 * hd)
        qkv = jnp.transpose(qkv, (0, 2, 1, 3))
        q, k, v = jnp.split(qkv, 3, axis=-1)
        logits = jnp.einsum('bhqd,bhkd->bhqk', q, k) / math.sqrt(hd)
        attn = jax.nn.softmax(logits, axis=-1)
        vals = jnp.einsum('bhqk,bhkd->bhqd', attn, v)
        vals = jnp.transpose(vals, (0, 2, 1, 3)).reshape(B, S, D)
        x = _layer_norm_ref(x + vals @ p["o_w"] + p["o_b"][0],
                            p["ln1_g"][0], p["ln1_b"][0])
        h = jax.nn.relu(x @ p["w1"] + p["b1"][0])
        x = _layer_norm_ref(x + h @ p["w2"] + p["b2"][0],
                            p["ln2_g"][0], p["ln2_b"][0])
    return x.reshape(B, S * D) @ out_w + out_b[0]       # == x.view(-1, D*S) @ W


# ------------------------------- main -------------------------------------------
if __name__ == "__main__":
    key = jax.random.PRNGKey(0)
    key_x, key_p = jax.random.split(key)

    x = jax.random.normal(key_x, (BATCH, SEQUENCE_LENGTH, INPUT_DIM), jnp.float32)
    layer_params, out_w, out_b = make_params(key_p)
    pe = positional_encoding(INPUT_DIM, SEQUENCE_LENGTH)
    packed = pack_params(layer_params, out_w, out_b, NUM_HEADS)

    out = transformer_encoder_forward(x, pe, packed)
    out = jax.block_until_ready(out)

    assert out.shape == (BATCH, NUM_TOKENS)
    assert bool(jnp.all(jnp.isfinite(out)))

    # correctness self-check vs a pure-JAX transcription of the PyTorch module
    # (loose tolerance: kernel uses approx reciprocal for the softmax denom)
    ref = reference_forward(x, layer_params, out_w, out_b, pe, NUM_HEADS)
    err = float(jnp.max(jnp.abs(out - ref)))
    assert err < 1e-1, f"kernel/reference mismatch: max abs err {err}"

    print("KERNEL_OK")
</pallas_src>

<mosaic_0001>
module attributes {stable_mosaic.version = 11 : i64} {
  func.func @transformer_encoder_kernel(%arg0: i32, %arg1: memref<2x16x32xf32, #tpu.memory_space<vmem>>, %arg2: memref<16x32xf32, #tpu.memory_space<vmem>>, %arg3: memref<2x32x96xf32, #tpu.memory_space<vmem>>, %arg4: memref<2x1x96xf32, #tpu.memory_space<vmem>>, %arg5: memref<2x32x32xf32, #tpu.memory_space<vmem>>, %arg6: memref<2x1x32xf32, #tpu.memory_space<vmem>>, %arg7: memref<2x1x32xf32, #tpu.memory_space<vmem>>, %arg8: memref<2x1x32xf32, #tpu.memory_space<vmem>>, %arg9: memref<2x32x64xf32, #tpu.memory_space<vmem>>, %arg10: memref<2x1x64xf32, #tpu.memory_space<vmem>>, %arg11: memref<2x64x32xf32, #tpu.memory_space<vmem>>, %arg12: memref<2x1x32xf32, #tpu.memory_space<vmem>>, %arg13: memref<2x1x32xf32, #tpu.memory_space<vmem>>, %arg14: memref<2x1x32xf32, #tpu.memory_space<vmem>>, %arg15: memref<16x32x128xf32, #tpu.memory_space<vmem>>, %arg16: memref<1x128xf32, #tpu.memory_space<vmem>>, %arg17: memref<2x128xf32, #tpu.memory_space<vmem>>, %arg18: memref<2x16x32xf32, #tpu.memory_space<vmem>>) attributes {dimension_semantics = [#tpu.dimension_semantics<arbitrary>], iteration_bounds = array<i64: 1>, scalar_prefetch = 0 : i64, scratch_operands = 1 : i64, tpu.core_type = #tpu.core_type<tc>, window_params = [{pipeline_mode = #tpu.pipeline_mode<synchronous>, transform_indices = @transform_0, window_bounds = array<i64: 2, 16, 32>}, {pipeline_mode = #tpu.pipeline_mode<synchronous>, transform_indices = @transform_1, window_bounds = array<i64: 16, 32>}, {pipeline_mode = #tpu.pipeline_mode<synchronous>, transform_indices = @transform_2, window_bounds = array<i64: 2, 32, 96>}, {pipeline_mode = #tpu.pipeline_mode<synchronous>, transform_indices = @transform_3, window_bounds = array<i64: 2, 1, 96>}, {pipeline_mode = #tpu.pipeline_mode<synchronous>, transform_indices = @transform_4, window_bounds = array<i64: 2, 32, 32>}, {pipeline_mode = #tpu.pipeline_mode<synchronous>, transform_indices = @transform_5, window_bounds = array<i64: 2, 1, 32>}, {pipeline_mode = #tpu.pipeline_mode<synchronous>, transform_indices = @transform_6, window_bounds = array<i64: 2, 1, 32>}, {pipeline_mode = #tpu.pipeline_mode<synchronous>, transform_indices = @transform_7, window_bounds = array<i64: 2, 1, 32>}, {pipeline_mode = #tpu.pipeline_mode<synchronous>, transform_indices = @transform_8, window_bounds = array<i64: 2, 32, 64>}, {pipeline_mode = #tpu.pipeline_mode<synchronous>, transform_indices = @transform_9, window_bounds = array<i64: 2, 1, 64>}, {pipeline_mode = #tpu.pipeline_mode<synchronous>, transform_indices = @transform_10, window_bounds = array<i64: 2, 64, 32>}, {pipeline_mode = #tpu.pipeline_mode<synchronous>, transform_indices = @transform_11, window_bounds = array<i64: 2, 1, 32>}, {pipeline_mode = #tpu.pipeline_mode<synchronous>, transform_indices = @transform_12, window_bounds = array<i64: 2, 1, 32>}, {pipeline_mode = #tpu.pipeline_mode<synchronous>, transform_indices = @transform_13, window_bounds = array<i64: 2, 1, 32>}, {pipeline_mode = #tpu.pipeline_mode<synchronous>, transform_indices = @transform_14, window_bounds = array<i64: 16, 32, 128>}, {pipeline_mode = #tpu.pipeline_mode<synchronous>, transform_indices = @transform_15, window_bounds = array<i64: 1, 128>}, {pipeline_mode = #tpu.pipeline_mode<synchronous>, transform_indices = @transform_16, window_bounds = array<i64: 2, 128>}]} {
    %c0 = arith.constant 0 : index
    %c0_0 = arith.constant 0 : index
    %c0_1 = arith.constant 0 : index
    %0 = vector.load %arg1[%c0, %c0_0, %c0_1] : memref<2x16x32xf32, #tpu.memory_space<vmem>>, vector<2x16x32xf32>
    %c0_2 = arith.constant 0 : index
    %c0_3 = arith.constant 0 : index
    %1 = vector.load %arg2[%c0_2, %c0_3] : memref<16x32xf32, #tpu.memory_space<vmem>>, vector<16x32xf32>
    %2 = vector.shape_cast %1 : vector<16x32xf32> to vector<1x16x32xf32>
    %3 = vector.broadcast %2 : vector<1x16x32xf32> to vector<2x16x32xf32>
    %4 = arith.addf %0, %3 : vector<2x16x32xf32>
    %5 = vector.shape_cast %4 : vector<2x16x32xf32> to vector<32x32xf32>
    %c0_4 = arith.constant 0 : index
    %c0_5 = arith.constant 0 : index
    %c0_6 = arith.constant 0 : index
    %6 = vector.load %arg3[%c0_4, %c0_5, %c0_6] : memref<2x32x96xf32, #tpu.memory_space<vmem>>, vector<1x32x96xf32>
    %7 = vector.shape_cast %6 : vector<1x32x96xf32> to vector<32x96xf32>
    %cst = arith.constant dense<0.000000e+00> : vector<32x96xf32>
    %8 = tpu.matmul %5, %7, %cst {dimension_numbers = #tpu.dot_dimension_numbers<[1], [0], [0], [1], [0, 0, 1, 1], [], []>} : vector<32x32xf32>, vector<32x96xf32>, vector<32x96xf32> -> vector<32x96xf32>
    %c0_7 = arith.constant 0 : index
    %c0_8 = arith.constant 0 : index
    %c0_9 = arith.constant 0 : index
    %9 = vector.load %arg4[%c0_7, %c0_8, %c0_9] : memref<2x1x96xf32, #tpu.memory_space<vmem>>, vector<1x1x96xf32>
    %10 = vector.shape_cast %9 : vector<1x1x96xf32> to vector<1x96xf32>
    %11 = vector.broadcast %10 : vector<1x96xf32> to vector<32x96xf32>
    %12 = arith.addf %8, %11 : vector<32x96xf32>
    %13 = vector.shape_cast %12 : vector<32x96xf32> to vector<2x16x96xf32>
    %14 = vector.extract_strided_slice %13 {offsets = [0, 0, 0], sizes = [2, 16, 8], strides = [1, 1, 1]} : vector<2x16x96xf32> to vector<2x16x8xf32>
    %15 = vector.extract_strided_slice %13 {offsets = [0, 0, 32], sizes = [2, 16, 8], strides = [1, 1, 1]} : vector<2x16x96xf32> to vector<2x16x8xf32>
    %16 = vector.extract_strided_slice %13 {offsets = [0, 0, 64], sizes = [2, 16, 8], strides = [1, 1, 1]} : vector<2x16x96xf32> to vector<2x16x8xf32>
    "tpu.trace_start"() <{level = 10 : i32, message = "bqd,bkd->bqk"}> : () -> ()
    %cst_10 = arith.constant dense<0.000000e+00> : vector<2x16x16xf32>
    %17 = tpu.matmul %14, %15, %cst_10 {dimension_numbers = #tpu.dot_dimension_numbers<[2], [2], [1], [1], [0, 0, 0, 1, 1, 1], [0], [0]>} : vector<2x16x8xf32>, vector<2x16x8xf32>, vector<2x16x16xf32> -> vector<2x16x16xf32>
    "tpu.trace_stop"() : () -> ()
    %cst_11 = arith.constant 0.353553385 : f32
    %18 = vector.broadcast %cst_11 : f32 to vector<2x16x16xf32>
    %19 = arith.mulf %17, %18 : vector<2x16x16xf32>
    %cst_12 = arith.constant dense<0xFF800000> : vector<2x16xf32>
    %20 = vector.multi_reduction <maximumf>, %19, %cst_12 [2] : vector<2x16x16xf32> to vector<2x16xf32>
    %21 = vector.shape_cast %20 : vector<2x16xf32> to vector<2x16x1xf32>
    %22 = vector.broadcast %21 : vector<2x16x1xf32> to vector<2x16x16xf32>
    %23 = arith.subf %19, %22 : vector<2x16x16xf32>
    %24 = math.exp %23 : vector<2x16x16xf32>
    %cst_13 = arith.constant dense<0.000000e+00> : vector<2x16xf32>
    %25 = vector.multi_reduction <add>, %24, %cst_13 [2] : vector<2x16x16xf32> to vector<2x16xf32>
    %26 = vector.shape_cast %25 : vector<2x16xf32> to vector<2x16x1xf32>
    %27 = tpu.reciprocal %26 {approx = true} : vector<2x16x1xf32> -> vector<2x16x1xf32>
    %28 = vector.broadcast %27 : vector<2x16x1xf32> to vector<2x16x16xf32>
    %29 = arith.mulf %24, %28 : vector<2x16x16xf32>
    "tpu.trace_start"() <{level = 10 : i32, message = "bqk,bkd->bqd"}> : () -> ()
    %cst_14 = arith.constant dense<0.000000e+00> : vector<2x16x8xf32>
    %30 = tpu.matmul %29, %16, %cst_14 {dimension_numbers = #tpu.dot_dimension_numbers<[2], [1], [1], [2], [0, 0, 0, 1, 1, 2], [0], [0]>} : vector<2x16x16xf32>, vector<2x16x8xf32>, vector<2x16x8xf32> -> vector<2x16x8xf32>
    "tpu.trace_stop"() : () -> ()
    %c0_15 = arith.constant 0 : index
    %c0_16 = arith.constant 0 : index
    %c0_17 = arith.constant 0 : index
    %31 = vector.load %arg18[%c0_15, %c0_16, %c0_17] : memref<2x16x32xf32, #tpu.memory_space<vmem>>, vector<2x16x8xf32>
    tpu.vector_store %arg18[%c0_15, %c0_16, %c0_17], %30 {strides = array<i32>} : memref<2x16x32xf32, #tpu.memory_space<vmem>>, vector<2x16x8xf32>,
    %32 = vector.extract_strided_slice %13 {offsets = [0, 0, 8], sizes = [2, 16, 8], strides = [1, 1, 1]} : vector<2x16x96xf32> to vector<2x16x8xf32>
    %33 = vector.extract_strided_slice %13 {offsets = [0, 0, 40], sizes = [2, 16, 8], strides = [1, 1, 1]} : vector<2x16x96xf32> to vector<2x16x8xf32>
    %34 = vector.extract_strided_slice %13 {offsets = [0, 0, 72], sizes = [2, 16, 8], strides = [1, 1, 1]} : vector<2x16x96xf32> to vector<2x16x8xf32>
    "tpu.trace_start"() <{level = 10 : i32, message = "bqd,bkd->bqk"}> : () -> ()
    %cst_18 = arith.constant dense<0.000000e+00> : vector<2x16x16xf32>
    %35 = tpu.matmul %32, %33, %cst_18 {dimension_numbers = #tpu.dot_dimension_numbers<[2], [2], [1], [1], [0, 0, 0, 1, 1, 1], [0], [0]>} : vector<2x16x8xf32>, vector<2x16x8xf32>, vector<2x16x16xf32> -> vector<2x16x16xf32>
    "tpu.trace_stop"() : () -> ()
    %cst_19 = arith.constant 0.353553385 : f32
    %36 = vector.broadcast %cst_19 : f32 to vector<2x16x16xf32>
    %37 = arith.mulf %35, %36 : vector<2x16x16xf32>
    %cst_20 = arith.constant dense<0xFF800000> : vector<2x16xf32>
    %38 = vector.multi_reduction <maximumf>, %37, %cst_20 [2] : vector<2x16x16xf32> to vector<2x16xf32>
    %39 = vector.shape_cast %38 : vector<2x16xf32> to vector<2x16x1xf32>
    %40 = vector.broadcast %39 : vector<2x16x1xf32> to vector<2x16x16xf32>
    %41 = arith.subf %37, %40 : vector<2x16x16xf32>
    %42 = math.exp %41 : vector<2x16x16xf32>
    %cst_21 = arith.constant dense<0.000000e+00> : vector<2x16xf32>
    %43 = vector.multi_reduction <add>, %42, %cst_21 [2] : vector<2x16x16xf32> to vector<2x16xf32>
    %44 = vector.shape_cast %43 : vector<2x16xf32> to vector<2x16x1xf32>
    %45 = tpu.reciprocal %44 {approx = true} : vector<2x16x1xf32> -> vector<2x16x1xf32>
    %46 = vector.broadcast %45 : vector<2x16x1xf32> to vector<2x16x16xf32>
    %47 = arith.mulf %42, %46 : vector<2x16x16xf32>
    "tpu.trace_start"() <{level = 10 : i32, message = "bqk,bkd->bqd"}> : () -> ()
    %cst_22 = arith.constant dense<0.000000e+00> : vector<2x16x8xf32>
    %48 = tpu.matmul %47, %34, %cst_22 {dimension_numbers = #tpu.dot_dimension_numbers<[2], [1], [1], [2], [0, 0, 0, 1, 1, 2], [0], [0]>} : vector<2x16x16xf32>, vector<2x16x8xf32>, vector<2x16x8xf32> -> vector<2x16x8xf32>
    "tpu.trace_stop"() : () -> ()
    %c0_23 = arith.constant 0 : index
    %c0_24 = arith.constant 0 : index
    %c8 = arith.constant 8 : index
    %49 = vector.load %arg18[%c0_23, %c0_24, %c8] : memref<2x16x32xf32, #tpu.memory_space<vmem>>, vector<2x16x8xf32>
    tpu.vector_store %arg18[%c0_23, %c0_24, %c8], %48 {strides = array<i32>} : memref<2x16x32xf32, #tpu.memory_space<vmem>>, vector<2x16x8xf32>,
    %50 = vector.extract_strided_slice %13 {offsets = [0, 0, 16], sizes = [2, 16, 8], strides = [1, 1, 1]} : vector<2x16x96xf32> to vector<2x16x8xf32>
    %51 = vector.extract_strided_slice %13 {offsets = [0, 0, 48], sizes = [2, 16, 8], strides = [1, 1, 1]} : vector<2x16x96xf32> to vector<2x16x8xf32>
    %52 = vector.extract_strided_slice %13 {offsets = [0, 0, 80], sizes = [2, 16, 8], strides = [1, 1, 1]} : vector<2x16x96xf32> to vector<2x16x8xf32>
    "tpu.trace_start"() <{level = 10 : i32, message = "bqd,bkd->bqk"}> : () -> ()
    %cst_25 = arith.constant dense<0.000000e+00> : vector<2x16x16xf32>
    %53 = tpu.matmul %50, %51, %cst_25 {dimension_numbers = #tpu.dot_dimension_numbers<[2], [2], [1], [1], [0, 0, 0, 1, 1, 1], [0], [0]>} : vector<2x16x8xf32>, vector<2x16x8xf32>, vector<2x16x16xf32> -> vector<2x16x16xf32>
    "tpu.trace_stop"() : () -> ()
    %cst_26 = arith.constant 0.353553385 : f32
    %54 = vector.broadcast %cst_26 : f32 to vector<2x16x16xf32>
    %55 = arith.mulf %53, %54 : vector<2x16x16xf32>
    %cst_27 = arith.constant dense<0xFF800000> : vector<2x16xf32>
    %56 = vector.multi_reduction <maximumf>, %55, %cst_27 [2] : vector<2x16x16xf32> to vector<2x16xf32>
    %57 = vector.shape_cast %56 : vector<2x16xf32> to vector<2x16x1xf32>
    %58 = vector.broadcast %57 : vector<2x16x1xf32> to vector<2x16x16xf32>
    %59 = arith.subf %55, %58 : vector<2x16x16xf32>
    %60 = math.exp %59 : vector<2x16x16xf32>
    %cst_28 = arith.constant dense<0.000000e+00> : vector<2x16xf32>
    %61 = vector.multi_reduction <add>, %60, %cst_28 [2] : vector<2x16x16xf32> to vector<2x16xf32>
    %62 = vector.shape_cast %61 : vector<2x16xf32> to vector<2x16x1xf32>
    %63 = tpu.reciprocal %62 {approx = true} : vector<2x16x1xf32> -> vector<2x16x1xf32>
    %64 = vector.broadcast %63 : vector<2x16x1xf32> to vector<2x16x16xf32>
    %65 = arith.mulf %60, %64 : vector<2x16x16xf32>
    "tpu.trace_start"() <{level = 10 : i32, message = "bqk,bkd->bqd"}> : () -> ()
    %cst_29 = arith.constant dense<0.000000e+00> : vector<2x16x8xf32>
    %66 = tpu.matmul %65, %52, %cst_29 {dimension_numbers = #tpu.dot_dimension_numbers<[2], [1], [1], [2], [0, 0, 0, 1, 1, 2], [0], [0]>} : vector<2x16x16xf32>, vector<2x16x8xf32>, vector<2x16x8xf32> -> vector<2x16x8xf32>
    "tpu.trace_stop"() : () -> ()
    %c0_30 = arith.constant 0 : index
    %c0_31 = arith.constant 0 : index
    %c16 = arith.constant 16 : index
    %67 = vector.load %arg18[%c0_30, %c0_31, %c16] : memref<2x16x32xf32, #tpu.memory_space<vmem>>, vector<2x16x8xf32>
    tpu.vector_store %arg18[%c0_30, %c0_31, %c16], %66 {strides = array<i32>} : memref<2x16x32xf32, #tpu.memory_space<vmem>>, vector<2x16x8xf32>,
    %68 = vector.extract_strided_slice %13 {offsets = [0, 0, 24], sizes = [2, 16, 8], strides = [1, 1, 1]} : vector<2x16x96xf32> to vector<2x16x8xf32>
    %69 = vector.extract_strided_slice %13 {offsets = [0, 0, 56], sizes = [2, 16, 8], strides = [1, 1, 1]} : vector<2x16x96xf32> to vector<2x16x8xf32>
    %70 = vector.extract_strided_slice %13 {offsets = [0, 0, 88], sizes = [2, 16, 8], strides = [1, 1, 1]} : vector<2x16x96xf32> to vector<2x16x8xf32>
    "tpu.trace_start"() <{level = 10 : i32, message = "bqd,bkd->bqk"}> : () -> ()
    %cst_32 = arith.constant dense<0.000000e+00> : vector<2x16x16xf32>
    %71 = tpu.matmul %68, %69, %cst_32 {dimension_numbers = #tpu.dot_dimension_numbers<[2], [2], [1], [1], [0, 0, 0, 1, 1, 1], [0], [0]>} : vector<2x16x8xf32>, vector<2x16x8xf32>, vector<2x16x16xf32> -> vector<2x16x16xf32>
    "tpu.trace_stop"() : () -> ()
    %cst_33 = arith.constant 0.353553385 : f32
    %72 = vector.broadcast %cst_33 : f32 to vector<2x16x16xf32>
    %73 = arith.mulf %71, %72 : vector<2x16x16xf32>
    %cst_34 = arith.constant dense<0xFF800000> : vector<2x16xf32>
    %74 = vector.multi_reduction <maximumf>, %73, %cst_34 [2] : vector<2x16x16xf32> to vector<2x16xf32>
    %75 = vector.shape_cast %74 : vector<2x16xf32> to vector<2x16x1xf32>
    %76 = vector.broadcast %75 : vector<2x16x1xf32> to vector<2x16x16xf32>
    %77 = arith.subf %73, %76 : vector<2x16x16xf32>
    %78 = math.exp %77 : vector<2x16x16xf32>
    %cst_35 = arith.constant dense<0.000000e+00> : vector<2x16xf32>
    %79 = vector.multi_reduction <add>, %78, %cst_35 [2] : vector<2x16x16xf32> to vector<2x16xf32>
    %80 = vector.shape_cast %79 : vector<2x16xf32> to vector<2x16x1xf32>
    %81 = tpu.reciprocal %80 {approx = true} : vector<2x16x1xf32> -> vector<2x16x1xf32>
    %82 = vector.broadcast %81 : vector<2x16x1xf32> to vector<2x16x16xf32>
    %83 = arith.mulf %78, %82 : vector<2x16x16xf32>
    "tpu.trace_start"() <{level = 10 : i32, message = "bqk,bkd->bqd"}> : () -> ()
    %cst_36 = arith.constant dense<0.000000e+00> : vector<2x16x8xf32>
    %84 = tpu.matmul %83, %70, %cst_36 {dimension_numbers = #tpu.dot_dimension_numbers<[2], [1], [1], [2], [0, 0, 0, 1, 1, 2], [0], [0]>} : vector<2x16x16xf32>, vector<2x16x8xf32>, vector<2x16x8xf32> -> vector<2x16x8xf32>
    "tpu.trace_stop"() : () -> ()
    %c0_37 = arith.constant 0 : index
    %c0_38 = arith.constant 0 : index
    %c24 = arith.constant 24 : index
    %85 = vector.load %arg18[%c0_37, %c0_38, %c24] : memref<2x16x32xf32, #tpu.memory_space<vmem>>, vector<2x16x8xf32>
    tpu.vector_store %arg18[%c0_37, %c0_38, %c24], %84 {strides = array<i32>} : memref<2x16x32xf32, #tpu.memory_space<vmem>>, vector<2x16x8xf32>,
    %c0_39 = arith.constant 0 : index
    %c0_40 = arith.constant 0 : index
    %c0_41 = arith.constant 0 : index
    %86 = vector.load %arg18[%c0_39, %c0_40, %c0_41] : memref<2x16x32xf32, #tpu.memory_space<vmem>>, vector<2x16x32xf32>
    %87 = vector.shape_cast %86 : vector<2x16x32xf32> to vector<32x32xf32>
    %c0_42 = arith.constant 0 : index
    %c0_43 = arith.constant 0 : index
    %c0_44 = arith.constant 0 : index
    %88 = vector.load %arg5[%c0_42, %c0_43, %c0_44] : memref<2x32x32xf32, #tpu.memory_space<vmem>>, vector<1x32x32xf32>
    %89 = vector.shape_cast %88 : vector<1x32x32xf32> to vector<32x32xf32>
    %cst_45 = arith.constant dense<0.000000e+00> : vector<32x32xf32>
    %90 = tpu.matmul %87, %89, %cst_45 {dimension_numbers = #tpu.dot_dimension_numbers<[1], [0], [0], [1], [0, 0, 1, 1], [], []>} : vector<32x32xf32>, vector<32x32xf32>, vector<32x32xf32> -> vector<32x32xf32>
    %c0_46 = arith.constant 0 : index
    %c0_47 = arith.constant 0 : index
    %c0_48 = arith.constant 0 : index
    %91 = vector.load %arg6[%c0_46, %c0_47, %c0_48] : memref<2x1x32xf32, #tpu.memory_space<vmem>>, vector<1x1x32xf32>
    %92 = vector.shape_cast %91 : vector<1x1x32xf32> to vector<1x32xf32>
    %93 = vector.broadcast %92 : vector<1x32xf32> to vector<32x32xf32>
    %94 = arith.addf %90, %93 : vector<32x32xf32>
    %95 = arith.addf %5, %94 : vector<32x32xf32>
    %c0_49 = arith.constant 0 : index
    %c0_50 = arith.constant 0 : index
    %c0_51 = arith.constant 0 : index
    %96 = vector.load %arg7[%c0_49, %c0_50, %c0_51] : memref<2x1x32xf32, #tpu.memory_space<vmem>>, vector<1x1x32xf32>
    %97 = vector.shape_cast %96 : vector<1x1x32xf32> to vector<1x32xf32>
    %c0_52 = arith.constant 0 : index
    %c0_53 = arith.constant 0 : index
    %c0_54 = arith.constant 0 : index
    %98 = vector.load %arg8[%c0_52, %c0_53, %c0_54] : memref<2x1x32xf32, #tpu.memory_space<vmem>>, vector<1x1x32xf32>
    %99 = vector.shape_cast %98 : vector<1x1x32xf32> to vector<1x32xf32>
    %cst_55 = arith.constant dense<0.000000e+00> : vector<32xf32>
    %100 = vector.multi_reduction <add>, %95, %cst_55 [1] : vector<32x32xf32> to vector<32xf32>
    %101 = vector.shape_cast %100 : vector<32xf32> to vector<32x1xf32>
    %cst_56 = arith.constant 3.200000e+01 : f32
    %102 = vector.broadcast %cst_56 : f32 to vector<32x1xf32>
    %103 = arith.divf %101, %102 : vector<32x1xf32>
    %104 = vector.broadcast %103 : vector<32x1xf32> to vector<32x32xf32>
    %105 = arith.subf %95, %104 : vector<32x32xf32>
    %106 = arith.mulf %105, %105 : vector<32x32xf32>
    %cst_57 = arith.constant dense<0.000000e+00> : vector<32xf32>
    %107 = vector.multi_reduction <add>, %106, %cst_57 [1] : vector<32x32xf32> to vector<32xf32>
    %108 = vector.shape_cast %107 : vector<32xf32> to vector<32x1xf32>
    %cst_58 = arith.constant 3.200000e+01 : f32
    %109 = vector.broadcast %cst_58 : f32 to vector<32x1xf32>
    %110 = arith.divf %108, %109 : vector<32x1xf32>
    %111 = vector.broadcast %103 : vector<32x1xf32> to vector<32x32xf32>
    %112 = arith.subf %95, %111 : vector<32x32xf32>
    %cst_59 = arith.constant 9.99999974E-6 : f32
    %113 = vector.broadcast %cst_59 : f32 to vector<32x1xf32>
    %114 = arith.addf %110, %113 : vector<32x1xf32>
    %115 = math.rsqrt %114 : vector<32x1xf32>
    %116 = vector.broadcast %115 : vector<32x1xf32> to vector<32x32xf32>
    %117 = arith.mulf %112, %116 : vector<32x32xf32>
    %118 = vector.broadcast %97 : vector<1x32xf32> to vector<32x32xf32>
    %119 = arith.mulf %117, %118 : vector<32x32xf32>
    %120 = vector.broadcast %99 : vector<1x32xf32> to vector<32x32xf32>
    %121 = arith.addf %119, %120 : vector<32x32xf32>
    %c0_60 = arith.constant 0 : index
    %c0_61 = arith.constant 0 : index
    %c0_62 = arith.constant 0 : index
    %122 = vector.load %arg9[%c0_60, %c0_61, %c0_62] : memref<2x32x64xf32, #tpu.memory_space<vmem>>, vector<1x32x64xf32>
    %123 = vector.shape_cast %122 : vector<1x32x64xf32> to vector<32x64xf32>
    %cst_63 = arith.constant dense<0.000000e+00> : vector<32x64xf32>
    %124 = tpu.matmul %121, %123, %cst_63 {dimension_numbers = #tpu.dot_dimension_numbers<[1], [0], [0], [1], [0, 0, 1, 1], [], []>} : vector<32x32xf32>, vector<32x64xf32>, vector<32x64xf32> -> vector<32x64xf32>
    %c0_64 = arith.constant 0 : index
    %c0_65 = arith.constant 0 : index
    %c0_66 = arith.constant 0 : index
    %125 = vector.load %arg10[%c0_64, %c0_65, %c0_66] : memref<2x1x64xf32, #tpu.memory_space<vmem>>, vector<1x1x64xf32>
    %126 = vector.shape_cast %125 : vector<1x1x64xf32> to vector<1x64xf32>
    %127 = vector.broadcast %126 : vector<1x64xf32> to vector<32x64xf32>
    %128 = arith.addf %124, %127 : vector<32x64xf32>
    %cst_67 = arith.constant 0.000000e+00 : f32
    %129 = vector.broadcast %cst_67 : f32 to vector<32x64xf32>
    %130 = arith.maximumf %128, %129 : vector<32x64xf32>
    %c0_68 = arith.constant 0 : index
    %c0_69 = arith.constant 0 : index
    %c0_70 = arith.constant 0 : index
    %131 = vector.load %arg11[%c0_68, %c0_69, %c0_70] : memref<2x64x32xf32, #tpu.memory_space<vmem>>, vector<1x64x32xf32>
    %132 = vector.shape_cast %131 : vector<1x64x32xf32> to vector<64x32xf32>
    %cst_71 = arith.constant dense<0.000000e+00> : vector<32x32xf32>
    %133 = tpu.matmul %130, %132, %cst_71 {dimension_numbers = #tpu.dot_dimension_numbers<[1], [0], [0], [1], [0, 0, 1, 1], [], []>} : vector<32x64xf32>, vector<64x32xf32>, vector<32x32xf32> -> vector<32x32xf32>
    %c0_72 = arith.constant 0 : index
    %c0_73 = arith.constant 0 : index
    %c0_74 = arith.constant 0 : index
    %134 = vector.load %arg12[%c0_72, %c0_73, %c0_74] : memref<2x1x32xf32, #tpu.memory_space<vmem>>, vector<1x1x32xf32>
    %135 = vector.shape_cast %134 : vector<1x1x32xf32> to vector<1x32xf32>
    %136 = vector.broadcast %135 : vector<1x32xf32> to vector<32x32xf32>
    %137 = arith.addf %133, %136 : vector<32x32xf32>
    %138 = arith.addf %121, %137 : vector<32x32xf32>
    %c0_75 = arith.constant 0 : index
    %c0_76 = arith.constant 0 : index
    %c0_77 = arith.constant 0 : index
    %139 = vector.load %arg13[%c0_75, %c0_76, %c0_77] : memref<2x1x32xf32, #tpu.memory_space<vmem>>, vector<1x1x32xf32>
    %140 = vector.shape_cast %139 : vector<1x1x32xf32> to vector<1x32xf32>
    %c0_78 = arith.constant 0 : index
    %c0_79 = arith.constant 0 : index
    %c0_80 = arith.constant 0 : index
    %141 = vector.load %arg14[%c0_78, %c0_79, %c0_80] : memref<2x1x32xf32, #tpu.memory_space<vmem>>, vector<1x1x32xf32>
    %142 = vector.shape_cast %141 : vector<1x1x32xf32> to vector<1x32xf32>
    %cst_81 = arith.constant dense<0.000000e+00> : vector<32xf32>
    %143 = vector.multi_reduction <add>, %138, %cst_81 [1] : vector<32x32xf32> to vector<32xf32>
    %144 = vector.shape_cast %143 : vector<32xf32> to vector<32x1xf32>
    %cst_82 = arith.constant 3.200000e+01 : f32
    %145 = vector.broadcast %cst_82 : f32 to vector<32x1xf32>
    %146 = arith.divf %144, %145 : vector<32x1xf32>
    %147 = vector.broadcast %146 : vector<32x1xf32> to vector<32x32xf32>
    %148 = arith.subf %138, %147 : vector<32x32xf32>
    %149 = arith.mulf %148, %148 : vector<32x32xf32>
    %cst_83 = arith.constant dense<0.000000e+00> : vector<32xf32>
    %150 = vector.multi_reduction <add>, %149, %cst_83 [1] : vector<32x32xf32> to vector<32xf32>
    %151 = vector.shape_cast %150 : vector<32xf32> to vector<32x1xf32>
    %cst_84 = arith.constant 3.200000e+01 : f32
    %152 = vector.broadcast %cst_84 : f32 to vector<32x1xf32>
    %153 = arith.divf %151, %152 : vector<32x1xf32>
    %154 = vector.broadcast %146 : vector<32x1xf32> to vector<32x32xf32>
    %155 = arith.subf %138, %154 : vector<32x32xf32>
    %cst_85 = arith.constant 9.99999974E-6 : f32
    %156 = vector.broadcast %cst_85 : f32 to vector<32x1xf32>
    %157 = arith.addf %153, %156 : vector<32x1xf32>
    %158 = math.rsqrt %157 : vector<32x1xf32>
    %159 = vector.broadcast %158 : vector<32x1xf32> to vector<32x32xf32>
    %160 = arith.mulf %155, %159 : vector<32x32xf32>
    %161 = vector.broadcast %140 : vector<1x32xf32> to vector<32x32xf32>
    %162 = arith.mulf %160, %161 : vector<32x32xf32>
    %163 = vector.broadcast %142 : vector<1x32xf32> to vector<32x32xf32>
    %164 = arith.addf %162, %163 : vector<32x32xf32>
    %c1 = arith.constant 1 : index
    %c0_86 = arith.constant 0 : index
    %c0_87 = arith.constant 0 : index
    %165 = vector.load %arg3[%c1, %c0_86, %c0_87] : memref<2x32x96xf32, #tpu.memory_space<vmem>>, vector<1x32x96xf32>
    %166 = vector.shape_cast %165 : vector<1x32x96xf32> to vector<32x96xf32>
    %cst_88 = arith.constant dense<0.000000e+00> : vector<32x96xf32>
    %167 = tpu.matmul %164, %166, %cst_88 {dimension_numbers = #tpu.dot_dimension_numbers<[1], [0], [0], [1], [0, 0, 1, 1], [], []>} : vector<32x32xf32>, vector<32x96xf32>, vector<32x96xf32> -> vector<32x96xf32>
    %c1_89 = arith.constant 1 : index
    %c0_90 = arith.constant 0 : index
    %c0_91 = arith.constant 0 : index
    %168 = vector.load %arg4[%c1_89, %c0_90, %c0_91] : memref<2x1x96xf32, #tpu.memory_space<vmem>>, vector<1x1x96xf32>
    %169 = vector.shape_cast %168 : vector<1x1x96xf32> to vector<1x96xf32>
    %170 = vector.broadcast %169 : vector<1x96xf32> to vector<32x96xf32>
    %171 = arith.addf %167, %170 : vector<32x96xf32>
    %172 = vector.shape_cast %171 : vector<32x96xf32> to vector<2x16x96xf32>
    %173 = vector.extract_strided_slice %172 {offsets = [0, 0, 0], sizes = [2, 16, 8], strides = [1, 1, 1]} : vector<2x16x96xf32> to vector<2x16x8xf32>
    %174 = vector.extract_strided_slice %172 {offsets = [0, 0, 32], sizes = [2, 16, 8], strides = [1, 1, 1]} : vector<2x16x96xf32> to vector<2x16x8xf32>
    %175 = vector.extract_strided_slice %172 {offsets = [0, 0, 64], sizes = [2, 16, 8], strides = [1, 1, 1]} : vector<2x16x96xf32> to vector<2x16x8xf32>
    "tpu.trace_start"() <{level = 10 : i32, message = "bqd,bkd->bqk"}> : () -> ()
    %cst_92 = arith.constant dense<0.000000e+00> : vector<2x16x16xf32>
    %176 = tpu.matmul %173, %174, %cst_92 {dimension_numbers = #tpu.dot_dimension_numbers<[2], [2], [1], [1], [0, 0, 0, 1, 1, 1], [0], [0]>} : vector<2x16x8xf32>, vector<2x16x8xf32>, vector<2x16x16xf32> -> vector<2x16x16xf32>
    "tpu.trace_stop"() : () -> ()
    %cst_93 = arith.constant 0.353553385 : f32
    %177 = vector.broadcast %cst_93 : f32 to vector<2x16x16xf32>
    %178 = arith.mulf %176, %177 : vector<2x16x16xf32>
    %cst_94 = arith.constant dense<0xFF800000> : vector<2x16xf32>
    %179 = vector.multi_reduction <maximumf>, %178, %cst_94 [2] : vector<2x16x16xf32> to vector<2x16xf32>
    %180 = vector.shape_cast %179 : vector<2x16xf32> to vector<2x16x1xf32>
    %181 = vector.broadcast %180 : vector<2x16x1xf32> to vector<2x16x16xf32>
    %182 = arith.subf %178, %181 : vector<2x16x16xf32>
    %183 = math.exp %182 : vector<2x16x16xf32>
    %cst_95 = arith.constant dense<0.000000e+00> : vector<2x16xf32>
    %184 = vector.multi_reduction <add>, %183, %cst_95 [2] : vector<2x16x16xf32> to vector<2x16xf32>
    %185 = vector.shape_cast %184 : vector<2x16xf32> to vector<2x16x1xf32>
    %186 = tpu.reciprocal %185 {approx = true} : vector<2x16x1xf32> -> vector<2x16x1xf32>
    %187 = vector.broadcast %186 : vector<2x16x1xf32> to vector<2x16x16xf32>
    %188 = arith.mulf %183, %187 : vector<2x16x16xf32>
    "tpu.trace_start"() <{level = 10 : i32, message = "bqk,bkd->bqd"}> : () -> ()
    %cst_96 = arith.constant dense<0.000000e+00> : vector<2x16x8xf32>
    %189 = tpu.matmul %188, %175, %cst_96 {dimension_numbers = #tpu.dot_dimension_numbers<[2], [1], [1], [2], [0, 0, 0, 1, 1, 2], [0], [0]>} : vector<2x16x16xf32>, vector<2x16x8xf32>, vector<2x16x8xf32> -> vector<2x16x8xf32>
    "tpu.trace_stop"() : () -> ()
    %c0_97 = arith.constant 0 : index
    %c0_98 = arith.constant 0 : index
    %c0_99 = arith.constant 0 : index
    %190 = vector.load %arg18[%c0_97, %c0_98, %c0_99] : memref<2x16x32xf32, #tpu.memory_space<vmem>>, vector<2x16x8xf32>
    tpu.vector_store %arg18[%c0_97, %c0_98, %c0_99], %189 {strides = array<i32>} : memref<2x16x32xf32, #tpu.memory_space<vmem>>, vector<2x16x8xf32>,
    %191 = vector.extract_strided_slice %172 {offsets = [0, 0, 8], sizes = [2, 16, 8], strides = [1, 1, 1]} : vector<2x16x96xf32> to vector<2x16x8xf32>
    %192 = vector.extract_strided_slice %172 {offsets = [0, 0, 40], sizes = [2, 16, 8], strides = [1, 1, 1]} : vector<2x16x96xf32> to vector<2x16x8xf32>
    %193 = vector.extract_strided_slice %172 {offsets = [0, 0, 72], sizes = [2, 16, 8], strides = [1, 1, 1]} : vector<2x16x96xf32> to vector<2x16x8xf32>
    "tpu.trace_start"() <{level = 10 : i32, message = "bqd,bkd->bqk"}> : () -> ()
    %cst_100 = arith.constant dense<0.000000e+00> : vector<2x16x16xf32>
    %194 = tpu.matmul %191, %192, %cst_100 {dimension_numbers = #tpu.dot_dimension_numbers<[2], [2], [1], [1], [0, 0, 0, 1, 1, 1], [0], [0]>} : vector<2x16x8xf32>, vector<2x16x8xf32>, vector<2x16x16xf32> -> vector<2x16x16xf32>
    "tpu.trace_stop"() : () -> ()
    %cst_101 = arith.constant 0.353553385 : f32
    %195 = vector.broadcast %cst_101 : f32 to vector<2x16x16xf32>
    %196 = arith.mulf %194, %195 : vector<2x16x16xf32>
    %cst_102 = arith.constant dense<0xFF800000> : vector<2x16xf32>
    %197 = vector.multi_reduction <maximumf>, %196, %cst_102 [2] : vector<2x16x16xf32> to vector<2x16xf32>
    %198 = vector.shape_cast %197 : vector<2x16xf32> to vector<2x16x1xf32>
    %199 = vector.broadcast %198 : vector<2x16x1xf32> to vector<2x16x16xf32>
    %200 = arith.subf %196, %199 : vector<2x16x16xf32>
    %201 = math.exp %200 : vector<2x16x16xf32>
    %cst_103 = arith.constant dense<0.000000e+00> : vector<2x16xf32>
    %202 = vector.multi_reduction <add>, %201, %cst_103 [2] : vector<2x16x16xf32> to vector<2x16xf32>
    %203 = vector.shape_cast %202 : vector<2x16xf32> to vector<2x16x1xf32>
    %204 = tpu.reciprocal %203 {approx = true} : vector<2x16x1xf32> -> vector<2x16x1xf32>
    %205 = vector.broadcast %204 : vector<2x16x1xf32> to vector<2x16x16xf32>
    %206 = arith.mulf %201, %205 : vector<2x16x16xf32>
    "tpu.trace_start"() <{level = 10 : i32, message = "bqk,bkd->bqd"}> : () -> ()
    %cst_104 = arith.constant dense<0.000000e+00> : vector<2x16x8xf32>
    %207 = tpu.matmul %206, %193, %cst_104 {dimension_numbers = #tpu.dot_dimension_numbers<[2], [1], [1], [2], [0, 0, 0, 1, 1, 2], [0], [0]>} : vector<2x16x16xf32>, vector<2x16x8xf32>, vector<2x16x8xf32> -> vector<2x16x8xf32>
    "tpu.trace_stop"() : () -> ()
    %c0_105 = arith.constant 0 : index
    %c0_106 = arith.constant 0 : index
    %c8_107 = arith.constant 8 : index
    %208 = vector.load %arg18[%c0_105, %c0_106, %c8_107] : memref<2x16x32xf32, #tpu.memory_space<vmem>>, vector<2x16x8xf32>
    tpu.vector_store %arg18[%c0_105, %c0_106, %c8_107], %207 {strides = array<i32>} : memref<2x16x32xf32, #tpu.memory_space<vmem>>, vector<2x16x8xf32>,
    %209 = vector.extract_strided_slice %172 {offsets = [0, 0, 16], sizes = [2, 16, 8], strides = [1, 1, 1]} : vector<2x16x96xf32> to vector<2x16x8xf32>
    %210 = vector.extract_strided_slice %172 {offsets = [0, 0, 48], sizes = [2, 16, 8], strides = [1, 1, 1]} : vector<2x16x96xf32> to vector<2x16x8xf32>
    %211 = vector.extract_strided_slice %172 {offsets = [0, 0, 80], sizes = [2, 16, 8], strides = [1, 1, 1]} : vector<2x16x96xf32> to vector<2x16x8xf32>
    "tpu.trace_start"() <{level = 10 : i32, message = "bqd,bkd->bqk"}> : () -> ()
    %cst_108 = arith.constant dense<0.000000e+00> : vector<2x16x16xf32>
    %212 = tpu.matmul %209, %210, %cst_108 {dimension_numbers = #tpu.dot_dimension_numbers<[2], [2], [1], [1], [0, 0, 0, 1, 1, 1], [0], [0]>} : vector<2x16x8xf32>, vector<2x16x8xf32>, vector<2x16x16xf32> -> vector<2x16x16xf32>
    "tpu.trace_stop"() : () -> ()
    %cst_109 = arith.constant 0.353553385 : f32
    %213 = vector.broadcast %cst_109 : f32 to vector<2x16x16xf32>
    %214 = arith.mulf %212, %213 : vector<2x16x16xf32>
    %cst_110 = arith.constant dense<0xFF800000> : vector<2x16xf32>
    %215 = vector.multi_reduction <maximumf>, %214, %cst_110 [2] : vector<2x16x16xf32> to vector<2x16xf32>
    %216 = vector.shape_cast %215 : vector<2x16xf32> to vector<2x16x1xf32>
    %217 = vector.broadcast %216 : vector<2x16x1xf32> to vector<2x16x16xf32>
    %218 = arith.subf %214, %217 : vector<2x16x16xf32>
    %219 = math.exp %218 : vector<2x16x16xf32>
    %cst_111 = arith.constant dense<0.000000e+00> : vector<2x16xf32>
    %220 = vector.multi_reduction <add>, %219, %cst_111 [2] : vector<2x16x16xf32> to vector<2x16xf32>
    %221 = vector.shape_cast %220 : vector<2x16xf32> to vector<2x16x1xf32>
    %222 = tpu.reciprocal %221 {approx = true} : vector<2x16x1xf32> -> vector<2x16x1xf32>
    %223 = vector.broadcast %222 : vector<2x16x1xf32> to vector<2x16x16xf32>
    %224 = arith.mulf %219, %223 : vector<2x16x16xf32>
    "tpu.trace_start"() <{level = 10 : i32, message = "bqk,bkd->bqd"}> : () -> ()
    %cst_112 = arith.constant dense<0.000000e+00> : vector<2x16x8xf32>
    %225 = tpu.matmul %224, %211, %cst_112 {dimension_numbers = #tpu.dot_dimension_numbers<[2], [1], [1], [2], [0, 0, 0, 1, 1, 2], [0], [0]>} : vector<2x16x16xf32>, vector<2x16x8xf32>, vector<2x16x8xf32> -> vector<2x16x8xf32>
    "tpu.trace_stop"() : () -> ()
    %c0_113 = arith.constant 0 : index
    %c0_114 = arith.constant 0 : index
    %c16_115 = arith.constant 16 : index
    %226 = vector.load %arg18[%c0_113, %c0_114, %c16_115] : memref<2x16x32xf32, #tpu.memory_space<vmem>>, vector<2x16x8xf32>
    tpu.vector_store %arg18[%c0_113, %c0_114, %c16_115], %225 {strides = array<i32>} : memref<2x16x32xf32, #tpu.memory_space<vmem>>, vector<2x16x8xf32>,
    %227 = vector.extract_strided_slice %172 {offsets = [0, 0, 24], sizes = [2, 16, 8], strides = [1, 1, 1]} : vector<2x16x96xf32> to vector<2x16x8xf32>
    %228 = vector.extract_strided_slice %172 {offsets = [0, 0, 56], sizes = [2, 16, 8], strides = [1, 1, 1]} : vector<2x16x96xf32> to vector<2x16x8xf32>
    %229 = vector.extract_strided_slice %172 {offsets = [0, 0, 88], sizes = [2, 16, 8], strides = [1, 1, 1]} : vector<2x16x96xf32> to vector<2x16x8xf32>
    "tpu.trace_start"() <{level = 10 : i32, message = "bqd,bkd->bqk"}> : () -> ()
    %cst_116 = arith.constant dense<0.000000e+00> : vector<2x16x16xf32>
    %230 = tpu.matmul %227, %228, %cst_116 {dimension_numbers = #tpu.dot_dimension_numbers<[2], [2], [1], [1], [0, 0, 0, 1, 1, 1], [0], [0]>} : vector<2x16x8xf32>, vector<2x16x8xf32>, vector<2x16x16xf32> -> vector<2x16x16xf32>
    "tpu.trace_stop"() : () -> ()
    %cst_117 = arith.constant 0.353553385 : f32
    %231 = vector.broadcast %cst_117 : f32 to vector<2x16x16xf32>
    %232 = arith.mulf %230, %231 : vector<2x16x16xf32>
    %cst_118 = arith.constant dense<0xFF800000> : vector<2x16xf32>
    %233 = vector.multi_reduction <maximumf>, %232, %cst_118 [2] : vector<2x16x16xf32> to vector<2x16xf32>
    %234 = vector.shape_cast %233 : vector<2x16xf32> to vector<2x16x1xf32>
    %235 = vector.broadcast %234 : vector<2x16x1xf32> to vector<2x16x16xf32>
    %236 = arith.subf %232, %235 : vector<2x16x16xf32>
    %237 = math.exp %236 : vector<2x16x16xf32>
    %cst_119 = arith.constant dense<0.000000e+00> : vector<2x16xf32>
    %238 = vector.multi_reduction <add>, %237, %cst_119 [2] : vector<2x16x16xf32> to vector<2x16xf32>
    %239 = vector.shape_cast %238 : vector<2x16xf32> to vector<2x16x1xf32>
    %240 = tpu.reciprocal %239 {approx = true} : vector<2x16x1xf32> -> vector<2x16x1xf32>
    %241 = vector.broadcast %240 : vector<2x16x1xf32> to vector<2x16x16xf32>
    %242 = arith.mulf %237, %241 : vector<2x16x16xf32>
    "tpu.trace_start"() <{level = 10 : i32, message = "bqk,bkd->bqd"}> : () -> ()
    %cst_120 = arith.constant dense<0.000000e+00> : vector<2x16x8xf32>
    %243 = tpu.matmul %242, %229, %cst_120 {dimension_numbers = #tpu.dot_dimension_numbers<[2], [1], [1], [2], [0, 0, 0, 1, 1, 2], [0], [0]>} : vector<2x16x16xf32>, vector<2x16x8xf32>, vector<2x16x8xf32> -> vector<2x16x8xf32>
    "tpu.trace_stop"() : () -> ()
    %c0_121 = arith.constant 0 : index
    %c0_122 = arith.constant 0 : index
    %c24_123 = arith.constant 24 : index
    %244 = vector.load %arg18[%c0_121, %c0_122, %c24_123] : memref<2x16x32xf32, #tpu.memory_space<vmem>>, vector<2x16x8xf32>
    tpu.vector_store %arg18[%c0_121, %c0_122, %c24_123], %243 {strides = array<i32>} : memref<2x16x32xf32, #tpu.memory_space<vmem>>, vector<2x16x8xf32>,
    %c0_124 = arith.constant 0 : index
    %c0_125 = arith.constant 0 : index
    %c0_126 = arith.constant 0 : index
    %245 = vector.load %arg18[%c0_124, %c0_125, %c0_126] : memref<2x16x32xf32, #tpu.memory_space<vmem>>, vector<2x16x32xf32>
    %246 = vector.shape_cast %245 : vector<2x16x32xf32> to vector<32x32xf32>
    %c1_127 = arith.constant 1 : index
    %c0_128 = arith.constant 0 : index
    %c0_129 = arith.constant 0 : index
    %247 = vector.load %arg5[%c1_127, %c0_128, %c0_129] : memref<2x32x32xf32, #tpu.memory_space<vmem>>, vector<1x32x32xf32>
    %248 = vector.shape_cast %247 : vector<1x32x32xf32> to vector<32x32xf32>
    %cst_130 = arith.constant dense<0.000000e+00> : vector<32x32xf32>
    %249 = tpu.matmul %246, %248, %cst_130 {dimension_numbers = #tpu.dot_dimension_numbers<[1], [0], [0], [1], [0, 0, 1, 1], [], []>} : vector<32x32xf32>, vector<32x32xf32>, vector<32x32xf32> -> vector<32x32xf32>
    %c1_131 = arith.constant 1 : index
    %c0_132 = arith.constant 0 : index
    %c0_133 = arith.constant 0 : index
    %250 = vector.load %arg6[%c1_131, %c0_132, %c0_133] : memref<2x1x32xf32, #tpu.memory_space<vmem>>, vector<1x1x32xf32>
    %251 = vector.shape_cast %250 : vector<1x1x32xf32> to vector<1x32xf32>
    %252 = vector.broadcast %251 : vector<1x32xf32> to vector<32x32xf32>
    %253 = arith.addf %249, %252 : vector<32x32xf32>
    %254 = arith.addf %164, %253 : vector<32x32xf32>
    %c1_134 = arith.constant 1 : index
    %c0_135 = arith.constant 0 : index
    %c0_136 = arith.constant 0 : index
    %255 = vector.load %arg7[%c1_134, %c0_135, %c0_136] : memref<2x1x32xf32, #tpu.memory_space<vmem>>, vector<1x1x32xf32>
    %256 = vector.shape_cast %255 : vector<1x1x32xf32> to vector<1x32xf32>
    %c1_137 = arith.constant 1 : index
    %c0_138 = arith.constant 0 : index
    %c0_139 = arith.constant 0 : index
    %257 = vector.load %arg8[%c1_137, %c0_138, %c0_139] : memref<2x1x32xf32, #tpu.memory_space<vmem>>, vector<1x1x32xf32>
    %258 = vector.shape_cast %257 : vector<1x1x32xf32> to vector<1x32xf32>
    %cst_140 = arith.constant dense<0.000000e+00> : vector<32xf32>
    %259 = vector.multi_reduction <add>, %254, %cst_140 [1] : vector<32x32xf32> to vector<32xf32>
    %260 = vector.shape_cast %259 : vector<32xf32> to vector<32x1xf32>
    %cst_141 = arith.constant 3.200000e+01 : f32
    %261 = vector.broadcast %cst_141 : f32 to vector<32x1xf32>
    %262 = arith.divf %260, %261 : vector<32x1xf32>
    %263 = vector.broadcast %262 : vector<32x1xf32> to vector<32x32xf32>
    %264 = arith.subf %254, %263 : vector<32x32xf32>
    %265 = arith.mulf %264, %264 : vector<32x32xf32>
    %cst_142 = arith.constant dense<0.000000e+00> : vector<32xf32>
    %266 = vector.multi_reduction <add>, %265, %cst_142 [1] : vector<32x32xf32> to vector<32xf32>
    %267 = vector.shape_cast %266 : vector<32xf32> to vector<32x1xf32>
    %cst_143 = arith.constant 3.200000e+01 : f32
    %268 = vector.broadcast %cst_143 : f32 to vector<32x1xf32>
    %269 = arith.divf %267, %268 : vector<32x1xf32>
    %270 = vector.broadcast %262 : vector<32x1xf32> to vector<32x32xf32>
    %271 = arith.subf %254, %270 : vector<32x32xf32>
    %cst_144 = arith.constant 9.99999974E-6 : f32
    %272 = vector.broadcast %cst_144 : f32 to vector<32x1xf32>
    %273 = arith.addf %269, %272 : vector<32x1xf32>
    %274 = math.rsqrt %273 : vector<32x1xf32>
    %275 = vector.broadcast %274 : vector<32x1xf32> to vector<32x32xf32>
    %276 = arith.mulf %271, %275 : vector<32x32xf32>
    %277 = vector.broadcast %256 : vector<1x32xf32> to vector<32x32xf32>
    %278 = arith.mulf %276, %277 : vector<32x32xf32>
    %279 = vector.broadcast %258 : vector<1x32xf32> to vector<32x32xf32>
    %280 = arith.addf %278, %279 : vector<32x32xf32>
    %c1_145 = arith.constant 1 : index
    %c0_146 = arith.constant 0 : index
    %c0_147 = arith.constant 0 : index
    %281 = vector.load %arg9[%c1_145, %c0_146, %c0_147] : memref<2x32x64xf32, #tpu.memory_space<vmem>>, vector<1x32x64xf32>
    %282 = vector.shape_cast %281 : vector<1x32x64xf32> to vector<32x64xf32>
    %cst_148 = arith.constant dense<0.000000e+00> : vector<32x64xf32>
    %283 = tpu.matmul %280, %282, %cst_148 {dimension_numbers = #tpu.dot_dimension_numbers<[1], [0], [0], [1], [0, 0, 1, 1], [], []>} : vector<32x32xf32>, vector<32x64xf32>, vector<32x64xf32> -> vector<32x64xf32>
    %c1_149 = arith.constant 1 : index
    %c0_150 = arith.constant 0 : index
    %c0_151 = arith.constant 0 : index
    %284 = vector.load %arg10[%c1_149, %c0_150, %c0_151] : memref<2x1x64xf32, #tpu.memory_space<vmem>>, vector<1x1x64xf32>
    %285 = vector.shape_cast %284 : vector<1x1x64xf32> to vector<1x64xf32>
    %286 = vector.broadcast %285 : vector<1x64xf32> to vector<32x64xf32>
    %287 = arith.addf %283, %286 : vector<32x64xf32>
    %cst_152 = arith.constant 0.000000e+00 : f32
    %288 = vector.broadcast %cst_152 : f32 to vector<32x64xf32>
    %289 = arith.maximumf %287, %288 : vector<32x64xf32>
    %c1_153 = arith.constant 1 : index
    %c0_154 = arith.constant 0 : index
    %c0_155 = arith.constant 0 : index
    %290 = vector.load %arg11[%c1_153, %c0_154, %c0_155] : memref<2x64x32xf32, #tpu.memory_space<vmem>>, vector<1x64x32xf32>
    %291 = vector.shape_cast %290 : vector<1x64x32xf32> to vector<64x32xf32>
    %cst_156 = arith.constant dense<0.000000e+00> : vector<32x32xf32>
    %292 = tpu.matmul %289, %291, %cst_156 {dimension_numbers = #tpu.dot_dimension_numbers<[1], [0], [0], [1], [0, 0, 1, 1], [], []>} : vector<32x64xf32>, vector<64x32xf32>, vector<32x32xf32> -> vector<32x32xf32>
    %c1_157 = arith.constant 1 : index
    %c0_158 = arith.constant 0 : index
    %c0_159 = arith.constant 0 : index
    %293 = vector.load %arg12[%c1_157, %c0_158, %c0_159] : memref<2x1x32xf32, #tpu.memory_space<vmem>>, vector<1x1x32xf32>
    %294 = vector.shape_cast %293 : vector<1x1x32xf32> to vector<1x32xf32>
    %295 = vector.broadcast %294 : vector<1x32xf32> to vector<32x32xf32>
    %296 = arith.addf %292, %295 : vector<32x32xf32>
    %297 = arith.addf %280, %296 : vector<32x32xf32>
    %c1_160 = arith.constant 1 : index
    %c0_161 = arith.constant 0 : index
    %c0_162 = arith.constant 0 : index
    %298 = vector.load %arg13[%c1_160, %c0_161, %c0_162] : memref<2x1x32xf32, #tpu.memory_space<vmem>>, vector<1x1x32xf32>
    %299 = vector.shape_cast %298 : vector<1x1x32xf32> to vector<1x32xf32>
    %c1_163 = arith.constant 1 : index
    %c0_164 = arith.constant 0 : index
    %c0_165 = arith.constant 0 : index
    %300 = vector.load %arg14[%c1_163, %c0_164, %c0_165] : memref<2x1x32xf32, #tpu.memory_space<vmem>>, vector<1x1x32xf32>
    %301 = vector.shape_cast %300 : vector<1x1x32xf32> to vector<1x32xf32>
    %cst_166 = arith.constant dense<0.000000e+00> : vector<32xf32>
    %302 = vector.multi_reduction <add>, %297, %cst_166 [1] : vector<32x32xf32> to vector<32xf32>
    %303 = vector.shape_cast %302 : vector<32xf32> to vector<32x1xf32>
    %cst_167 = arith.constant 3.200000e+01 : f32
    %304 = vector.broadcast %cst_167 : f32 to vector<32x1xf32>
    %305 = arith.divf %303, %304 : vector<32x1xf32>
    %306 = vector.broadcast %305 : vector<32x1xf32> to vector<32x32xf32>
    %307 = arith.subf %297, %306 : vector<32x32xf32>
    %308 = arith.mulf %307, %307 : vector<32x32xf32>
    %cst_168 = arith.constant dense<0.000000e+00> : vector<32xf32>
    %309 = vector.multi_reduction <add>, %308, %cst_168 [1] : vector<32x32xf32> to vector<32xf32>
    %310 = vector.shape_cast %309 : vector<32xf32> to vector<32x1xf32>
    %cst_169 = arith.constant 3.200000e+01 : f32
    %311 = vector.broadcast %cst_169 : f32 to vector<32x1xf32>
    %312 = arith.divf %310, %311 : vector<32x1xf32>
    %313 = vector.broadcast %305 : vector<32x1xf32> to vector<32x32xf32>
    %314 = arith.subf %297, %313 : vector<32x32xf32>
    %cst_170 = arith.constant 9.99999974E-6 : f32
    %315 = vector.broadcast %cst_170 : f32 to vector<32x1xf32>
    %316 = arith.addf %312, %315 : vector<32x1xf32>
    %317 = math.rsqrt %316 : vector<32x1xf32>
    %318 = vector.broadcast %317 : vector<32x1xf32> to vector<32x32xf32>
    %319 = arith.mulf %314, %318 : vector<32x32xf32>
    %320 = vector.broadcast %299 : vector<1x32xf32> to vector<32x32xf32>
    %321 = arith.mulf %319, %320 : vector<32x32xf32>
    %322 = vector.broadcast %301 : vector<1x32xf32> to vector<32x32xf32>
    %323 = arith.addf %321, %322 : vector<32x32xf32>
    %324 = vector.shape_cast %323 : vector<32x32xf32> to vector<2x16x32xf32>
    %c0_171 = arith.constant 0 : index
    %c0_172 = arith.constant 0 : index
    %c0_173 = arith.constant 0 : index
    %325 = vector.load %arg18[%c0_171, %c0_172, %c0_173] : memref<2x16x32xf32, #tpu.memory_space<vmem>>, vector<2x16x32xf32>
    tpu.vector_store %arg18[%c0_171, %c0_172, %c0_173], %324 {strides = array<i32>} : memref<2x16x32xf32, #tpu.memory_space<vmem>>, vector<2x16x32xf32>,
    %cst_174 = arith.constant 0.000000e+00 : f32
    %326 = vector.broadcast %cst_174 : f32 to vector<2x128xf32>
    %c0_175 = arith.constant 0 : index
    %c0_176 = arith.constant 0 : index
    %327 = vector.load %arg16[%c0_175, %c0_176] : memref<1x128xf32, #tpu.memory_space<vmem>>, vector<1x128xf32>
    %328 = vector.broadcast %327 : vector<1x128xf32> to vector<2x128xf32>
    %329 = arith.addf %326, %328 : vector<2x128xf32>
    %c0_177 = arith.constant 0 : index
    %c0_178 = arith.constant 0 : index
    %c0_179 = arith.constant 0 : index
    %330 = vector.load %arg18[%c0_177, %c0_178, %c0_179] : memref<2x16x32xf32, #tpu.memory_space<vmem>>, vector<2x1x32xf32>
    %331 = vector.shape_cast %330 : vector<2x1x32xf32> to vector<2x32xf32>
    %c0_180 = arith.constant 0 : index
    %c0_181 = arith.constant 0 : index
    %c0_182 = arith.constant 0 : index
    %332 = vector.load %arg15[%c0_180, %c0_181, %c0_182] : memref<16x32x128xf32, #tpu.memory_space<vmem>>, vector<1x32x128xf32>
    %333 = vector.shape_cast %332 : vector<1x32x128xf32> to vector<32x128xf32>
    %cst_183 = arith.constant dense<0.000000e+00> : vector<2x128xf32>
    %334 = tpu.matmul %331, %333, %cst_183 {dimension_numbers = #tpu.dot_dimension_numbers<[1], [0], [0], [1], [0, 0, 1, 1], [], []>} : vector<2x32xf32>, vector<32x128xf32>, vector<2x128xf32> -> vector<2x128xf32>
    %335 = arith.addf %329, %334 : vector<2x128xf32>
    %c0_184 = arith.constant 0 : index
    %c1_185 = arith.constant 1 : index
    %c0_186 = arith.constant 0 : index
    %336 = vector.load %arg18[%c0_184, %c1_185, %c0_186] : memref<2x16x32xf32, #tpu.memory_space<vmem>>, vector<2x1x32xf32>
    %337 = vector.shape_cast %336 : vector<2x1x32xf32> to vector<2x32xf32>
    %c1_187 = arith.constant 1 : index
    %c0_188 = arith.constant 0 : index
    %c0_189 = arith.constant 0 : index
    %338 = vector.load %arg15[%c1_187, %c0_188, %c0_189] : memref<16x32x128xf32, #tpu.memory_space<vmem>>, vector<1x32x128xf32>
    %339 = vector.shape_cast %338 : vector<1x32x128xf32> to vector<32x128xf32>
    %cst_190 = arith.constant dense<0.000000e+00> : vector<2x128xf32>
    %340 = tpu.matmul %337, %339, %cst_190 {dimension_numbers = #tpu.dot_dimension_numbers<[1], [0], [0], [1], [0, 0, 1, 1], [], []>} : vector<2x32xf32>, vector<32x128xf32>, vector<2x128xf32> -> vector<2x128xf32>
    %341 = arith.addf %335, %340 : vector<2x128xf32>
    %c0_191 = arith.constant 0 : index
    %c2 = arith.constant 2 : index
    %c0_192 = arith.constant 0 : index
    %342 = vector.load %arg18[%c0_191, %c2, %c0_192] : memref<2x16x32xf32, #tpu.memory_space<vmem>>, vector<2x1x32xf32>
    %343 = vector.shape_cast %342 : vector<2x1x32xf32> to vector<2x32xf32>
    %c2_193 = arith.constant 2 : index
    %c0_194 = arith.constant 0 : index
    %c0_195 = arith.constant 0 : index
    %344 = vector.load %arg15[%c2_193, %c0_194, %c0_195] : memref<16x32x128xf32, #tpu.memory_space<vmem>>, vector<1x32x128xf32>
    %345 = vector.shape_cast %344 : vector<1x32x128xf32> to vector<32x128xf32>
    %cst_196 = arith.constant dense<0.000000e+00> : vector<2x128xf32>
    %346 = tpu.matmul %343, %345, %cst_196 {dimension_numbers = #tpu.dot_dimension_numbers<[1], [0], [0], [1], [0, 0, 1, 1], [], []>} : vector<2x32xf32>, vector<32x128xf32>, vector<2x128xf32> -> vector<2x128xf32>
    %347 = arith.addf %341, %346 : vector<2x128xf32>
    %c0_197 = arith.constant 0 : index
    %c3 = arith.constant 3 : index
    %c0_198 = arith.constant 0 : index
    %348 = vector.load %arg18[%c0_197, %c3, %c0_198] : memref<2x16x32xf32, #tpu.memory_space<vmem>>, vector<2x1x32xf32>
    %349 = vector.shape_cast %348 : vector<2x1x32xf32> to vector<2x32xf32>
    %c3_199 = arith.constant 3 : index
    %c0_200 = arith.constant 0 : index
    %c0_201 = arith.constant 0 : index
    %350 = vector.load %arg15[%c3_199, %c0_200, %c0_201] : memref<16x32x128xf32, #tpu.memory_space<vmem>>, vector<1x32x128xf32>
    %351 = vector.shape_cast %350 : vector<1x32x128xf32> to vector<32x128xf32>
    %cst_202 = arith.constant dense<0.000000e+00> : vector<2x128xf32>
    %352 = tpu.matmul %349, %351, %cst_202 {dimension_numbers = #tpu.dot_dimension_numbers<[1], [0], [0], [1], [0, 0, 1, 1], [], []>} : vector<2x32xf32>, vector<32x128xf32>, vector<2x128xf32> -> vector<2x128xf32>
    %353 = arith.addf %347, %352 : vector<2x128xf32>
    %c0_203 = arith.constant 0 : index
    %c4 = arith.constant 4 : index
    %c0_204 = arith.constant 0 : index
    %354 = vector.load %arg18[%c0_203, %c4, %c0_204] : memref<2x16x32xf32, #tpu.memory_space<vmem>>, vector<2x1x32xf32>
    %355 = vector.shape_cast %354 : vector<2x1x32xf32> to vector<2x32xf32>
    %c4_205 = arith.constant 4 : index
    %c0_206 = arith.constant 0 : index
    %c0_207 = arith.constant 0 : index
    %356 = vector.load %arg15[%c4_205, %c0_206, %c0_207] : memref<16x32x128xf32, #tpu.memory_space<vmem>>, vector<1x32x128xf32>
    %357 = vector.shape_cast %356 : vector<1x32x128xf32> to vector<32x128xf32>
    %cst_208 = arith.constant dense<0.000000e+00> : vector<2x128xf32>
    %358 = tpu.matmul %355, %357, %cst_208 {dimension_numbers = #tpu.dot_dimension_numbers<[1], [0], [0], [1], [0, 0, 1, 1], [], []>} : vector<2x32xf32>, vector<32x128xf32>, vector<2x128xf32> -> vector<2x128xf32>
    %359 = arith.addf %353, %358 : vector<2x128xf32>
    %c0_209 = arith.constant 0 : index
    %c5 = arith.constant 5 : index
    %c0_210 = arith.constant 0 : index
    %360 = vector.load %arg18[%c0_209, %c5, %c0_210] : memref<2x16x32xf32, #tpu.memory_space<vmem>>, vector<2x1x32xf32>
    %361 = vector.shape_cast %360 : vector<2x1x32xf32> to vector<2x32xf32>
    %c5_211 = arith.constant 5 : index
    %c0_212 = arith.constant 0 : index
    %c0_213 = arith.constant 0 : index
    %362 = vector.load %arg15[%c5_211, %c0_212, %c0_213] : memref<16x32x128xf32, #tpu.memory_space<vmem>>, vector<1x32x128xf32>
    %363 = vector.shape_cast %362 : vector<1x32x128xf32> to vector<32x128xf32>
    %cst_214 = arith.constant dense<0.000000e+00> : vector<2x128xf32>
    %364 = tpu.matmul %361, %363, %cst_214 {dimension_numbers = #tpu.dot_dimension_numbers<[1], [0], [0], [1], [0, 0, 1, 1], [], []>} : vector<2x32xf32>, vector<32x128xf32>, vector<2x128xf32> -> vector<2x128xf32>
    %365 = arith.addf %359, %364 : vector<2x128xf32>
    %c0_215 = arith.constant 0 : index
    %c6 = arith.constant 6 : index
    %c0_216 = arith.constant 0 : index
    %366 = vector.load %arg18[%c0_215, %c6, %c0_216] : memref<2x16x32xf32, #tpu.memory_space<vmem>>, vector<2x1x32xf32>
    %367 = vector.shape_cast %366 : vector<2x1x32xf32> to vector<2x32xf32>
    %c6_217 = arith.constant 6 : index
    %c0_218 = arith.constant 0 : index
    %c0_219 = arith.constant 0 : index
    %368 = vector.load %arg15[%c6_217, %c0_218, %c0_219] : memref<16x32x128xf32, #tpu.memory_space<vmem>>, vector<1x32x128xf32>
    %369 = vector.shape_cast %368 : vector<1x32x128xf32> to vector<32x128xf32>
    %cst_220 = arith.constant dense<0.000000e+00> : vector<2x128xf32>
    %370 = tpu.matmul %367, %369, %cst_220 {dimension_numbers = #tpu.dot_dimension_numbers<[1], [0], [0], [1], [0, 0, 1, 1], [], []>} : vector<2x32xf32>, vector<32x128xf32>, vector<2x128xf32> -> vector<2x128xf32>
    %371 = arith.addf %365, %370 : vector<2x128xf32>
    %c0_221 = arith.constant 0 : index
    %c7 = arith.constant 7 : index
    %c0_222 = arith.constant 0 : index
    %372 = vector.load %arg18[%c0_221, %c7, %c0_222] : memref<2x16x32xf32, #tpu.memory_space<vmem>>, vector<2x1x32xf32>
    %373 = vector.shape_cast %372 : vector<2x1x32xf32> to vector<2x32xf32>
    %c7_223 = arith.constant 7 : index
    %c0_224 = arith.constant 0 : index
    %c0_225 = arith.constant 0 : index
    %374 = vector.load %arg15[%c7_223, %c0_224, %c0_225] : memref<16x32x128xf32, #tpu.memory_space<vmem>>, vector<1x32x128xf32>
    %375 = vector.shape_cast %374 : vector<1x32x128xf32> to vector<32x128xf32>
    %cst_226 = arith.constant dense<0.000000e+00> : vector<2x128xf32>
    %376 = tpu.matmul %373, %375, %cst_226 {dimension_numbers = #tpu.dot_dimension_numbers<[1], [0], [0], [1], [0, 0, 1, 1], [], []>} : vector<2x32xf32>, vector<32x128xf32>, vector<2x128xf32> -> vector<2x128xf32>
    %377 = arith.addf %371, %376 : vector<2x128xf32>
    %c0_227 = arith.constant 0 : index
    %c8_228 = arith.constant 8 : index
    %c0_229 = arith.constant 0 : index
    %378 = vector.load %arg18[%c0_227, %c8_228, %c0_229] : memref<2x16x32xf32, #tpu.memory_space<vmem>>, vector<2x1x32xf32>
    %379 = vector.shape_cast %378 : vector<2x1x32xf32> to vector<2x32xf32>
    %c8_230 = arith.constant 8 : index
    %c0_231 = arith.constant 0 : index
    %c0_232 = arith.constant 0 : index
    %380 = vector.load %arg15[%c8_230, %c0_231, %c0_232] : memref<16x32x128xf32, #tpu.memory_space<vmem>>, vector<1x32x128xf32>
    %381 = vector.shape_cast %380 : vector<1x32x128xf32> to vector<32x128xf32>
    %cst_233 = arith.constant dense<0.000000e+00> : vector<2x128xf32>
    %382 = tpu.matmul %379, %381, %cst_233 {dimension_numbers = #tpu.dot_dimension_numbers<[1], [0], [0], [1], [0, 0, 1, 1], [], []>} : vector<2x32xf32>, vector<32x128xf32>, vector<2x128xf32> -> vector<2x128xf32>
    %383 = arith.addf %377, %382 : vector<2x128xf32>
    %c0_234 = arith.constant 0 : index
    %c9 = arith.constant 9 : index
    %c0_235 = arith.constant 0 : index
    %384 = vector.load %arg18[%c0_234, %c9, %c0_235] : memref<2x16x32xf32, #tpu.memory_space<vmem>>, vector<2x1x32xf32>
    %385 = vector.shape_cast %384 : vector<2x1x32xf32> to vector<2x32xf32>
    %c9_236 = arith.constant 9 : index
    %c0_237 = arith.constant 0 : index
    %c0_238 = arith.constant 0 : index
    %386 = vector.load %arg15[%c9_236, %c0_237, %c0_238] : memref<16x32x128xf32, #tpu.memory_space<vmem>>, vector<1x32x128xf32>
    %387 = vector.shape_cast %386 : vector<1x32x128xf32> to vector<32x128xf32>
    %cst_239 = arith.constant dense<0.000000e+00> : vector<2x128xf32>
    %388 = tpu.matmul %385, %387, %cst_239 {dimension_numbers = #tpu.dot_dimension_numbers<[1], [0], [0], [1], [0, 0, 1, 1], [], []>} : vector<2x32xf32>, vector<32x128xf32>, vector<2x128xf32> -> vector<2x128xf32>
    %389 = arith.addf %383, %388 : vector<2x128xf32>
    %c0_240 = arith.constant 0 : index
    %c10 = arith.constant 10 : index
    %c0_241 = arith.constant 0 : index
    %390 = vector.load %arg18[%c0_240, %c10, %c0_241] : memref<2x16x32xf32, #tpu.memory_space<vmem>>, vector<2x1x32xf32>
    %391 = vector.shape_cast %390 : vector<2x1x32xf32> to vector<2x32xf32>
    %c10_242 = arith.constant 10 : index
    %c0_243 = arith.constant 0 : index
    %c0_244 = arith.constant 0 : index
    %392 = vector.load %arg15[%c10_242, %c0_243, %c0_244] : memref<16x32x128xf32, #tpu.memory_space<vmem>>, vector<1x32x128xf32>
    %393 = vector.shape_cast %392 : vector<1x32x128xf32> to vector<32x128xf32>
    %cst_245 = arith.constant dense<0.000000e+00> : vector<2x128xf32>
    %394 = tpu.matmul %391, %393, %cst_245 {dimension_numbers = #tpu.dot_dimension_numbers<[1], [0], [0], [1], [0, 0, 1, 1], [], []>} : vector<2x32xf32>, vector<32x128xf32>, vector<2x128xf32> -> vector<2x128xf32>
    %395 = arith.addf %389, %394 : vector<2x128xf32>
    %c0_246 = arith.constant 0 : index
    %c11 = arith.constant 11 : index
    %c0_247 = arith.constant 0 : index
    %396 = vector.load %arg18[%c0_246, %c11, %c0_247] : memref<2x16x32xf32, #tpu.memory_space<vmem>>, vector<2x1x32xf32>
    %397 = vector.shape_cast %396 : vector<2x1x32xf32> to vector<2x32xf32>
    %c11_248 = arith.constant 11 : index
    %c0_249 = arith.constant 0 : index
    %c0_250 = arith.constant 0 : index
    %398 = vector.load %arg15[%c11_248, %c0_249, %c0_250] : memref<16x32x128xf32, #tpu.memory_space<vmem>>, vector<1x32x128xf32>
    %399 = vector.shape_cast %398 : vector<1x32x128xf32> to vector<32x128xf32>
    %cst_251 = arith.constant dense<0.000000e+00> : vector<2x128xf32>
    %400 = tpu.matmul %397, %399, %cst_251 {dimension_numbers = #tpu.dot_dimension_numbers<[1], [0], [0], [1], [0, 0, 1, 1], [], []>} : vector<2x32xf32>, vector<32x128xf32>, vector<2x128xf32> -> vector<2x128xf32>
    %401 = arith.addf %395, %400 : vector<2x128xf32>
    %c0_252 = arith.constant 0 : index
    %c12 = arith.constant 12 : index
    %c0_253 = arith.constant 0 : index
    %402 = vector.load %arg18[%c0_252, %c12, %c0_253] : memref<2x16x32xf32, #tpu.memory_space<vmem>>, vector<2x1x32xf32>
    %403 = vector.shape_cast %402 : vector<2x1x32xf32> to vector<2x32xf32>
    %c12_254 = arith.constant 12 : index
    %c0_255 = arith.constant 0 : index
    %c0_256 = arith.constant 0 : index
    %404 = vector.load %arg15[%c12_254, %c0_255, %c0_256] : memref<16x32x128xf32, #tpu.memory_space<vmem>>, vector<1x32x128xf32>
    %405 = vector.shape_cast %404 : vector<1x32x128xf32> to vector<32x128xf32>
    %cst_257 = arith.constant dense<0.000000e+00> : vector<2x128xf32>
    %406 = tpu.matmul %403, %405, %cst_257 {dimension_numbers = #tpu.dot_dimension_numbers<[1], [0], [0], [1], [0, 0, 1, 1], [], []>} : vector<2x32xf32>, vector<32x128xf32>, vector<2x128xf32> -> vector<2x128xf32>
    %407 = arith.addf %401, %406 : vector<2x128xf32>
    %c0_258 = arith.constant 0 : index
    %c13 = arith.constant 13 : index
    %c0_259 = arith.constant 0 : index
    %408 = vector.load %arg18[%c0_258, %c13, %c0_259] : memref<2x16x32xf32, #tpu.memory_space<vmem>>, vector<2x1x32xf32>
    %409 = vector.shape_cast %408 : vector<2x1x32xf32> to vector<2x32xf32>
    %c13_260 = arith.constant 13 : index
    %c0_261 = arith.constant 0 : index
    %c0_262 = arith.constant 0 : index
    %410 = vector.load %arg15[%c13_260, %c0_261, %c0_262] : memref<16x32x128xf32, #tpu.memory_space<vmem>>, vector<1x32x128xf32>
    %411 = vector.shape_cast %410 : vector<1x32x128xf32> to vector<32x128xf32>
    %cst_263 = arith.constant dense<0.000000e+00> : vector<2x128xf32>
    %412 = tpu.matmul %409, %411, %cst_263 {dimension_numbers = #tpu.dot_dimension_numbers<[1], [0], [0], [1], [0, 0, 1, 1], [], []>} : vector<2x32xf32>, vector<32x128xf32>, vector<2x128xf32> -> vector<2x128xf32>
    %413 = arith.addf %407, %412 : vector<2x128xf32>
    %c0_264 = arith.constant 0 : index
    %c14 = arith.constant 14 : index
    %c0_265 = arith.constant 0 : index
    %414 = vector.load %arg18[%c0_264, %c14, %c0_265] : memref<2x16x32xf32, #tpu.memory_space<vmem>>, vector<2x1x32xf32>
    %415 = vector.shape_cast %414 : vector<2x1x32xf32> to vector<2x32xf32>
    %c14_266 = arith.constant 14 : index
    %c0_267 = arith.constant 0 : index
    %c0_268 = arith.constant 0 : index
    %416 = vector.load %arg15[%c14_266, %c0_267, %c0_268] : memref<16x32x128xf32, #tpu.memory_space<vmem>>, vector<1x32x128xf32>
    %417 = vector.shape_cast %416 : vector<1x32x128xf32> to vector<32x128xf32>
    %cst_269 = arith.constant dense<0.000000e+00> : vector<2x128xf32>
    %418 = tpu.matmul %415, %417, %cst_269 {dimension_numbers = #tpu.dot_dimension_numbers<[1], [0], [0], [1], [0, 0, 1, 1], [], []>} : vector<2x32xf32>, vector<32x128xf32>, vector<2x128xf32> -> vector<2x128xf32>
    %419 = arith.addf %413, %418 : vector<2x128xf32>
    %c0_270 = arith.constant 0 : index
    %c15 = arith.constant 15 : index
    %c0_271 = arith.constant 0 : index
    %420 = vector.load %arg18[%c0_270, %c15, %c0_271] : memref<2x16x32xf32, #tpu.memory_space<vmem>>, vector<2x1x32xf32>
    %421 = vector.shape_cast %420 : vector<2x1x32xf32> to vector<2x32xf32>
    %c15_272 = arith.constant 15 : index
    %c0_273 = arith.constant 0 : index
    %c0_274 = arith.constant 0 : index
    %422 = vector.load %arg15[%c15_272, %c0_273, %c0_274] : memref<16x32x128xf32, #tpu.memory_space<vmem>>, vector<1x32x128xf32>
    %423 = vector.shape_cast %422 : vector<1x32x128xf32> to vector<32x128xf32>
    %cst_275 = arith.constant dense<0.000000e+00> : vector<2x128xf32>
    %424 = tpu.matmul %421, %423, %cst_275 {dimension_numbers = #tpu.dot_dimension_numbers<[1], [0], [0], [1], [0, 0, 1, 1], [], []>} : vector<2x32xf32>, vector<32x128xf32>, vector<2x128xf32> -> vector<2x128xf32>
    %425 = arith.addf %419, %424 : vector<2x128xf32>
    %c0_276 = arith.constant 0 : index
    %c0_277 = arith.constant 0 : index
    %426 = vector.load %arg17[%c0_276, %c0_277] : memref<2x128xf32, #tpu.memory_space<vmem>>, vector<2x128xf32>
    tpu.vector_store %arg17[%c0_276, %c0_277], %425 {strides = array<i32>} : memref<2x128xf32, #tpu.memory_space<vmem>>, vector<2x128xf32>,
    return
  }
  func.func @transform_0(%arg0: i32) -> (i32, i32, i32) {
    %c0_i32 = arith.constant 0 : i32
    %c0_i32_0 = arith.constant 0 : i32
    %c0_i32_1 = arith.constant 0 : i32
    %c0_i32_2 = arith.constant 0 : i32
    return %c0_i32, %c0_i32_0, %c0_i32_1 : i32, i32, i32
  }
  func.func @transform_1(%arg0: i32) -> (i32, i32) {
    %c0_i32 = arith.constant 0 : i32
    %c0_i32_0 = arith.constant 0 : i32
    %c0_i32_1 = arith.constant 0 : i32
    return %c0_i32, %c0_i32_0 : i32, i32
  }
  func.func @transform_2(%arg0: i32) -> (i32, i32, i32) {
    %c0_i32 = arith.constant 0 : i32
    %c0_i32_0 = arith.constant 0 : i32
    %c0_i32_1 = arith.constant 0 : i32
    %c0_i32_2 = arith.constant 0 : i32
    return %c0_i32, %c0_i32_0, %c0_i32_1 : i32, i32, i32
  }
  func.func @transform_3(%arg0: i32) -> (i32, i32, i32) {
    %c0_i32 = arith.constant 0 : i32
    %c0_i32_0 = arith.constant 0 : i32
    %c0_i32_1 = arith.constant 0 : i32
    %c0_i32_2 = arith.constant 0 : i32
    return %c0_i32, %c0_i32_0, %c0_i32_1 : i32, i32, i32
  }
  func.func @transform_4(%arg0: i32) -> (i32, i32, i32) {
    %c0_i32 = arith.constant 0 : i32
    %c0_i32_0 = arith.constant 0 : i32
    %c0_i32_1 = arith.constant 0 : i32
    %c0_i32_2 = arith.constant 0 : i32
    return %c0_i32, %c0_i32_0, %c0_i32_1 : i32, i32, i32
  }
  func.func @transform_5(%arg0: i32) -> (i32, i32, i32) {
    %c0_i32 = arith.constant 0 : i32
    %c0_i32_0 = arith.constant 0 : i32
    %c0_i32_1 = arith.constant 0 : i32
    %c0_i32_2 = arith.constant 0 : i32
    return %c0_i32, %c0_i32_0, %c0_i32_1 : i32, i32, i32
  }
  func.func @transform_6(%arg0: i32) -> (i32, i32, i32) {
    %c0_i32 = arith.constant 0 : i32
    %c0_i32_0 = arith.constant 0 : i32
    %c0_i32_1 = arith.constant 0 : i32
    %c0_i32_2 = arith.constant 0 : i32
    return %c0_i32, %c0_i32_0, %c0_i32_1 : i32, i32, i32
  }
  func.func @transform_7(%arg0: i32) -> (i32, i32, i32) {
    %c0_i32 = arith.constant 0 : i32
    %c0_i32_0 = arith.constant 0 : i32
    %c0_i32_1 = arith.constant 0 : i32
    %c0_i32_2 = arith.constant 0 : i32
    return %c0_i32, %c0_i32_0, %c0_i32_1 : i32, i32, i32
  }
  func.func @transform_8(%arg0: i32) -> (i32, i32, i32) {
    %c0_i32 = arith.constant 0 : i32
    %c0_i32_0 = arith.constant 0 : i32
    %c0_i32_1 = arith.constant 0 : i32
    %c0_i32_2 = arith.constant 0 : i32
    return %c0_i32, %c0_i32_0, %c0_i32_1 : i32, i32, i32
  }
  func.func @transform_9(%arg0: i32) -> (i32, i32, i32) {
    %c0_i32 = arith.constant 0 : i32
    %c0_i32_0 = arith.constant 0 : i32
    %c0_i32_1 = arith.constant 0 : i32
    %c0_i32_2 = arith.constant 0 : i32
    return %c0_i32, %c0_i32_0, %c0_i32_1 : i32, i32, i32
  }
  func.func @transform_10(%arg0: i32) -> (i32, i32, i32) {
    %c0_i32 = arith.constant 0 : i32
    %c0_i32_0 = arith.constant 0 : i32
    %c0_i32_1 = arith.constant 0 : i32
    %c0_i32_2 = arith.constant 0 : i32
    return %c0_i32, %c0_i32_0, %c0_i32_1 : i32, i32, i32
  }
  func.func @transform_11(%arg0: i32) -> (i32, i32, i32) {
    %c0_i32 = arith.constant 0 : i32
    %c0_i32_0 = arith.constant 0 : i32
    %c0_i32_1 = arith.constant 0 : i32
    %c0_i32_2 = arith.constant 0 : i32
    return %c0_i32, %c0_i32_0, %c0_i32_1 : i32, i32, i32
  }
  func.func @transform_12(%arg0: i32) -> (i32, i32, i32) {
    %c0_i32 = arith.constant 0 : i32
    %c0_i32_0 = arith.constant 0 : i32
    %c0_i32_1 = arith.constant 0 : i32
    %c0_i32_2 = arith.constant 0 : i32
    return %c0_i32, %c0_i32_0, %c0_i32_1 : i32, i32, i32
  }
  func.func @transform_13(%arg0: i32) -> (i32, i32, i32) {
    %c0_i32 = arith.constant 0 : i32
    %c0_i32_0 = arith.constant 0 : i32
    %c0_i32_1 = arith.constant 0 : i32
    %c0_i32_2 = arith.constant 0 : i32
    return %c0_i32, %c0_i32_0, %c0_i32_1 : i32, i32, i32
  }
  func.func @transform_14(%arg0: i32) -> (i32, i32, i32) {
    %c0_i32 = arith.constant 0 : i32
    %c0_i32_0 = arith.constant 0 : i32
    %c0_i32_1 = arith.constant 0 : i32
    %c0_i32_2 = arith.constant 0 : i32
    return %c0_i32, %c0_i32_0, %c0_i32_1 : i32, i32, i32
  }
  func.func @transform_15(%arg0: i32) -> (i32, i32) {
    %c0_i32 = arith.constant 0 : i32
    %c0_i32_0 = arith.constant 0 : i32
    %c0_i32_1 = arith.constant 0 : i32
    return %c0_i32, %c0_i32_0 : i32, i32
  }
  func.func @transform_16(%arg0: i32) -> (i32, i32) {
    %c0_i32 = arith.constant 0 : i32
    %c0_i32_0 = arith.constant 0 : i32
    %c0_i32_1 = arith.constant 0 : i32
    return %c0_i32, %c0_i32_0 : i32, i32
  }
}

</mosaic_0001>

<llo_original>
// kernel: tpu_custom_call.1
$region0: #{tpu_custom_call.1}
  #allocation0 [shape = 'u32[]', space=smem, size = 0x4, offset = 0x4, fixed_abs, tag = 'smem constant byte address 0x4 - core index']
  #allocation1 [shape = 'u32[72,128]{1,0:T(1,128)}', space=vmem, size = 0x9000, scoped, tag = 'internal scratch']
  #allocation2 [shape = 'f32[2,16,32]{2,1,0:T(8,128)}', space=vmem, size = 0x4000, scoped, tag = 'scratch operand']
  %s0 = inlined_call_operand.hbm [shape: f32[2,16,32], index: 0, kind: input, shape index: {}]
  %s1 = inlined_call_operand.hbm [shape: f32[16,32], index: 1, kind: input, shape index: {}]
  %s2 = inlined_call_operand.vmem [shape: f32[2,32,96], index: 2, kind: input, shape index: {}]
  %s3 = inlined_call_operand.vmem [shape: f32[2,1,96], index: 3, kind: input, shape index: {}]
  %s4 = inlined_call_operand.vmem [shape: f32[2,32,32], index: 4, kind: input, shape index: {}]
  %s5 = inlined_call_operand.hbm [shape: f32[2,1,32], index: 5, kind: input, shape index: {}]
  %s6 = inlined_call_operand.vmem [shape: f32[2,1,32], index: 6, kind: input, shape index: {}]
  %s7 = inlined_call_operand.hbm [shape: f32[2,1,32], index: 7, kind: input, shape index: {}]
  %s8 = inlined_call_operand.vmem [shape: f32[2,32,64], index: 8, kind: input, shape index: {}]
  %s9 = inlined_call_operand.vmem [shape: f32[2,1,64], index: 9, kind: input, shape index: {}]
  %s10 = inlined_call_operand.vmem [shape: f32[2,64,32], index: 10, kind: input, shape index: {}]
  %s11 = inlined_call_operand.vmem [shape: f32[2,1,32], index: 11, kind: input, shape index: {}]
  %s12 = inlined_call_operand.vmem [shape: f32[2,1,32], index: 12, kind: input, shape index: {}]
  %s13 = inlined_call_operand.hbm [shape: f32[2,1,32], index: 13, kind: input, shape index: {}]
  %s14 = inlined_call_operand.hbm [shape: f32[16,32,128], index: 14, kind: input, shape index: {}]
  %s15 = inlined_call_operand.vmem [shape: f32[1,128], index: 15, kind: input, shape index: {}]
  %s16 = inlined_call_operand.hbm [shape: f32[2,128], index: 16, kind: output, shape index: {}]
  %s17 = sld [smem:[#allocation0]]
  $region98: #{tpu_custom_call.1} parent=0
    _
  %s19 = ssub.s32 1, %s17
  %s20 = scalar_select 0, %s19, %s17
  $region1: #{tpu_custom_call.1} parent=0
    #allocation3 [shape = 'u8[16384]{0}', space=vmem, size = 0x4000, scoped, tag = 'input window, operand 0, single buffered']
    #allocation4 [shape = 's32[1]{0}', space=sflag, size = 0x4, scoped, tag = 'scoped memory for tpu_custom_call.1']
    #allocation5 [shape = 's32[1]{0}', space=sflag, size = 0x4, scoped, tag = 'scoped memory for tpu_custom_call.1']
    #allocation6 [shape = 'u8[8192]{0}', space=vmem, size = 0x2000, scoped, tag = 'input window, operand 1, single buffered']
    #allocation7 [shape = 's32[1]{0}', space=sflag, size = 0x4, scoped, tag = 'scoped memory for tpu_custom_call.1']
    #allocation8 [shape = 'u8[1024]{0}', space=vmem, size = 0x400, scoped, tag = 'input window, operand 5, single buffered']
    #allocation9 [shape = 'u8[1024]{0}', space=vmem, size = 0x400, scoped, tag = 'input window, operand 7, single buffered']
    #allocation10 [shape = 's32[1]{0}', space=sflag, size = 0x4, scoped, tag = 'scoped memory for tpu_custom_call.1']
    #allocation11 [shape = 'u8[1024]{0}', space=vmem, size = 0x400, scoped, tag = 'input window, operand 13, single buffered']
    #allocation12 [shape = 'u8[262144]{0}', space=vmem, size = 0x40000, scoped, tag = 'input window, operand 14, single buffered']
    #allocation13 [shape = 's32[1]{0}', space=sflag, size = 0x4, scoped, tag = 'scoped memory for tpu_custom_call.1']
    #allocation14 [shape = 'u8[1024]{0}', space=vmem, size = 0x400, scoped, tag = 'output window, operand 0, single buffered']
    %21 = vsyncpa [#allocation4], 0
    %22 = vsyncpa [#allocation7], 0
    %23 = vsyncpa [#allocation10], 0
    %24 = vsyncpa [#allocation13], 0
    %25 = vsyncpa [#allocation5], 0
    // Predicated region
    $region2: #{tpu_custom_call.1} parent=1 // pred_check
      _
    $region3: #{tpu_custom_call.1} parent=1 // pred_check_branch
      %27 = sbr.rel (0) target = $region5
    $region4: #{tpu_custom_call.1} parent=1 // pred_region
      %29 = vsyncadd [#allocation4], 0
      %s30 = sshll.u32 %s0, 4
      %s31 = int_to_ptr.hbm [resolvable:$true] %s30
      %s32 = sshll.u32 [#allocation3], 4
      %s33 = int_to_ptr.vmem [resolvable:$true] %s32
      %38 = dma.hbm_to_vmem [thread:$0]  %s31, 512, %s33, [#allocation4], 128, 128, 8
    $region5: #{tpu_custom_call.1} parent=1 // pred_fallthru
      _
    // Predicated region
    $region6: #{tpu_custom_call.1} parent=1 // pred_check
      _
    $region7: #{tpu_custom_call.1} parent=1 // pred_check_branch
      %40 = sbr.rel (0) target = $region9
    $region8: #{tpu_custom_call.1} parent=1 // pred_region
      %42 = vsyncadd [#allocation7], 0
      %s43 = sshll.u32 %s1, 4
      %s44 = int_to_ptr.hbm [resolvable:$true] %s43
      %s45 = sshll.u32 [#allocation6], 4
      %s46 = int_to_ptr.vmem [resolvable:$true] %s45
      %51 = dma.hbm_to_vmem [thread:$0]  %s44, 256, %s46, [#allocation7], 128, 128, 8
    $region9: #{tpu_custom_call.1} parent=1 // pred_fallthru
      _
    // Predicated region
    $region10: #{tpu_custom_call.1} parent=1 // pred_check
      _
    $region11: #{tpu_custom_call.1} parent=1 // pred_check_branch
      %53 = sbr.rel (0) target = $region13
    $region12: #{tpu_custom_call.1} parent=1 // pred_region
      _
    $region13: #{tpu_custom_call.1} parent=1 // pred_fallthru
      _
    // Predicated region
    $region14: #{tpu_custom_call.1} parent=1 // pred_check
      _
    $region15: #{tpu_custom_call.1} parent=1 // pred_check_branch
      %55 = sbr.rel (0) target = $region17
    $region16: #{tpu_custom_call.1} parent=1 // pred_region
      _
    $region17: #{tpu_custom_call.1} parent=1 // pred_fallthru
      _
    // Predicated region
    $region18: #{tpu_custom_call.1} parent=1 // pred_check
      _
    $region19: #{tpu_custom_call.1} parent=1 // pred_check_branch
      %57 = sbr.rel (0) target = $region21
    $region20: #{tpu_custom_call.1} parent=1 // pred_region
      _
    $region21: #{tpu_custom_call.1} parent=1 // pred_fallthru
      _
    // Predicated region
    $region22: #{tpu_custom_call.1} parent=1 // pred_check
      _
    $region23: #{tpu_custom_call.1} parent=1 // pred_check_branch
      %59 = sbr.rel (0) target = $region25
    $region24: #{tpu_custom_call.1} parent=1 // pred_region
      %61 = vsyncadd [#allocation7], 0
      %s62 = sshll.u32 %s5, 4
      %s63 = int_to_ptr.hbm [resolvable:$true] %s62
      %s64 = sshll.u32 [#allocation8], 4
      %s65 = int_to_ptr.vmem [resolvable:$true] %s64
      %70 = dma.hbm_to_vmem [thread:$0]  %s63, 32, %s65, [#allocation7], 16, 16, 1
    $region25: #{tpu_custom_call.1} parent=1 // pred_fallthru
      _
    // Predicated region
    $region26: #{tpu_custom_call.1} parent=1 // pred_check
      _
    $region27: #{tpu_custom_call.1} parent=1 // pred_check_branch
      %72 = sbr.rel (0) target = $region29
    $region28: #{tpu_custom_call.1} parent=1 // pred_region
      _
    $region29: #{tpu_custom_call.1} parent=1 // pred_fallthru
      _
    // Predicated region
    $region30: #{tpu_custom_call.1} parent=1 // pred_check
      _
    $region31: #{tpu_custom_call.1} parent=1 // pred_check_branch
      %74 = sbr.rel (0) target = $region33
    $region32: #{tpu_custom_call.1} parent=1 // pred_region
      %76 = vsyncadd [#allocation10], 0
      %s77 = sshll.u32 %s7, 4
      %s78 = int_to_ptr.hbm [resolvable:$true] %s77
      %s79 = sshll.u32 [#allocation9], 4
      %s80 = int_to_ptr.vmem [resolvable:$true] %s79
      %85 = dma.hbm_to_vmem [thread:$0]  %s78, 32, %s80, [#allocation10], 16, 16, 1
    $region33: #{tpu_custom_call.1} parent=1 // pred_fallthru
      _
    // Predicated region
    $region34: #{tpu_custom_call.1} parent=1 // pred_check
      _
    $region35: #{tpu_custom_call.1} parent=1 // pred_check_branch
      %87 = sbr.rel (0) target = $region37
    $region36: #{tpu_custom_call.1} parent=1 // pred_region
      _
    $region37: #{tpu_custom_call.1} parent=1 // pred_fallthru
      _
    // Predicated region
    $region38: #{tpu_custom_call.1} parent=1 // pred_check
      _
    $region39: #{tpu_custom_call.1} parent=1 // pred_check_branch
      %89 = sbr.rel (0) target = $region41
    $region40: #{tpu_custom_call.1} parent=1 // pred_region
      _
    $region41: #{tpu_custom_call.1} parent=1 // pred_fallthru
      _
    // Predicated region
    $region42: #{tpu_custom_call.1} parent=1 // pred_check
      _
    $region43: #{tpu_custom_call.1} parent=1 // pred_check_branch
      %91 = sbr.rel (0) target = $region45
    $region44: #{tpu_custom_call.1} parent=1 // pred_region
      _
    $region45: #{tpu_custom_call.1} parent=1 // pred_fallthru
      _
    // Predicated region
    $region46: #{tpu_custom_call.1} parent=1 // pred_check
      _
    $region47: #{tpu_custom_call.1} parent=1 // pred_check_branch
      %93 = sbr.rel (0) target = $region49
    $region48: #{tpu_custom_call.1} parent=1 // pred_region
      _
    $region49: #{tpu_custom_call.1} parent=1 // pred_fallthru
      _
    // Predicated region
    $region50: #{tpu_custom_call.1} parent=1 // pred_check
      _
    $region51: #{tpu_custom_call.1} parent=1 // pred_check_branch
      %95 = sbr.rel (0) target = $region53
    $region52: #{tpu_custom_call.1} parent=1 // pred_region
      _
    $region53: #{tpu_custom_call.1} parent=1 // pred_fallthru
      _
    // Predicated region
    $region54: #{tpu_custom_call.1} parent=1 // pred_check
      _
    $region55: #{tpu_custom_call.1} parent=1 // pred_check_branch
      %97 = sbr.rel (0) target = $region57
    $region56: #{tpu_custom_call.1} parent=1 // pred_region
      %99 = vsyncadd [#allocation10], 0
      %s100 = sshll.u32 %s13, 4
      %s101 = int_to_ptr.hbm [resolvable:$true] %s100
      %s102 = sshll.u32 [#allocation11], 4
      %s103 = int_to_ptr.vmem [resolvable:$true] %s102
      %108 = dma.hbm_to_vmem [thread:$0]  %s101, 32, %s103, [#allocation10], 16, 16, 1
    $region57: #{tpu_custom_call.1} parent=1 // pred_fallthru
      _
    // Predicated region
    $region58: #{tpu_custom_call.1} parent=1 // pred_check
      _
    $region59: #{tpu_custom_call.1} parent=1 // pred_check_branch
      %110 = sbr.rel (0) target = $region61
    $region60: #{tpu_custom_call.1} parent=1 // pred_region
      %112 = vsyncadd [#allocation13], 0
      %s113 = sshll.u32 %s14, 4
      %s114 = int_to_ptr.hbm [resolvable:$true] %s113
      %s115 = sshll.u32 [#allocation12], 4
      %s116 = int_to_ptr.vmem [resolvable:$true] %s115
      %121 = dma.hbm_to_vmem [thread:$0]  %s114, 8192, %s116, [#allocation13], 128, 128, 8
    $region61: #{tpu_custom_call.1} parent=1 // pred_fallthru
      _
    // Predicated region
    $region62: #{tpu_custom_call.1} parent=1 // pred_check
      _
    $region63: #{tpu_custom_call.1} parent=1 // pred_check_branch
      %123 = sbr.rel (0) target = $region65
    $region64: #{tpu_custom_call.1} parent=1 // pred_region
      _
    $region65: #{tpu_custom_call.1} parent=1 // pred_fallthru
      _
    // Predicated region
    $region66: #{tpu_custom_call.1} parent=1 // pred_check
      _
    $region67: #{tpu_custom_call.1} parent=1 // pred_check_branch
      %125 = sbr.rel (0) target = $region69
    $region68: #{tpu_custom_call.1} parent=1 // pred_region
      %127 = dma.done [#allocation4], 512
    $region69: #{tpu_custom_call.1} parent=1 // pred_fallthru
      _
    // Predicated region
    $region70: #{tpu_custom_call.1} parent=1 // pred_check
      _
    $region71: #{tpu_custom_call.1} parent=1 // pred_check_branch
      %129 = sbr.rel (0) target = $region73
    $region72: #{tpu_custom_call.1} parent=1 // pred_region
      %131 = dma.done [#allocation7], 256
    $region73: #{tpu_custom_call.1} parent=1 // pred_fallthru
      _
    // Predicated region
    $region74: #{tpu_custom_call.1} parent=1 // pred_check
      _
    $region75: #{tpu_custom_call.1} parent=1 // pred_check_branch
      %133 = sbr.rel (0) target = $region77
    $region76: #{tpu_custom_call.1} parent=1 // pred_region
      %135 = dma.done [#allocation7], 32
    $region77: #{tpu_custom_call.1} parent=1 // pred_fallthru
      _
    // Predicated region
    $region78: #{tpu_custom_call.1} parent=1 // pred_check
      _
    $region79: #{tpu_custom_call.1} parent=1 // pred_check_branch
      %137 = sbr.rel (0) target = $region81
    $region80: #{tpu_custom_call.1} parent=1 // pred_region
      %139 = dma.done [#allocation10], 32
    $region81: #{tpu_custom_call.1} parent=1 // pred_fallthru
      _
    // Predicated region
    $region82: #{tpu_custom_call.1} parent=1 // pred_check
      _
    $region83: #{tpu_custom_call.1} parent=1 // pred_check_branch
      %141 = sbr.rel (0) target = $region85
    $region84: #{tpu_custom_call.1} parent=1 // pred_region
      %143 = dma.done [#allocation10], 32
    $region85: #{tpu_custom_call.1} parent=1 // pred_fallthru
      _
    // Predicated region
    $region86: #{tpu_custom_call.1} parent=1 // pred_check
      _
    $region87: #{tpu_custom_call.1} parent=1 // pred_check_branch
      %145 = sbr.rel (0) target = $region89
    $region88: #{tpu_custom_call.1} parent=1 // pred_region
      %147 = dma.done [#allocation13], 8192
    $region89: #{tpu_custom_call.1} parent=1 // pred_fallthru
      _
    %v148 = vld [vmem:[#allocation3] sm:$0xff]
    %v149 = vld [vmem:[#allocation3 + $0x8] sm:$0xff]
    %v150 = vld [vmem:[#allocation3 + $0x10] sm:$0xff]
    %v151 = vld [vmem:[#allocation3 + $0x18] sm:$0xff]
    %v152 = vld [vmem:[#allocation6] sm:$0xff]
    %v153 = vld [vmem:[#allocation6 + $0x8] sm:$0xff]
    %v154 = vadd.f32 %v148, %v152
    %v155 = vadd.f32 %v149, %v153
    %v156 = vadd.f32 %v150, %v152
    %v157 = vadd.f32 %v151, %v153
    %v158 = vld [vmem:[%s2] sm:$0xff]
    %v159 = vld [vmem:[%s2 + $0x8] sm:$0xff]
    %v160 = vld [vmem:[%s2 + $0x10] sm:$0xff]
    %v161 = vld [vmem:[%s2 + $0x18] sm:$0xff]
    %v162 = vld [vmem:[%s3] sm:$0x1]
    %v164 = vperm.slane %v162, 0
    %vm166 = vcmask 261120
    %v168 = vsel %vm166, %v154, 0
    %v171 = vsel %vm166, %v155, 0
    %v174 = vsel %vm166, %v156, 0
    %v177 = vsel %vm166, %v157, 0
    %179 = vmatpush.msra.mxu0 0.0
    %180 = vmatpush.msra.mxu0 0.0
    %181 = vmatpush.msra.mxu0 0.0
    %182 = vmatpush.msra.mxu0 0.0
    %183 = vmatpush.msra.mxu0 0.0
    %184 = vmatpush.msra.mxu0 0.0
    %185 = vmatpush.msra.mxu0 0.0
    %186 = vmatpush.msra.mxu0 0.0
    %187 = vmatpush.msra.mxu0 0.0
    %188 = vmatpush.msra.mxu0 0.0
    %189 = vmatpush.msra.mxu0 0.0
    %190 = vmatpush.msra.mxu0 0.0
    %191 = vmatpush.msra.mxu0 %v161
    %192 = vmatpush.msra.mxu0 %v160
    %193 = vmatpush.msra.mxu0 %v159
    %194 = vmatpush.msra.mxu0 %v158
    %195 = vmatmul.f32.gmra.mxu0 %v168
    %v196 = vpop.f32.mrf.mxu0
    %v197 = vadd.f32 %v164, %v196
    %198 = vmatmul.f32.gmra.mxu0 %v171
    %v199 = vpop.f32.mrf.mxu0
    %v200 = vadd.f32 %v164, %v199
    %201 = vmatmul.f32.gmra.mxu0 %v174
    %v202 = vpop.f32.mrf.mxu0
    %v203 = vadd.f32 %v164, %v202
    %204 = vmatmul.f32.gmra.mxu0 %v177
    %v205 = vpop.f32.mrf.mxu0
    %v206 = vadd.f32 %v164, %v205
    %207 = vdwg.mxu0
    %210 = vrot.lane.b32.xlu0 %v197, 96
    %v211 = vpop.permute.xlu0 %210
    %212 = vrot.lane.b32.xlu0 %v200, 96
    %v213 = vpop.permute.xlu0 %212
    %vm214 = vcmask 64512
    %v215 = vsel %vm214, %v197, 0
    %v217 = vsel %vm214, %v200, 0
    %v219 = vsel %vm214, %v211, 0
    %v221 = vsel %vm214, %v213, 0
    %223 = vmatpush.xpose.msra.mxu0 0.0
    %224 = vmatpush.xpose.msra.mxu0 0.0
    %225 = vmatpush.xpose.msra.mxu0 0.0
    %226 = vmatpush.xpose.msra.mxu0 0.0
    %227 = vmatpush.xpose.msra.mxu0 0.0
    %228 = vmatpush.xpose.msra.mxu0 0.0
    %229 = vmatpush.xpose.msra.mxu0 0.0
    %230 = vmatpush.xpose.msra.mxu0 0.0
    %231 = vmatpush.xpose.msra.mxu0 0.0
    %232 = vmatpush.xpose.msra.mxu0 0.0
    %233 = vmatpush.xpose.msra.mxu0 0.0
    %234 = vmatpush.xpose.msra.mxu0 0.0
    %235 = vmatpush.xpose.msra.mxu0 0.0
    %236 = vmatpush.xpose.msra.mxu0 0.0
    %237 = vmatpush.xpose.msra.mxu0 %v221
    %238 = vmatpush.xpose.msra.mxu0 %v219
    %239 = vmatmul.f32.gmra.mxu0 %v215
    %v240 = vpop.f32.mrf.mxu0
    %v241 = vadd.f32 0.0, %v240
    %242 = vmatmul.f32.gmra.mxu0 %v217
    %v243 = vpop.f32.mrf.mxu0
    %v244 = vadd.f32 0.0, %v243
    %245 = vdwg.mxu0
    %248 = vrot.lane.b32.xlu0 %v203, 96
    %v249 = vpop.permute.xlu0 %248
    %250 = vrot.lane.b32.xlu0 %v206, 96
    %v251 = vpop.permute.xlu0 %250
    %v252 = vsel %vm214, %v203, 0
    %v254 = vsel %vm214, %v206, 0
    %v256 = vsel %vm214, %v249, 0
    %v258 = vsel %vm214, %v251, 0
    %260 = vmatpush.xpose.msra.mxu0 0.0
    %261 = vmatpush.xpose.msra.mxu0 0.0
    %262 = vmatpush.xpose.msra.mxu0 0.0
    %263 = vmatpush.xpose.msra.mxu0 0.0
    %264 = vmatpush.xpose.msra.mxu0 0.0
    %265 = vmatpush.xpose.msra.mxu0 0.0
    %266 = vmatpush.xpose.msra.mxu0 0.0
    %267 = vmatpush.xpose.msra.mxu0 0.0
    %268 = vmatpush.xpose.msra.mxu0 0.0
    %269 = vmatpush.xpose.msra.mxu0 0.0
    %270 = vmatpush.xpose.msra.mxu0 0.0
    %271 = vmatpush.xpose.msra.mxu0 0.0
    %272 = vmatpush.xpose.msra.mxu0 0.0
    %273 = vmatpush.xpose.msra.mxu0 0.0
    %274 = vmatpush.xpose.msra.mxu0 %v258
    %275 = vmatpush.xpose.msra.mxu0 %v256
    %276 = vmatmul.f32.gmra.mxu0 %v252
    %v277 = vpop.f32.mrf.mxu0
    %v278 = vadd.f32 0.0, %v277
    %279 = vmatmul.f32.gmra.mxu0 %v254
    %v280 = vpop.f32.mrf.mxu0
    %v281 = vadd.f32 0.0, %v280
    %282 = vdwg.mxu0
    %v283 = vmul.f32 %v241, 0.35355338
    %v284 = vmul.f32 %v244, 0.35355338
    %v285 = vmul.f32 %v278, 0.35355338
    %v286 = vmul.f32 %v281, 0.35355338
    %vm287 = vcmask 130048
    %v288 = vsel %vm287, %v283, -inf
    %289 = vmax.xlane.f32.xlu0 %v288
    %v290 = vpop.xlane.xlu0 %289
    %v291 = vsel %vm287, %v284, -inf
    %292 = vmax.xlane.f32.xlu0 %v291
    %v293 = vpop.xlane.xlu0 %292
    %v294 = vsel %vm287, %v285, -inf
    %295 = vmax.xlane.f32.xlu0 %v294
    %v296 = vpop.xlane.xlu0 %295
    %v297 = vsel %vm287, %v286, -inf
    %298 = vmax.xlane.f32.xlu0 %v297
    %v299 = vpop.xlane.xlu0 %298
    %v300 = vsub.f32 %v283, %v290
    %v301 = vsub.f32 %v284, %v293
    %v302 = vsub.f32 %v285, %v296
    %v303 = vsub.f32 %v286, %v299
    %v304 = vmul.f32 %v300, 1.442695
    %v305 = vpow.pop %v304
    %v306 = vmul.f32 %v301, 1.442695
    %v307 = vpow.pop %v306
    %v308 = vmul.f32 %v302, 1.442695
    %v309 = vpow.pop %v308
    %v310 = vmul.f32 %v303, 1.442695
    %v311 = vpow.pop %v310
    %v312 = vsel %vm287, %v305, 0.0
    %313 = vadd.xlane.f32.xlu0 %v312
    %v314 = vpop.xlane.xlu0 %313
    %v315 = vsel %vm287, %v307, 0.0
    %316 = vadd.xlane.f32.xlu0 %v315
    %v317 = vpop.xlane.xlu0 %316
    %v318 = vsel %vm287, %v309, 0.0
    %319 = vadd.xlane.f32.xlu0 %v318
    %v320 = vpop.xlane.xlu0 %319
    %v321 = vsel %vm287, %v311, 0.0
    %322 = vadd.xlane.f32.xlu0 %v321
    %v323 = vpop.xlane.xlu0 %322
    %v324 = vrcp.pop %v314
    %v325 = vrcp.pop %v317
    %v326 = vrcp.pop %v320
    %v327 = vrcp.pop %v323
    %v328 = vmul.f32 %v305, %v324
    %v329 = vmul.f32 %v307, %v325
    %v330 = vmul.f32 %v309, %v326
    %v331 = vmul.f32 %v311, %v327
    %332 = vrot.lane.b32.xlu0 %v197, 64
    %v333 = vpop.permute.xlu0 %332
    %334 = vrot.lane.b32.xlu0 %v200, 64
    %v335 = vpop.permute.xlu0 %334
    %v339 = vsel %vm287, %v328, 0
    %v342 = vsel %vm287, %v329, 0
    %344 = vmatpush.msra.mxu0 0.0
    %345 = vmatpush.msra.mxu0 0.0
    %346 = vmatpush.msra.mxu0 0.0
    %347 = vmatpush.msra.mxu0 0.0
    %348 = vmatpush.msra.mxu0 0.0
    %349 = vmatpush.msra.mxu0 0.0
    %350 = vmatpush.msra.mxu0 0.0
    %351 = vmatpush.msra.mxu0 0.0
    %352 = vmatpush.msra.mxu0 0.0
    %353 = vmatpush.msra.mxu0 0.0
    %354 = vmatpush.msra.mxu0 0.0
    %355 = vmatpush.msra.mxu0 0.0
    %356 = vmatpush.msra.mxu0 0.0
    %357 = vmatpush.msra.mxu0 0.0
    %358 = vmatpush.msra.mxu0 %v335
    %359 = vmatpush.msra.mxu0 %v333
    %360 = vmatmul.f32.gmra.mxu0 %v339
    %v361 = vpop.f32.mrf.mxu0
    %v362 = vadd.f32 0.0, %v361
    %363 = vmatmul.f32.gmra.mxu0 %v342
    %v364 = vpop.f32.mrf.mxu0
    %v365 = vadd.f32 0.0, %v364
    %366 = vdwg.mxu0
    %367 = vrot.lane.b32.xlu0 %v203, 64
    %v368 = vpop.permute.xlu0 %367
    %369 = vrot.lane.b32.xlu0 %v206, 64
    %v370 = vpop.permute.xlu0 %369
    %v374 = vsel %vm287, %v330, 0
    %v377 = vsel %vm287, %v331, 0
    %379 = vmatpush.msra.mxu0 0.0
    %380 = vmatpush.msra.mxu0 0.0
    %381 = vmatpush.msra.mxu0 0.0
    %382 = vmatpush.msra.mxu0 0.0
    %383 = vmatpush.msra.mxu0 0.0
    %384 = vmatpush.msra.mxu0 0.0
    %385 = vmatpush.msra.mxu0 0.0
    %386 = vmatpush.msra.mxu0 0.0
    %387 = vmatpush.msra.mxu0 0.0
    %388 = vmatpush.msra.mxu0 0.0
    %389 = vmatpush.msra.mxu0 0.0
    %390 = vmatpush.msra.mxu0 0.0
    %391 = vmatpush.msra.mxu0 0.0
    %392 = vmatpush.msra.mxu0 0.0
    %393 = vmatpush.msra.mxu0 %v370
    %394 = vmatpush.msra.mxu0 %v368
    %395 = vmatmul.f32.gmra.mxu0 %v374
    %v396 = vpop.f32.mrf.mxu0
    %v397 = vadd.f32 0.0, %v396
    %398 = vmatmul.f32.gmra.mxu0 %v377
    %v399 = vpop.f32.mrf.mxu0
    %v400 = vadd.f32 0.0, %v399
    %401 = vdwg.mxu0
    %402 = vst.msk [vmem:[#allocation2] sm:$0xff] %vm214, %v362
    %403 = vst.msk [vmem:[#allocation2 + $0x8] sm:$0xff] %vm214, %v365
    %404 = vst.msk [vmem:[#allocation2 + $0x10] sm:$0xff] %vm214, %v397
    %405 = vst.msk [vmem:[#allocation2 + $0x18] sm:$0xff] %vm214, %v400
    %406 = vrot.lane.b32.xlu0 %v197, 120
    %v407 = vpop.permute.xlu0 %406
    %408 = vrot.lane.b32.xlu0 %v200, 120
    %v409 = vpop.permute.xlu0 %408
    %410 = vrot.lane.b32.xlu0 %v197, 88
    %v411 = vpop.permute.xlu0 %410
    %412 = vrot.lane.b32.xlu0 %v200, 88
    %v413 = vpop.permute.xlu0 %412
    %v414 = vsel %vm214, %v407, 0
    %v416 = vsel %vm214, %v409, 0
    %v418 = vsel %vm214, %v411, 0
    %v420 = vsel %vm214, %v413, 0
    %422 = vmatpush.xpose.msra.mxu0 0.0
    %423 = vmatpush.xpose.msra.mxu0 0.0
    %424 = vmatpush.xpose.msra.mxu0 0.0
    %425 = vmatpush.xpose.msra.mxu0 0.0
    %426 = vmatpush.xpose.msra.mxu0 0.0
    %427 = vmatpush.xpose.msra.mxu0 0.0
    %428 = vmatpush.xpose.msra.mxu0 0.0
    %429 = vmatpush.xpose.msra.mxu0 0.0
    %430 = vmatpush.xpose.msra.mxu0 0.0
    %431 = vmatpush.xpose.msra.mxu0 0.0
    %432 = vmatpush.xpose.msra.mxu0 0.0
    %433 = vmatpush.xpose.msra.mxu0 0.0
    %434 = vmatpush.xpose.msra.mxu0 0.0
    %435 = vmatpush.xpose.msra.mxu0 0.0
    %436 = vmatpush.xpose.msra.mxu0 %v420
    %437 = vmatpush.xpose.msra.mxu0 %v418
    %438 = vmatmul.f32.gmra.mxu0 %v414
    %v439 = vpop.f32.mrf.mxu0
    %v440 = vadd.f32 0.0, %v439
    %441 = vmatmul.f32.gmra.mxu0 %v416
    %v442 = vpop.f32.mrf.mxu0
    %v443 = vadd.f32 0.0, %v442
    %444 = vdwg.mxu0
    %445 = vrot.lane.b32.xlu0 %v203, 120
    %v446 = vpop.permute.xlu0 %445
    %447 = vrot.lane.b32.xlu0 %v206, 120
    %v448 = vpop.permute.xlu0 %447
    %449 = vrot.lane.b32.xlu0 %v203, 88
    %v450 = vpop.permute.xlu0 %449
    %451 = vrot.lane.b32.xlu0 %v206, 88
    %v452 = vpop.permute.xlu0 %451
    %v453 = vsel %vm214, %v446, 0
    %v455 = vsel %vm214, %v448, 0
    %v457 = vsel %vm214, %v450, 0
    %v459 = vsel %vm214, %v452, 0
    %461 = vmatpush.xpose.msra.mxu0 0.0
    %462 = vmatpush.xpose.msra.mxu0 0.0
    %463 = vmatpush.xpose.msra.mxu0 0.0
    %464 = vmatpush.xpose.msra.mxu0 0.0
    %465 = vmatpush.xpose.msra.mxu0 0.0
    %466 = vmatpush.xpose.msra.mxu0 0.0
    %467 = vmatpush.xpose.msra.mxu0 0.0
    %468 = vmatpush.xpose.msra.mxu0 0.0
    %469 = vmatpush.xpose.msra.mxu0 0.0
    %470 = vmatpush.xpose.msra.mxu0 0.0
    %471 = vmatpush.xpose.msra.mxu0 0.0
    %472 = vmatpush.xpose.msra.mxu0 0.0
    %473 = vmatpush.xpose.msra.mxu0 0.0
    %474 = vmatpush.xpose.msra.mxu0 0.0
    %475 = vmatpush.xpose.msra.mxu0 %v459
    %476 = vmatpush.xpose.msra.mxu0 %v457
    %477 = vmatmul.f32.gmra.mxu0 %v453
    %v478 = vpop.f32.mrf.mxu0
    %v479 = vadd.f32 0.0, %v478
    %480 = vmatmul.f32.gmra.mxu0 %v455
    %v481 = vpop.f32.mrf.mxu0
    %v482 = vadd.f32 0.0, %v481
    %483 = vdwg.mxu0
    %v484 = vmul.f32 %v440, 0.35355338
    %v485 = vmul.f32 %v443, 0.35355338
    %v486 = vmul.f32 %v479, 0.35355338
    %v487 = vmul.f32 %v482, 0.35355338
    %v488 = vsel %vm287, %v484, -inf
    %489 = vmax.xlane.f32.xlu0 %v488
    %v490 = vpop.xlane.xlu0 %489
    %v491 = vsel %vm287, %v485, -inf
    %492 = vmax.xlane.f32.xlu0 %v491
    %v493 = vpop.xlane.xlu0 %492
    %v494 = vsel %vm287, %v486, -inf
    %495 = vmax.xlane.f32.xlu0 %v494
    %v496 = vpop.xlane.xlu0 %495
    %v497 = vsel %vm287, %v487, -inf
    %498 = vmax.xlane.f32.xlu0 %v497
    %v499 = vpop.xlane.xlu0 %498
    %v500 = vsub.f32 %v484, %v490
    %v501 = vsub.f32 %v485, %v493
    %v502 = vsub.f32 %v486, %v496
    %v503 = vsub.f32 %v487, %v499
    %v504 = vmul.f32 %v500, 1.442695
    %v505 = vpow.pop %v504
    %v506 = vmul.f32 %v501, 1.442695
    %v507 = vpow.pop %v506
    %v508 = vmul.f32 %v502, 1.442695
    %v509 = vpow.pop %v508
    %v510 = vmul.f32 %v503, 1.442695
    %v511 = vpow.pop %v510
    %v512 = vsel %vm287, %v505, 0.0
    %513 = vadd.xlane.f32.xlu0 %v512
    %v514 = vpop.xlane.xlu0 %513
    %v515 = vsel %vm287, %v507, 0.0
    %516 = vadd.xlane.f32.xlu0 %v515
    %v517 = vpop.xlane.xlu0 %516
    %v518 = vsel %vm287, %v509, 0.0
    %519 = vadd.xlane.f32.xlu0 %v518
    %v520 = vpop.xlane.xlu0 %519
    %v521 = vsel %vm287, %v511, 0.0
    %522 = vadd.xlane.f32.xlu0 %v521
    %v523 = vpop.xlane.xlu0 %522
    %v524 = vrcp.pop %v514
    %v525 = vrcp.pop %v517
    %v526 = vrcp.pop %v520
    %v527 = vrcp.pop %v523
    %v528 = vmul.f32 %v505, %v524
    %v529 = vmul.f32 %v507, %v525
    %v530 = vmul.f32 %v509, %v526
    %v531 = vmul.f32 %v511, %v527
    %532 = vrot.lane.b32.xlu0 %v197, 56
    %v533 = vpop.permute.xlu0 %532
    %534 = vrot.lane.b32.xlu0 %v200, 56
    %v535 = vpop.permute.xlu0 %534
    %v539 = vsel %vm287, %v528, 0
    %v542 = vsel %vm287, %v529, 0
    %544 = vmatpush.msra.mxu0 0.0
    %545 = vmatpush.msra.mxu0 0.0
    %546 = vmatpush.msra.mxu0 0.0
    %547 = vmatpush.msra.mxu0 0.0
    %548 = vmatpush.msra.mxu0 0.0
    %549 = vmatpush.msra.mxu0 0.0
    %550 = vmatpush.msra.mxu0 0.0
    %551 = vmatpush.msra.mxu0 0.0
    %552 = vmatpush.msra.mxu0 0.0
    %553 = vmatpush.msra.mxu0 0.0
    %554 = vmatpush.msra.mxu0 0.0
    %555 = vmatpush.msra.mxu0 0.0
    %556 = vmatpush.msra.mxu0 0.0
    %557 = vmatpush.msra.mxu0 0.0
    %558 = vmatpush.msra.mxu0 %v535
    %559 = vmatpush.msra.mxu0 %v533
    %560 = vmatmul.f32.gmra.mxu0 %v539
    %v561 = vpop.f32.mrf.mxu0
    %v562 = vadd.f32 0.0, %v561
    %563 = vmatmul.f32.gmra.mxu0 %v542
    %v564 = vpop.f32.mrf.mxu0
    %v565 = vadd.f32 0.0, %v564
    %566 = vdwg.mxu0
    %567 = vrot.lane.b32.xlu0 %v203, 56
    %v568 = vpop.permute.xlu0 %567
    %569 = vrot.lane.b32.xlu0 %v206, 56
    %v570 = vpop.permute.xlu0 %569
    %v574 = vsel %vm287, %v530, 0
    %v577 = vsel %vm287, %v531, 0
    %579 = vmatpush.msra.mxu0 0.0
    %580 = vmatpush.msra.mxu0 0.0
    %581 = vmatpush.msra.mxu0 0.0
    %582 = vmatpush.msra.mxu0 0.0
    %583 = vmatpush.msra.mxu0 0.0
    %584 = vmatpush.msra.mxu0 0.0
    %585 = vmatpush.msra.mxu0 0.0
    %586 = vmatpush.msra.mxu0 0.0
    %587 = vmatpush.msra.mxu0 0.0
    %588 = vmatpush.msra.mxu0 0.0
    %589 = vmatpush.msra.mxu0 0.0
    %590 = vmatpush.msra.mxu0 0.0
    %591 = vmatpush.msra.mxu0 0.0
    %592 = vmatpush.msra.mxu0 0.0
    %593 = vmatpush.msra.mxu0 %v570
    %594 = vmatpush.msra.mxu0 %v568
    %595 = vmatmul.f32.gmra.mxu0 %v574
    %v596 = vpop.f32.mrf.mxu0
    %v597 = vadd.f32 0.0, %v596
    %598 = vmatmul.f32.gmra.mxu0 %v577
    %v599 = vpop.f32.mrf.mxu0
    %v600 = vadd.f32 0.0, %v599
    %601 = vdwg.mxu0
    %606 = vrot.lane.b32.xlu0 %v562, 8
    %v607 = vpop.permute.xlu0 %606
    %608 = vrot.lane.b32.xlu0 %v565, 8
    %v609 = vpop.permute.xlu0 %608
    %610 = vrot.lane.b32.xlu0 %v597, 8
    %v611 = vpop.permute.xlu0 %610
    %612 = vrot.lane.b32.xlu0 %v600, 8
    %v613 = vpop.permute.xlu0 %612
    %vm618 = vcmask 130112
    %619 = vst.msk [vmem:[#allocation2] sm:$0xff] %vm618, %v607
    %620 = vst.msk [vmem:[#allocation2 + $0x8] sm:$0xff] %vm618, %v609
    %621 = vst.msk [vmem:[#allocation2 + $0x10] sm:$0xff] %vm618, %v611
    %622 = vst.msk [vmem:[#allocation2 + $0x18] sm:$0xff] %vm618, %v613
    %623 = vrot.lane.b32.xlu0 %v197, 112
    %v624 = vpop.permute.xlu0 %623
    %625 = vrot.lane.b32.xlu0 %v200, 112
    %v626 = vpop.permute.xlu0 %625
    %627 = vrot.lane.b32.xlu0 %v197, 80
    %v628 = vpop.permute.xlu0 %627
    %629 = vrot.lane.b32.xlu0 %v200, 80
    %v630 = vpop.permute.xlu0 %629
    %v631 = vsel %vm214, %v624, 0
    %v633 = vsel %vm214, %v626, 0
    %v635 = vsel %vm214, %v628, 0
    %v637 = vsel %vm214, %v630, 0
    %639 = vmatpush.xpose.msra.mxu0 0.0
    %640 = vmatpush.xpose.msra.mxu0 0.0
    %641 = vmatpush.xpose.msra.mxu0 0.0
    %642 = vmatpush.xpose.msra.mxu0 0.0
    %643 = vmatpush.xpose.msra.mxu0 0.0
    %644 = vmatpush.xpose.msra.mxu0 0.0
    %645 = vmatpush.xpose.msra.mxu0 0.0
    %646 = vmatpush.xpose.msra.mxu0 0.0
    %647 = vmatpush.xpose.msra.mxu0 0.0
    %648 = vmatpush.xpose.msra.mxu0 0.0
    %649 = vmatpush.xpose.msra.mxu0 0.0
    %650 = vmatpush.xpose.msra.mxu0 0.0
    %651 = vmatpush.xpose.msra.mxu0 0.0
    %652 = vmatpush.xpose.msra.mxu0 0.0
    %653 = vmatpush.xpose.msra.mxu0 %v637
    %654 = vmatpush.xpose.msra.mxu0 %v635
    %655 = vmatmul.f32.gmra.mxu0 %v631
    %v656 = vpop.f32.mrf.mxu0
    %v657 = vadd.f32 0.0, %v656
    %658 = vmatmul.f32.gmra.mxu0 %v633
    %v659 = vpop.f32.mrf.mxu0
    %v660 = vadd.f32 0.0, %v659
    %661 = vdwg.mxu0
    %662 = vrot.lane.b32.xlu0 %v203, 112
    %v663 = vpop.permute.xlu0 %662
    %664 = vrot.lane.b32.xlu0 %v206, 112
    %v665 = vpop.permute.xlu0 %664
    %666 = vrot.lane.b32.xlu0 %v203, 80
    %v667 = vpop.permute.xlu0 %666
    %668 = vrot.lane.b32.xlu0 %v206, 80
    %v669 = vpop.permute.xlu0 %668
    %v670 = vsel %vm214, %v663, 0
    %v672 = vsel %vm214, %v665, 0
    %v674 = vsel %vm214, %v667, 0
    %v676 = vsel %vm214, %v669, 0
    %678 = vmatpush.xpose.msra.mxu0 0.0
    %679 = vmatpush.xpose.msra.mxu0 0.0
    %680 = vmatpush.xpose.msra.mxu0 0.0
    %681 = vmatpush.xpose.msra.mxu0 0.0
    %682 = vmatpush.xpose.msra.mxu0 0.0
    %683 = vmatpush.xpose.msra.mxu0 0.0
    %684 = vmatpush.xpose.msra.mxu0 0.0
    %685 = vmatpush.xpose.msra.mxu0 0.0
    %686 = vmatpush.xpose.msra.mxu0 0.0
    %687 = vmatpush.xpose.msra.mxu0 0.0
    %688 = vmatpush.xpose.msra.mxu0 0.0
    %689 = vmatpush.xpose.msra.mxu0 0.0
    %690 = vmatpush.xpose.msra.mxu0 0.0
    %691 = vmatpush.xpose.msra.mxu0 0.0
    %692 = vmatpush.xpose.msra.mxu0 %v676
    %693 = vmatpush.xpose.msra.mxu0 %v674
    %694 = vmatmul.f32.gmra.mxu0 %v670
    %v695 = vpop.f32.mrf.mxu0
    %v696 = vadd.f32 0.0, %v695
    %697 = vmatmul.f32.gmra.mxu0 %v672
    %v698 = vpop.f32.mrf.mxu0
    %v699 = vadd.f32 0.0, %v698
    %700 = vdwg.mxu0
    %v701 = vmul.f32 %v657, 0.35355338
    %v702 = vmul.f32 %v660, 0.35355338
    %v703 = vmul.f32 %v696, 0.35355338
    %v704 = vmul.f32 %v699, 0.35355338
    %v705 = vsel %vm287, %v701, -inf
    %706 = vmax.xlane.f32.xlu0 %v705
    %v707 = vpop.xlane.xlu0 %706
    %v708 = vsel %vm287, %v702, -inf
    %709 = vmax.xlane.f32.xlu0 %v708
    %v710 = vpop.xlane.xlu0 %709
    %v711 = vsel %vm287, %v703, -inf
    %712 = vmax.xlane.f32.xlu0 %v711
    %v713 = vpop.xlane.xlu0 %712
    %v714 = vsel %vm287, %v704, -inf
    %715 = vmax.xlane.f32.xlu0 %v714
    %v716 = vpop.xlane.xlu0 %715
    %v717 = vsub.f32 %v701, %v707
    %v718 = vsub.f32 %v702, %v710
    %v719 = vsub.f32 %v703, %v713
    %v720 = vsub.f32 %v704, %v716
    %v721 = vmul.f32 %v717, 1.442695
    %v722 = vpow.pop %v721
    %v723 = vmul.f32 %v718, 1.442695
    %v724 = vpow.pop %v723
    %v725 = vmul.f32 %v719, 1.442695
    %v726 = vpow.pop %v725
    %v727 = vmul.f32 %v720, 1.442695
    %v728 = vpow.pop %v727
    %v729 = vsel %vm287, %v722, 0.0
    %730 = vadd.xlane.f32.xlu0 %v729
    %v731 = vpop.xlane.xlu0 %730
    %v732 = vsel %vm287, %v724, 0.0
    %733 = vadd.xlane.f32.xlu0 %v732
    %v734 = vpop.xlane.xlu0 %733
    %v735 = vsel %vm287, %v726, 0.0
    %736 = vadd.xlane.f32.xlu0 %v735
    %v737 = vpop.xlane.xlu0 %736
    %v738 = vsel %vm287, %v728, 0.0
    %739 = vadd.xlane.f32.xlu0 %v738
    %v740 = vpop.xlane.xlu0 %739
    %v741 = vrcp.pop %v731
    %v742 = vrcp.pop %v734
    %v743 = vrcp.pop %v737
    %v744 = vrcp.pop %v740
    %v745 = vmul.f32 %v722, %v741
    %v746 = vmul.f32 %v724, %v742
    %v747 = vmul.f32 %v726, %v743
    %v748 = vmul.f32 %v728, %v744
    %749 = vrot.lane.b32.xlu0 %v197, 48
    %v750 = vpop.permute.xlu0 %749
    %751 = vrot.lane.b32.xlu0 %v200, 48
    %v752 = vpop.permute.xlu0 %751
    %v756 = vsel %vm287, %v745, 0
    %v759 = vsel %vm287, %v746, 0
    %761 = vmatpush.msra.mxu0 0.0
    %762 = vmatpush.msra.mxu0 0.0
    %763 = vmatpush.msra.mxu0 0.0
    %764 = vmatpush.msra.mxu0 0.0
    %765 = vmatpush.msra.mxu0 0.0
    %766 = vmatpush.msra.mxu0 0.0
    %767 = vmatpush.msra.mxu0 0.0
    %768 = vmatpush.msra.mxu0 0.0
    %769 = vmatpush.msra.mxu0 0.0
    %770 = vmatpush.msra.mxu0 0.0
    %771 = vmatpush.msra.mxu0 0.0
    %772 = vmatpush.msra.mxu0 0.0
    %773 = vmatpush.msra.mxu0 0.0
    %774 = vmatpush.msra.mxu0 0.0
    %775 = vmatpush.msra.mxu0 %v752
    %776 = vmatpush.msra.mxu0 %v750
    %777 = vmatmul.f32.gmra.mxu0 %v756
    %v778 = vpop.f32.mrf.mxu0
    %v779 = vadd.f32 0.0, %v778
    %780 = vmatmul.f32.gmra.mxu0 %v759
    %v781 = vpop.f32.mrf.mxu0
    %v782 = vadd.f32 0.0, %v781
    %783 = vdwg.mxu0
    %784 = vrot.lane.b32.xlu0 %v203, 48
    %v785 = vpop.permute.xlu0 %784
    %786 = vrot.lane.b32.xlu0 %v206, 48
    %v787 = vpop.permute.xlu0 %786
    %v791 = vsel %vm287, %v747, 0
    %v794 = vsel %vm287, %v748, 0
    %796 = vmatpush.msra.mxu0 0.0
    %797 = vmatpush.msra.mxu0 0.0
    %798 = vmatpush.msra.mxu0 0.0
    %799 = vmatpush.msra.mxu0 0.0
    %800 = vmatpush.msra.mxu0 0.0
    %801 = vmatpush.msra.mxu0 0.0
    %802 = vmatpush.msra.mxu0 0.0
    %803 = vmatpush.msra.mxu0 0.0
    %804 = vmatpush.msra.mxu0 0.0
    %805 = vmatpush.msra.mxu0 0.0
    %806 = vmatpush.msra.mxu0 0.0
    %807 = vmatpush.msra.mxu0 0.0
    %808 = vmatpush.msra.mxu0 0.0
    %809 = vmatpush.msra.mxu0 0.0
    %810 = vmatpush.msra.mxu0 %v787
    %811 = vmatpush.msra.mxu0 %v785
    %812 = vmatmul.f32.gmra.mxu0 %v791
    %v813 = vpop.f32.mrf.mxu0
    %v814 = vadd.f32 0.0, %v813
    %815 = vmatmul.f32.gmra.mxu0 %v794
    %v816 = vpop.f32.mrf.mxu0
    %v817 = vadd.f32 0.0, %v816
    %818 = vdwg.mxu0
    %823 = vrot.lane.b32.xlu0 %v779, 16
    %v824 = vpop.permute.xlu0 %823
    %825 = vrot.lane.b32.xlu0 %v782, 16
    %v826 = vpop.permute.xlu0 %825
    %827 = vrot.lane.b32.xlu0 %v814, 16
    %v828 = vpop.permute.xlu0 %827
    %829 = vrot.lane.b32.xlu0 %v817, 16
    %v830 = vpop.permute.xlu0 %829
    %vm835 = vcmask 195712
    %836 = vst.msk [vmem:[#allocation2] sm:$0xff] %vm835, %v824
    %837 = vst.msk [vmem:[#allocation2 + $0x8] sm:$0xff] %vm835, %v826
    %838 = vst.msk [vmem:[#allocation2 + $0x10] sm:$0xff] %vm835, %v828
    %839 = vst.msk [vmem:[#allocation2 + $0x18] sm:$0xff] %vm835, %v830
    %840 = vrot.lane.b32.xlu0 %v197, 104
    %v841 = vpop.permute.xlu0 %840
    %842 = vrot.lane.b32.xlu0 %v200, 104
    %v843 = vpop.permute.xlu0 %842
    %844 = vrot.lane.b32.xlu0 %v197, 72
    %v845 = vpop.permute.xlu0 %844
    %846 = vrot.lane.b32.xlu0 %v200, 72
    %v847 = vpop.permute.xlu0 %846
    %v848 = vsel %vm214, %v841, 0
    %v850 = vsel %vm214, %v843, 0
    %v852 = vsel %vm214, %v845, 0
    %v854 = vsel %vm214, %v847, 0
    %856 = vmatpush.xpose.msra.mxu0 0.0
    %857 = vmatpush.xpose.msra.mxu0 0.0
    %858 = vmatpush.xpose.msra.mxu0 0.0
    %859 = vmatpush.xpose.msra.mxu0 0.0
    %860 = vmatpush.xpose.msra.mxu0 0.0
    %861 = vmatpush.xpose.msra.mxu0 0.0
    %862 = vmatpush.xpose.msra.mxu0 0.0
    %863 = vmatpush.xpose.msra.mxu0 0.0
    %864 = vmatpush.xpose.msra.mxu0 0.0
    %865 = vmatpush.xpose.msra.mxu0 0.0
    %866 = vmatpush.xpose.msra.mxu0 0.0
    %867 = vmatpush.xpose.msra.mxu0 0.0
    %868 = vmatpush.xpose.msra.mxu0 0.0
    %869 = vmatpush.xpose.msra.mxu0 0.0
    %870 = vmatpush.xpose.msra.mxu0 %v854
    %871 = vmatpush.xpose.msra.mxu0 %v852
    %872 = vmatmul.f32.gmra.mxu0 %v848
    %v873 = vpop.f32.mrf.mxu0
    %v874 = vadd.f32 0.0, %v873
    %875 = vmatmul.f32.gmra.mxu0 %v850
    %v876 = vpop.f32.mrf.mxu0
    %v877 = vadd.f32 0.0, %v876
    %878 = vdwg.mxu0
    %879 = vrot.lane.b32.xlu0 %v203, 104
    %v880 = vpop.permute.xlu0 %879
    %881 = vrot.lane.b32.xlu0 %v206, 104
    %v882 = vpop.permute.xlu0 %881
    %883 = vrot.lane.b32.xlu0 %v203, 72
    %v884 = vpop.permute.xlu0 %883
    %885 = vrot.lane.b32.xlu0 %v206, 72
    %v886 = vpop.permute.xlu0 %885
    %v887 = vsel %vm214, %v880, 0
    %v889 = vsel %vm214, %v882, 0
    %v891 = vsel %vm214, %v884, 0
    %v893 = vsel %vm214, %v886, 0
    %895 = vmatpush.xpose.msra.mxu0 0.0
    %896 = vmatpush.xpose.msra.mxu0 0.0
    %897 = vmatpush.xpose.msra.mxu0 0.0
    %898 = vmatpush.xpose.msra.mxu0 0.0
    %899 = vmatpush.xpose.msra.mxu0 0.0
    %900 = vmatpush.xpose.msra.mxu0 0.0
    %901 = vmatpush.xpose.msra.mxu0 0.0
    %902 = vmatpush.xpose.msra.mxu0 0.0
    %903 = vmatpush.xpose.msra.mxu0 0.0
    %904 = vmatpush.xpose.msra.mxu0 0.0
    %905 = vmatpush.xpose.msra.mxu0 0.0
    %906 = vmatpush.xpose.msra.mxu0 0.0
    %907 = vmatpush.xpose.msra.mxu0 0.0
    %908 = vmatpush.xpose.msra.mxu0 0.0
    %909 = vmatpush.xpose.msra.mxu0 %v893
    %910 = vmatpush.xpose.msra.mxu0 %v891
    %911 = vmatmul.f32.gmra.mxu0 %v887
    %v912 = vpop.f32.mrf.mxu0
    %v913 = vadd.f32 0.0, %v912
    %914 = vmatmul.f32.gmra.mxu0 %v889
    %v915 = vpop.f32.mrf.mxu0
    %v916 = vadd.f32 0.0, %v915
    %917 = vdwg.mxu0
    %v918 = vmul.f32 %v874, 0.35355338
    %v919 = vmul.f32 %v877, 0.35355338
    %v920 = vmul.f32 %v913, 0.35355338
    %v921 = vmul.f32 %v916, 0.35355338
    %v922 = vsel %vm287, %v918, -inf
    %923 = vmax.xlane.f32.xlu0 %v922
    %v924 = vpop.xlane.xlu0 %923
    %v925 = vsel %vm287, %v919, -inf
    %926 = vmax.xlane.f32.xlu0 %v925
    %v927 = vpop.xlane.xlu0 %926
    %v928 = vsel %vm287, %v920, -inf
    %929 = vmax.xlane.f32.xlu0 %v928
    %v930 = vpop.xlane.xlu0 %929
    %v931 = vsel %vm287, %v921, -inf
    %932 = vmax.xlane.f32.xlu0 %v931
    %v933 = vpop.xlane.xlu0 %932
    %v934 = vsub.f32 %v918, %v924
    %v935 = vsub.f32 %v919, %v927
    %v936 = vsub.f32 %v920, %v930
    %v937 = vsub.f32 %v921, %v933
    %v938 = vmul.f32 %v934, 1.442695
    %v939 = vpow.pop %v938
    %v940 = vmul.f32 %v935, 1.442695
    %v941 = vpow.pop %v940
    %v942 = vmul.f32 %v936, 1.442695
    %v943 = vpow.pop %v942
    %v944 = vmul.f32 %v937, 1.442695
    %v945 = vpow.pop %v944
    %v946 = vsel %vm287, %v939, 0.0
    %947 = vadd.xlane.f32.xlu0 %v946
    %v948 = vpop.xlane.xlu0 %947
    %v949 = vsel %vm287, %v941, 0.0
    %950 = vadd.xlane.f32.xlu0 %v949
    %v951 = vpop.xlane.xlu0 %950
    %v952 = vsel %vm287, %v943, 0.0
    %953 = vadd.xlane.f32.xlu0 %v952
    %v954 = vpop.xlane.xlu0 %953
    %v955 = vsel %vm287, %v945, 0.0
    %956 = vadd.xlane.f32.xlu0 %v955
    %v957 = vpop.xlane.xlu0 %956
    %v958 = vrcp.pop %v948
    %v959 = vrcp.pop %v951
    %v960 = vrcp.pop %v954
    %v961 = vrcp.pop %v957
    %v962 = vmul.f32 %v939, %v958
    %v963 = vmul.f32 %v941, %v959
    %v964 = vmul.f32 %v943, %v960
    %v965 = vmul.f32 %v945, %v961
    %966 = vrot.lane.b32.xlu0 %v197, 40
    %v967 = vpop.permute.xlu0 %966
    %968 = vrot.lane.b32.xlu0 %v200, 40
    %v969 = vpop.permute.xlu0 %968
    %v973 = vsel %vm287, %v962, 0
    %v976 = vsel %vm287, %v963, 0
    %978 = vmatpush.msra.mxu0 0.0
    %979 = vmatpush.msra.mxu0 0.0
    %980 = vmatpush.msra.mxu0 0.0
    %981 = vmatpush.msra.mxu0 0.0
    %982 = vmatpush.msra.mxu0 0.0
    %983 = vmatpush.msra.mxu0 0.0
    %984 = vmatpush.msra.mxu0 0.0
    %985 = vmatpush.msra.mxu0 0.0
    %986 = vmatpush.msra.mxu0 0.0
    %987 = vmatpush.msra.mxu0 0.0
    %988 = vmatpush.msra.mxu0 0.0
    %989 = vmatpush.msra.mxu0 0.0
    %990 = vmatpush.msra.mxu0 0.0
    %991 = vmatpush.msra.mxu0 0.0
    %992 = vmatpush.msra.mxu0 %v969
    %993 = vmatpush.msra.mxu0 %v967
    %994 = vmatmul.f32.gmra.mxu0 %v973
    %v995 = vpop.f32.mrf.mxu0
    %v996 = vadd.f32 0.0, %v995
    %997 = vmatmul.f32.gmra.mxu0 %v976
    %v998 = vpop.f32.mrf.mxu0
    %v999 = vadd.f32 0.0, %v998
    %1000 = vdwg.mxu0
    %1001 = vrot.lane.b32.xlu0 %v203, 40
    %v1002 = vpop.permute.xlu0 %1001
    %1003 = vrot.lane.b32.xlu0 %v206, 40
    %v1004 = vpop.permute.xlu0 %1003
    %v1008 = vsel %vm287, %v964, 0
    %v1011 = vsel %vm287, %v965, 0
    %1013 = vmatpush.msra.mxu0 0.0
    %1014 = vmatpush.msra.mxu0 0.0
    %1015 = vmatpush.msra.mxu0 0.0
    %1016 = vmatpush.msra.mxu0 0.0
    %1017 = vmatpush.msra.mxu0 0.0
    %1018 = vmatpush.msra.mxu0 0.0
    %1019 = vmatpush.msra.mxu0 0.0
    %1020 = vmatpush.msra.mxu0 0.0
    %1021 = vmatpush.msra.mxu0 0.0
    %1022 = vmatpush.msra.mxu0 0.0
    %1023 = vmatpush.msra.mxu0 0.0
    %1024 = vmatpush.msra.mxu0 0.0
    %1025 = vmatpush.msra.mxu0 0.0
    %1026 = vmatpush.msra.mxu0 0.0
    %1027 = vmatpush.msra.mxu0 %v1004
    %1028 = vmatpush.msra.mxu0 %v1002
    %1029 = vmatmul.f32.gmra.mxu0 %v1008
    %v1030 = vpop.f32.mrf.mxu0
    %v1031 = vadd.f32 0.0, %v1030
    %1032 = vmatmul.f32.gmra.mxu0 %v1011
    %v1033 = vpop.f32.mrf.mxu0
    %v1034 = vadd.f32 0.0, %v1033
    %1035 = vdwg.mxu0
    %1040 = vrot.lane.b32.xlu0 %v996, 24
    %v1041 = vpop.permute.xlu0 %1040
    %1042 = vrot.lane.b32.xlu0 %v999, 24
    %v1043 = vpop.permute.xlu0 %1042
    %1044 = vrot.lane.b32.xlu0 %v1031, 24
    %v1045 = vpop.permute.xlu0 %1044
    %1046 = vrot.lane.b32.xlu0 %v1034, 24
    %v1047 = vpop.permute.xlu0 %1046
    %vm1052 = vcmask 261312
    %1053 = vst.msk [vmem:[#allocation2] sm:$0xff] %vm1052, %v1041
    %1054 = vst.msk [vmem:[#allocation2 + $0x8] sm:$0xff] %vm1052, %v1043
    %1055 = vst.msk [vmem:[#allocation2 + $0x10] sm:$0xff] %vm1052, %v1045
    %1056 = vst.msk [vmem:[#allocation2 + $0x18] sm:$0xff] %vm1052, %v1047
    %v1057 = vld [vmem:[#allocation2] sm:$0xff]
    %v1058 = vld [vmem:[#allocation2 + $0x8] sm:$0xff]
    %v1059 = vld [vmem:[#allocation2 + $0x10] sm:$0xff]
    %v1060 = vld [vmem:[#allocation2 + $0x18] sm:$0xff]
    %v1061 = vld [vmem:[%s4] sm:$0xff]
    %v1062 = vld [vmem:[%s4 + $0x8] sm:$0xff]
    %v1063 = vld [vmem:[%s4 + $0x10] sm:$0xff]
    %v1064 = vld [vmem:[%s4 + $0x18] sm:$0xff]
    %v1065 = vld [vmem:[#allocation8] sm:$0x1]
    %v1067 = vperm.slane %v1065, 0
    %v1070 = vsel %vm166, %v1057, 0
    %v1073 = vsel %vm166, %v1058, 0
    %v1076 = vsel %vm166, %v1059, 0
    %v1079 = vsel %vm166, %v1060, 0
    %1081 = vmatpush.msra.mxu0 0.0
    %1082 = vmatpush.msra.mxu0 0.0
    %1083 = vmatpush.msra.mxu0 0.0
    %1084 = vmatpush.msra.mxu0 0.0
    %1085 = vmatpush.msra.mxu0 0.0
    %1086 = vmatpush.msra.mxu0 0.0
    %1087 = vmatpush.msra.mxu0 0.0
    %1088 = vmatpush.msra.mxu0 0.0
    %1089 = vmatpush.msra.mxu0 0.0
    %1090 = vmatpush.msra.mxu0 0.0
    %1091 = vmatpush.msra.mxu0 0.0
    %1092 = vmatpush.msra.mxu0 0.0
    %1093 = vmatpush.msra.mxu0 %v1064
    %1094 = vmatpush.msra.mxu0 %v1063
    %1095 = vmatpush.msra.mxu0 %v1062
    %1096 = vmatpush.msra.mxu0 %v1061
    %1097 = vmatmul.f32.gmra.mxu0 %v1070
    %v1098 = vpop.f32.mrf.mxu0
    %v1099 = vadd.f32 %v1067, %v1098
    %1100 = vmatmul.f32.gmra.mxu0 %v1073
    %v1101 = vpop.f32.mrf.mxu0
    %v1102 = vadd.f32 %v1067, %v1101
    %1103 = vmatmul.f32.gmra.mxu0 %v1076
    %v1104 = vpop.f32.mrf.mxu0
    %v1105 = vadd.f32 %v1067, %v1104
    %1106 = vmatmul.f32.gmra.mxu0 %v1079
    %v1107 = vpop.f32.mrf.mxu0
    %v1108 = vadd.f32 %v1067, %v1107
    %1109 = vdwg.mxu0
    %v1110 = vadd.f32 %v154, %v1099
    %v1111 = vadd.f32 %v155, %v1102
    %v1112 = vadd.f32 %v156, %v1105
    %v1113 = vadd.f32 %v157, %v1108
    %v1114 = vld [vmem:[%s6] sm:$0x1]
    %v1115 = vld [vmem:[#allocation9] sm:$0x1]
    %v1116 = vsel %vm166, %v1110, 0.0
    %1117 = vadd.xlane.f32.xlu0 %v1116
    %v1118 = vpop.xlane.xlu0 %1117
    %v1119 = vsel %vm166, %v1111, 0.0
    %1120 = vadd.xlane.f32.xlu0 %v1119
    %v1121 = vpop.xlane.xlu0 %1120
    %v1122 = vsel %vm166, %v1112, 0.0
    %1123 = vadd.xlane.f32.xlu0 %v1122
    %v1124 = vpop.xlane.xlu0 %1123
    %v1125 = vsel %vm166, %v1113, 0.0
    %1126 = vadd.xlane.f32.xlu0 %v1125
    %v1127 = vpop.xlane.xlu0 %1126
    %v1128 = vrcp.pop 32.0
    %v1129 = vmul.f32 32.0, %v1128
    %v1130 = vsub.f32 1.0, %v1129
    %v1131 = vmul.f32 %v1128, %v1130
    %v1132 = vadd.f32 %v1128, %v1131
    %vm1133 = vweird.f32 %v1128
    %v1134 = vsel %vm1133, %v1128, %v1132
    %v1135 = vmul.f32 %v1118, %v1134
    %v1136 = vmul.f32 %v1121, %v1134
    %v1137 = vmul.f32 %v1124, %v1134
    %v1138 = vmul.f32 %v1127, %v1134
    %v1139 = vsub.f32 %v1110, %v1135
    %v1140 = vsub.f32 %v1111, %v1136
    %v1141 = vsub.f32 %v1112, %v1137
    %v1142 = vsub.f32 %v1113, %v1138
    %v1143 = vmul.f32 %v1139, %v1139
    %v1144 = vmul.f32 %v1140, %v1140
    %v1145 = vmul.f32 %v1141, %v1141
    %v1146 = vmul.f32 %v1142, %v1142
    %v1147 = vsel %vm166, %v1143, 0.0
    %1148 = vadd.xlane.f32.xlu0 %v1147
    %v1149 = vpop.xlane.xlu0 %1148
    %v1150 = vsel %vm166, %v1144, 0.0
    %1151 = vadd.xlane.f32.xlu0 %v1150
    %v1152 = vpop.xlane.xlu0 %1151
    %v1153 = vsel %vm166, %v1145, 0.0
    %1154 = vadd.xlane.f32.xlu0 %v1153
    %v1155 = vpop.xlane.xlu0 %1154
    %v1156 = vsel %vm166, %v1146, 0.0
    %1157 = vadd.xlane.f32.xlu0 %v1156
    %v1158 = vpop.xlane.xlu0 %1157
    %v1159 = vmul.f32 %v1149, %v1134
    %v1160 = vmul.f32 %v1152, %v1134
    %v1161 = vmul.f32 %v1155, %v1134
    %v1162 = vmul.f32 %v1158, %v1134
    %v1163 = vadd.f32 %v1159, 1e-05
    %v1164 = vadd.f32 %v1160, 1e-05
    %v1165 = vadd.f32 %v1161, 1e-05
    %v1166 = vadd.f32 %v1162, 1e-05
    %v1167 = vrsqrt.pop %v1163
    %v1168 = vmul.f32 %v1167, %v1163
    %v1169 = vmul.f32 %v1168, %v1167
    %v1170 = vmul.f32 0.5, %v1169
    %v1171 = vsub.f32 1.5, %v1170
    %v1172 = vmul.f32 %v1167, %v1171
    %vm1173 = vweird.f32 %v1163
    %vm1174 = vweird.f32 %v1167
    %vm1175 = vmor %vm1173, %vm1174
    %v1176 = vsel %vm1175, %v1167, %v1172
    %v1177 = vrsqrt.pop %v1164
    %v1178 = vmul.f32 %v1177, %v1164
    %v1179 = vmul.f32 %v1178, %v1177
    %v1180 = vmul.f32 0.5, %v1179
    %v1181 = vsub.f32 1.5, %v1180
    %v1182 = vmul.f32 %v1177, %v1181
    %vm1183 = vweird.f32 %v1164
    %vm1184 = vweird.f32 %v1177
    %vm1185 = vmor %vm1183, %vm1184
    %v1186 = vsel %vm1185, %v1177, %v1182
    %v1187 = vrsqrt.pop %v1165
    %v1188 = vmul.f32 %v1187, %v1165
    %v1189 = vmul.f32 %v1188, %v1187
    %v1190 = vmul.f32 0.5, %v1189
    %v1191 = vsub.f32 1.5, %v1190
    %v1192 = vmul.f32 %v1187, %v1191
    %vm1193 = vweird.f32 %v1165
    %vm1194 = vweird.f32 %v1187
    %vm1195 = vmor %vm1193, %vm1194
    %v1196 = vsel %vm1195, %v1187, %v1192
    %v1197 = vrsqrt.pop %v1166
    %v1198 = vmul.f32 %v1197, %v1166
    %v1199 = vmul.f32 %v1198, %v1197
    %v1200 = vmul.f32 0.5, %v1199
    %v1201 = vsub.f32 1.5, %v1200
    %v1202 = vmul.f32 %v1197, %v1201
    %vm1203 = vweird.f32 %v1166
    %vm1204 = vweird.f32 %v1197
    %vm1205 = vmor %vm1203, %vm1204
    %v1206 = vsel %vm1205, %v1197, %v1202
    %v1207 = vmul.f32 %v1139, %v1176
    %v1208 = vmul.f32 %v1140, %v1186
    %v1209 = vmul.f32 %v1141, %v1196
    %v1210 = vmul.f32 %v1142, %v1206
    %v1212 = vperm.slane %v1114, 0
    %v1214 = vmul.f32 %v1207, %v1212
    %v1215 = vmul.f32 %v1208, %v1212
    %v1216 = vmul.f32 %v1209, %v1212
    %v1217 = vmul.f32 %v1210, %v1212
    %v1219 = vperm.slane %v1115, 0
    %v1221 = vadd.f32 %v1214, %v1219
    %v1222 = vadd.f32 %v1215, %v1219
    %v1223 = vadd.f32 %v1216, %v1219
    %v1224 = vadd.f32 %v1217, %v1219
    %v1225 = vld [vmem:[%s8] sm:$0xff]
    %v1226 = vld [vmem:[%s8 + $0x8] sm:$0xff]
    %v1227 = vld [vmem:[%s8 + $0x10] sm:$0xff]
    %v1228 = vld [vmem:[%s8 + $0x18] sm:$0xff]
    %v1229 = vld [vmem:[%s9] sm:$0x1]
    %v1231 = vperm.slane %v1229, 0
    %v1234 = vsel %vm166, %v1221, 0
    %v1237 = vsel %vm166, %v1222, 0
    %v1240 = vsel %vm166, %v1223, 0
    %v1243 = vsel %vm166, %v1224, 0
    %1245 = vmatpush.msra.mxu0 0.0
    %1246 = vmatpush.msra.mxu0 0.0
    %1247 = vmatpush.msra.mxu0 0.0
    %1248 = vmatpush.msra.mxu0 0.0
    %1249 = vmatpush.msra.mxu0 0.0
    %1250 = vmatpush.msra.mxu0 0.0
    %1251 = vmatpush.msra.mxu0 0.0
    %1252 = vmatpush.msra.mxu0 0.0
    %1253 = vmatpush.msra.mxu0 0.0
    %1254 = vmatpush.msra.mxu0 0.0
    %1255 = vmatpush.msra.mxu0 0.0
    %1256 = vmatpush.msra.mxu0 0.0
    %1257 = vmatpush.msra.mxu0 %v1228
    %1258 = vmatpush.msra.mxu0 %v1227
    %1259 = vmatpush.msra.mxu0 %v1226
    %1260 = vmatpush.msra.mxu0 %v1225
    %1261 = vmatmul.f32.gmra.mxu0 %v1234
    %v1262 = vpop.f32.mrf.mxu0
    %v1263 = vadd.f32 %v1231, %v1262
    %1264 = vmatmul.f32.gmra.mxu0 %v1237
    %v1265 = vpop.f32.mrf.mxu0
    %v1266 = vadd.f32 %v1231, %v1265
    %1267 = vmatmul.f32.gmra.mxu0 %v1240
    %v1268 = vpop.f32.mrf.mxu0
    %v1269 = vadd.f32 %v1231, %v1268
    %1270 = vmatmul.f32.gmra.mxu0 %v1243
    %v1271 = vpop.f32.mrf.mxu0
    %v1272 = vadd.f32 %v1231, %v1271
    %1273 = vdwg.mxu0
    %v1274 = vmax.f32 %v1263, 0.0
    %v1275 = vmax.f32 %v1266, 0.0
    %v1276 = vmax.f32 %v1269, 0.0
    %v1277 = vmax.f32 %v1272, 0.0
    %v1278 = vld [vmem:[%s10] sm:$0xff]
    %v1279 = vld [vmem:[%s10 + $0x8] sm:$0xff]
    %v1280 = vld [vmem:[%s10 + $0x10] sm:$0xff]
    %v1281 = vld [vmem:[%s10 + $0x18] sm:$0xff]
    %v1282 = vld [vmem:[%s10 + $0x20] sm:$0xff]
    %v1283 = vld [vmem:[%s10 + $0x28] sm:$0xff]
    %v1284 = vld [vmem:[%s10 + $0x30] sm:$0xff]
    %v1285 = vld [vmem:[%s10 + $0x38] sm:$0xff]
    %v1286 = vld [vmem:[%s11] sm:$0x1]
    %v1288 = vperm.slane %v1286, 0
    %vm1290 = vcmask 523264
    %v1292 = vsel %vm1290, %v1274, 0
    %v1295 = vsel %vm1290, %v1275, 0
    %v1298 = vsel %vm1290, %v1276, 0
    %v1301 = vsel %vm1290, %v1277, 0
    %1303 = vmatpush.msra.mxu0 0.0
    %1304 = vmatpush.msra.mxu0 0.0
    %1305 = vmatpush.msra.mxu0 0.0
    %1306 = vmatpush.msra.mxu0 0.0
    %1307 = vmatpush.msra.mxu0 0.0
    %1308 = vmatpush.msra.mxu0 0.0
    %1309 = vmatpush.msra.mxu0 0.0
    %1310 = vmatpush.msra.mxu0 0.0
    %1311 = vmatpush.msra.mxu0 %v1285
    %1312 = vmatpush.msra.mxu0 %v1284
    %1313 = vmatpush.msra.mxu0 %v1283
    %1314 = vmatpush.msra.mxu0 %v1282
    %1315 = vmatpush.msra.mxu0 %v1281
    %1316 = vmatpush.msra.mxu0 %v1280
    %1317 = vmatpush.msra.mxu0 %v1279
    %1318 = vmatpush.msra.mxu0 %v1278
    %1319 = vmatmul.f32.gmra.mxu0 %v1292
    %v1320 = vpop.f32.mrf.mxu0
    %v1321 = vadd.f32 %v1288, %v1320
    %1322 = vmatmul.f32.gmra.mxu0 %v1295
    %v1323 = vpop.f32.mrf.mxu0
    %v1324 = vadd.f32 %v1288, %v1323
    %1325 = vmatmul.f32.gmra.mxu0 %v1298
    %v1326 = vpop.f32.mrf.mxu0
    %v1327 = vadd.f32 %v1288, %v1326
    %1328 = vmatmul.f32.gmra.mxu0 %v1301
    %v1329 = vpop.f32.mrf.mxu0
    %v1330 = vadd.f32 %v1288, %v1329
    %1331 = vdwg.mxu0
    %v1332 = vadd.f32 %v1221, %v1321
    %v1333 = vadd.f32 %v1222, %v1324
    %v1334 = vadd.f32 %v1223, %v1327
    %v1335 = vadd.f32 %v1224, %v1330
    %v1336 = vld [vmem:[%s12] sm:$0x1]
    %v1337 = vld [vmem:[#allocation11] sm:$0x1]
    %v1338 = vsel %vm166, %v1332, 0.0
    %1339 = vadd.xlane.f32.xlu0 %v1338
    %v1340 = vpop.xlane.xlu0 %1339
    %v1341 = vsel %vm166, %v1333, 0.0
    %1342 = vadd.xlane.f32.xlu0 %v1341
    %v1343 = vpop.xlane.xlu0 %1342
    %v1344 = vsel %vm166, %v1334, 0.0
    %1345 = vadd.xlane.f32.xlu0 %v1344
    %v1346 = vpop.xlane.xlu0 %1345
    %v1347 = vsel %vm166, %v1335, 0.0
    %1348 = vadd.xlane.f32.xlu0 %v1347
    %v1349 = vpop.xlane.xlu0 %1348
    %v1350 = vmul.f32 %v1340, %v1134
    %v1351 = vmul.f32 %v1343, %v1134
    %v1352 = vmul.f32 %v1346, %v1134
    %v1353 = vmul.f32 %v1349, %v1134
    %v1354 = vsub.f32 %v1332, %v1350
    %v1355 = vsub.f32 %v1333, %v1351
    %v1356 = vsub.f32 %v1334, %v1352
    %v1357 = vsub.f32 %v1335, %v1353
    %v1358 = vmul.f32 %v1354, %v1354
    %v1359 = vmul.f32 %v1355, %v1355
    %v1360 = vmul.f32 %v1356, %v1356
    %v1361 = vmul.f32 %v1357, %v1357
    %v1362 = vsel %vm166, %v1358, 0.0
    %1363 = vadd.xlane.f32.xlu0 %v1362
    %v1364 = vpop.xlane.xlu0 %1363
    %v1365 = vsel %vm166, %v1359, 0.0
    %1366 = vadd.xlane.f32.xlu0 %v1365
    %v1367 = vpop.xlane.xlu0 %1366
    %v1368 = vsel %vm166, %v1360, 0.0
    %1369 = vadd.xlane.f32.xlu0 %v1368
    %v1370 = vpop.xlane.xlu0 %1369
    %v1371 = vsel %vm166, %v1361, 0.0
    %1372 = vadd.xlane.f32.xlu0 %v1371
    %v1373 = vpop.xlane.xlu0 %1372
    %v1374 = vmul.f32 %v1364, %v1134
    %v1375 = vmul.f32 %v1367, %v1134
    %v1376 = vmul.f32 %v1370, %v1134
    %v1377 = vmul.f32 %v1373, %v1134
    %v1378 = vadd.f32 %v1374, 1e-05
    %v1379 = vadd.f32 %v1375, 1e-05
    %v1380 = vadd.f32 %v1376, 1e-05
    %v1381 = vadd.f32 %v1377, 1e-05
    %v1382 = vrsqrt.pop %v1378
    %v1383 = vmul.f32 %v1382, %v1378
    %v1384 = vmul.f32 %v1383, %v1382
    %v1385 = vmul.f32 0.5, %v1384
    %v1386 = vsub.f32 1.5, %v1385
    %v1387 = vmul.f32 %v1382, %v1386
    %vm1388 = vweird.f32 %v1378
    %vm1389 = vweird.f32 %v1382
    %vm1390 = vmor %vm1388, %vm1389
    %v1391 = vsel %vm1390, %v1382, %v1387
    %v1392 = vrsqrt.pop %v1379
    %v1393 = vmul.f32 %v1392, %v1379
    %v1394 = vmul.f32 %v1393, %v1392
    %v1395 = vmul.f32 0.5, %v1394
    %v1396 = vsub.f32 1.5, %v1395
    %v1397 = vmul.f32 %v1392, %v1396
    %vm1398 = vweird.f32 %v1379
    %vm1399 = vweird.f32 %v1392
    %vm1400 = vmor %vm1398, %vm1399
    %v1401 = vsel %vm1400, %v1392, %v1397
    %v1402 = vrsqrt.pop %v1380
    %v1403 = vmul.f32 %v1402, %v1380
    %v1404 = vmul.f32 %v1403, %v1402
    %v1405 = vmul.f32 0.5, %v1404
    %v1406 = vsub.f32 1.5, %v1405
    %v1407 = vmul.f32 %v1402, %v1406
    %vm1408 = vweird.f32 %v1380
    %vm1409 = vweird.f32 %v1402
    %vm1410 = vmor %vm1408, %vm1409
    %v1411 = vsel %vm1410, %v1402, %v1407
    %v1412 = vrsqrt.pop %v1381
    %v1413 = vmul.f32 %v1412, %v1381
    %v1414 = vmul.f32 %v1413, %v1412
    %v1415 = vmul.f32 0.5, %v1414
    %v1416 = vsub.f32 1.5, %v1415
    %v1417 = vmul.f32 %v1412, %v1416
    %vm1418 = vweird.f32 %v1381
    %vm1419 = vweird.f32 %v1412
    %vm1420 = vmor %vm1418, %vm1419
    %v1421 = vsel %vm1420, %v1412, %v1417
    %v1422 = vmul.f32 %v1354, %v1391
    %v1423 = vmul.f32 %v1355, %v1401
    %v1424 = vmul.f32 %v1356, %v1411
    %v1425 = vmul.f32 %v1357, %v1421
    %v1427 = vperm.slane %v1336, 0
    %v1429 = vmul.f32 %v1422, %v1427
    %v1430 = vmul.f32 %v1423, %v1427
    %v1431 = vmul.f32 %v1424, %v1427
    %v1432 = vmul.f32 %v1425, %v1427
    %v1434 = vperm.slane %v1337, 0
    %v1436 = vadd.f32 %v1429, %v1434
    %v1437 = vadd.f32 %v1430, %v1434
    %v1438 = vadd.f32 %v1431, %v1434
    %v1439 = vadd.f32 %v1432, %v1434
    %s1440 = scalar_lea.vmem %s2, 32
    %v1441 = vld [vmem:[%s1440] sm:$0xff]
    %v1442 = vld [vmem:[%s1440 + $0x8] sm:$0xff]
    %v1443 = vld [vmem:[%s1440 + $0x10] sm:$0xff]
    %v1444 = vld [vmem:[%s1440 + $0x18] sm:$0xff]
    %s1445 = scalar_lea.vmem %s3, 1
    %v1446 = vld [vmem:[%s1445] sm:$0x1]
    %v1448 = vperm.slane %v1446, 0
    %v1451 = vsel %vm166, %v1436, 0
    %v1454 = vsel %vm166, %v1437, 0
    %v1457 = vsel %vm166, %v1438, 0
    %v1460 = vsel %vm166, %v1439, 0
    %1462 = vmatpush.msra.mxu0 0.0
    %1463 = vmatpush.msra.mxu0 0.0
    %1464 = vmatpush.msra.mxu0 0.0
    %1465 = vmatpush.msra.mxu0 0.0
    %1466 = vmatpush.msra.mxu0 0.0
    %1467 = vmatpush.msra.mxu0 0.0
    %1468 = vmatpush.msra.mxu0 0.0
    %1469 = vmatpush.msra.mxu0 0.0
    %1470 = vmatpush.msra.mxu0 0.0
    %1471 = vmatpush.msra.mxu0 0.0
    %1472 = vmatpush.msra.mxu0 0.0
    %1473 = vmatpush.msra.mxu0 0.0
    %1474 = vmatpush.msra.mxu0 %v1444
    %1475 = vmatpush.msra.mxu0 %v1443
    %1476 = vmatpush.msra.mxu0 %v1442
    %1477 = vmatpush.msra.mxu0 %v1441
    %1478 = vmatmul.f32.gmra.mxu0 %v1451
    %v1479 = vpop.f32.mrf.mxu0
    %v1480 = vadd.f32 %v1448, %v1479
    %1481 = vmatmul.f32.gmra.mxu0 %v1454
    %v1482 = vpop.f32.mrf.mxu0
    %v1483 = vadd.f32 %v1448, %v1482
    %1484 = vmatmul.f32.gmra.mxu0 %v1457
    %v1485 = vpop.f32.mrf.mxu0
    %v1486 = vadd.f32 %v1448, %v1485
    %1487 = vmatmul.f32.gmra.mxu0 %v1460
    %v1488 = vpop.f32.mrf.mxu0
    %v1489 = vadd.f32 %v1448, %v1488
    %1490 = vdwg.mxu0
    %1493 = vrot.lane.b32.xlu0 %v1480, 96
    %v1494 = vpop.permute.xlu0 %1493
    %1495 = vrot.lane.b32.xlu0 %v1483, 96
    %v1496 = vpop.permute.xlu0 %1495
    %v1497 = vsel %vm214, %v1480, 0
    %v1499 = vsel %vm214, %v1483, 0
    %v1501 = vsel %vm214, %v1494, 0
    %v1503 = vsel %vm214, %v1496, 0
    %1505 = vmatpush.xpose.msra.mxu0 0.0
    %1506 = vmatpush.xpose.msra.mxu0 0.0
    %1507 = vmatpush.xpose.msra.mxu0 0.0
    %1508 = vmatpush.xpose.msra.mxu0 0.0
    %1509 = vmatpush.xpose.msra.mxu0 0.0
    %1510 = vmatpush.xpose.msra.mxu0 0.0
    %1511 = vmatpush.xpose.msra.mxu0 0.0
    %1512 = vmatpush.xpose.msra.mxu0 0.0
    %1513 = vmatpush.xpose.msra.mxu0 0.0
    %1514 = vmatpush.xpose.msra.mxu0 0.0
    %1515 = vmatpush.xpose.msra.mxu0 0.0
    %1516 = vmatpush.xpose.msra.mxu0 0.0
    %1517 = vmatpush.xpose.msra.mxu0 0.0
    %1518 = vmatpush.xpose.msra.mxu0 0.0
    %1519 = vmatpush.xpose.msra.mxu0 %v1503
    %1520 = vmatpush.xpose.msra.mxu0 %v1501
    %1521 = vmatmul.f32.gmra.mxu0 %v1497
    %v1522 = vpop.f32.mrf.mxu0
    %v1523 = vadd.f32 0.0, %v1522
    %1524 = vmatmul.f32.gmra.mxu0 %v1499
    %v1525 = vpop.f32.mrf.mxu0
    %v1526 = vadd.f32 0.0, %v1525
    %1527 = vdwg.mxu0
    %1530 = vrot.lane.b32.xlu0 %v1486, 96
    %v1531 = vpop.permute.xlu0 %1530
    %1532 = vrot.lane.b32.xlu0 %v1489, 96
    %v1533 = vpop.permute.xlu0 %1532
    %v1534 = vsel %vm214, %v1486, 0
    %v1536 = vsel %vm214, %v1489, 0
    %v1538 = vsel %vm214, %v1531, 0
    %v1540 = vsel %vm214, %v1533, 0
    %1542 = vmatpush.xpose.msra.mxu0 0.0
    %1543 = vmatpush.xpose.msra.mxu0 0.0
    %1544 = vmatpush.xpose.msra.mxu0 0.0
    %1545 = vmatpush.xpose.msra.mxu0 0.0
    %1546 = vmatpush.xpose.msra.mxu0 0.0
    %1547 = vmatpush.xpose.msra.mxu0 0.0
    %1548 = vmatpush.xpose.msra.mxu0 0.0
    %1549 = vmatpush.xpose.msra.mxu0 0.0
    %1550 = vmatpush.xpose.msra.mxu0 0.0
    %1551 = vmatpush.xpose.msra.mxu0 0.0
    %1552 = vmatpush.xpose.msra.mxu0 0.0
    %1553 = vmatpush.xpose.msra.mxu0 0.0
    %1554 = vmatpush.xpose.msra.mxu0 0.0
    %1555 = vmatpush.xpose.msra.mxu0 0.0
    %1556 = vmatpush.xpose.msra.mxu0 %v1540
    %1557 = vmatpush.xpose.msra.mxu0 %v1538
    %1558 = vmatmul.f32.gmra.mxu0 %v1534
    %v1559 = vpop.f32.mrf.mxu0
    %v1560 = vadd.f32 0.0, %v1559
    %1561 = vmatmul.f32.gmra.mxu0 %v1536
    %v1562 = vpop.f32.mrf.mxu0
    %v1563 = vadd.f32 0.0, %v1562
    %1564 = vdwg.mxu0
    %v1565 = vmul.f32 %v1523, 0.35355338
    %v1566 = vmul.f32 %v1526, 0.35355338
    %v1567 = vmul.f32 %v1560, 0.35355338
    %v1568 = vmul.f32 %v1563, 0.35355338
    %v1569 = vsel %vm287, %v1565, -inf
    %1570 = vmax.xlane.f32.xlu0 %v1569
    %v1571 = vpop.xlane.xlu0 %1570
    %v1572 = vsel %vm287, %v1566, -inf
    %1573 = vmax.xlane.f32.xlu0 %v1572
    %v1574 = vpop.xlane.xlu0 %1573
    %v1575 = vsel %vm287, %v1567, -inf
    %1576 = vmax.xlane.f32.xlu0 %v1575
    %v1577 = vpop.xlane.xlu0 %1576
    %v1578 = vsel %vm287, %v1568, -inf
    %1579 = vmax.xlane.f32.xlu0 %v1578
    %v1580 = vpop.xlane.xlu0 %1579
    %v1581 = vsub.f32 %v1565, %v1571
    %v1582 = vsub.f32 %v1566, %v1574
    %v1583 = vsub.f32 %v1567, %v1577
    %v1584 = vsub.f32 %v1568, %v1580
    %v1585 = vmul.f32 %v1581, 1.442695
    %v1586 = vpow.pop %v1585
    %v1587 = vmul.f32 %v1582, 1.442695
    %v1588 = vpow.pop %v1587
    %v1589 = vmul.f32 %v1583, 1.442695
    %v1590 = vpow.pop %v1589
    %v1591 = vmul.f32 %v1584, 1.442695
    %v1592 = vpow.pop %v1591
    %v1593 = vsel %vm287, %v1586, 0.0
    %1594 = vadd.xlane.f32.xlu0 %v1593
    %v1595 = vpop.xlane.xlu0 %1594
    %v1596 = vsel %vm287, %v1588, 0.0
    %1597 = vadd.xlane.f32.xlu0 %v1596
    %v1598 = vpop.xlane.xlu0 %1597
    %v1599 = vsel %vm287, %v1590, 0.0
    %1600 = vadd.xlane.f32.xlu0 %v1599
    %v1601 = vpop.xlane.xlu0 %1600
    %v1602 = vsel %vm287, %v1592, 0.0
    %1603 = vadd.xlane.f32.xlu0 %v1602
    %v1604 = vpop.xlane.xlu0 %1603
    %v1605 = vrcp.pop %v1595
    %v1606 = vrcp.pop %v1598
    %v1607 = vrcp.pop %v1601
    %v1608 = vrcp.pop %v1604
    %v1609 = vmul.f32 %v1586, %v1605
    %v1610 = vmul.f32 %v1588, %v1606
    %v1611 = vmul.f32 %v1590, %v1607
    %v1612 = vmul.f32 %v1592, %v1608
    %1613 = vrot.lane.b32.xlu0 %v1480, 64
    %v1614 = vpop.permute.xlu0 %1613
    %1615 = vrot.lane.b32.xlu0 %v1483, 64
    %v1616 = vpop.permute.xlu0 %1615
    %v1620 = vsel %vm287, %v1609, 0
    %v1623 = vsel %vm287, %v1610, 0
    %1625 = vmatpush.msra.mxu0 0.0
    %1626 = vmatpush.msra.mxu0 0.0
    %1627 = vmatpush.msra.mxu0 0.0
    %1628 = vmatpush.msra.mxu0 0.0
    %1629 = vmatpush.msra.mxu0 0.0
    %1630 = vmatpush.msra.mxu0 0.0
    %1631 = vmatpush.msra.mxu0 0.0
    %1632 = vmatpush.msra.mxu0 0.0
    %1633 = vmatpush.msra.mxu0 0.0
    %1634 = vmatpush.msra.mxu0 0.0
    %1635 = vmatpush.msra.mxu0 0.0
    %1636 = vmatpush.msra.mxu0 0.0
    %1637 = vmatpush.msra.mxu0 0.0
    %1638 = vmatpush.msra.mxu0 0.0
    %1639 = vmatpush.msra.mxu0 %v1616
    %1640 = vmatpush.msra.mxu0 %v1614
    %1641 = vmatmul.f32.gmra.mxu0 %v1620
    %v1642 = vpop.f32.mrf.mxu0
    %v1643 = vadd.f32 0.0, %v1642
    %1644 = vmatmul.f32.gmra.mxu0 %v1623
    %v1645 = vpop.f32.mrf.mxu0
    %v1646 = vadd.f32 0.0, %v1645
    %1647 = vdwg.mxu0
    %1648 = vrot.lane.b32.xlu0 %v1486, 64
    %v1649 = vpop.permute.xlu0 %1648
    %1650 = vrot.lane.b32.xlu0 %v1489, 64
    %v1651 = vpop.permute.xlu0 %1650
    %v1655 = vsel %vm287, %v1611, 0
    %v1658 = vsel %vm287, %v1612, 0
    %1660 = vmatpush.msra.mxu0 0.0
    %1661 = vmatpush.msra.mxu0 0.0
    %1662 = vmatpush.msra.mxu0 0.0
    %1663 = vmatpush.msra.mxu0 0.0
    %1664 = vmatpush.msra.mxu0 0.0
    %1665 = vmatpush.msra.mxu0 0.0
    %1666 = vmatpush.msra.mxu0 0.0
    %1667 = vmatpush.msra.mxu0 0.0
    %1668 = vmatpush.msra.mxu0 0.0
    %1669 = vmatpush.msra.mxu0 0.0
    %1670 = vmatpush.msra.mxu0 0.0
    %1671 = vmatpush.msra.mxu0 0.0
    %1672 = vmatpush.msra.mxu0 0.0
    %1673 = vmatpush.msra.mxu0 0.0
    %1674 = vmatpush.msra.mxu0 %v1651
    %1675 = vmatpush.msra.mxu0 %v1649
    %1676 = vmatmul.f32.gmra.mxu0 %v1655
    %v1677 = vpop.f32.mrf.mxu0
    %v1678 = vadd.f32 0.0, %v1677
    %1679 = vmatmul.f32.gmra.mxu0 %v1658
    %v1680 = vpop.f32.mrf.mxu0
    %v1681 = vadd.f32 0.0, %v1680
    %1682 = vdwg.mxu0
    %1683 = vst.msk [vmem:[#allocation2] sm:$0xff] %vm214, %v1643
    %1684 = vst.msk [vmem:[#allocation2 + $0x8] sm:$0xff] %vm214, %v1646
    %1685 = vst.msk [vmem:[#allocation2 + $0x10] sm:$0xff] %vm214, %v1678
    %1686 = vst.msk [vmem:[#allocation2 + $0x18] sm:$0xff] %vm214, %v1681
    %1687 = vrot.lane.b32.xlu0 %v1480, 120
    %v1688 = vpop.permute.xlu0 %1687
    %1689 = vrot.lane.b32.xlu0 %v1483, 120
    %v1690 = vpop.permute.xlu0 %1689
    %1691 = vrot.lane.b32.xlu0 %v1480, 88
    %v1692 = vpop.permute.xlu0 %1691
    %1693 = vrot.lane.b32.xlu0 %v1483, 88
    %v1694 = vpop.permute.xlu0 %1693
    %v1695 = vsel %vm214, %v1688, 0
    %v1697 = vsel %vm214, %v1690, 0
    %v1699 = vsel %vm214, %v1692, 0
    %v1701 = vsel %vm214, %v1694, 0
    %1703 = vmatpush.xpose.msra.mxu0 0.0
    %1704 = vmatpush.xpose.msra.mxu0 0.0
    %1705 = vmatpush.xpose.msra.mxu0 0.0
    %1706 = vmatpush.xpose.msra.mxu0 0.0
    %1707 = vmatpush.xpose.msra.mxu0 0.0
    %1708 = vmatpush.xpose.msra.mxu0 0.0
    %1709 = vmatpush.xpose.msra.mxu0 0.0
    %1710 = vmatpush.xpose.msra.mxu0 0.0
    %1711 = vmatpush.xpose.msra.mxu0 0.0
    %1712 = vmatpush.xpose.msra.mxu0 0.0
    %1713 = vmatpush.xpose.msra.mxu0 0.0
    %1714 = vmatpush.xpose.msra.mxu0 0.0
    %1715 = vmatpush.xpose.msra.mxu0 0.0
    %1716 = vmatpush.xpose.msra.mxu0 0.0
    %1717 = vmatpush.xpose.msra.mxu0 %v1701
    %1718 = vmatpush.xpose.msra.mxu0 %v1699
    %1719 = vmatmul.f32.gmra.mxu0 %v1695
    %v1720 = vpop.f32.mrf.mxu0
    %v1721 = vadd.f32 0.0, %v1720
    %1722 = vmatmul.f32.gmra.mxu0 %v1697
    %v1723 = vpop.f32.mrf.mxu0
    %v1724 = vadd.f32 0.0, %v1723
    %1725 = vdwg.mxu0
    %1726 = vrot.lane.b32.xlu0 %v1486, 120
    %v1727 = vpop.permute.xlu0 %1726
    %1728 = vrot.lane.b32.xlu0 %v1489, 120
    %v1729 = vpop.permute.xlu0 %1728
    %1730 = vrot.lane.b32.xlu0 %v1486, 88
    %v1731 = vpop.permute.xlu0 %1730
    %1732 = vrot.lane.b32.xlu0 %v1489, 88
    %v1733 = vpop.permute.xlu0 %1732
    %v1734 = vsel %vm214, %v1727, 0
    %v1736 = vsel %vm214, %v1729, 0
    %v1738 = vsel %vm214, %v1731, 0
    %v1740 = vsel %vm214, %v1733, 0
    %1742 = vmatpush.xpose.msra.mxu0 0.0
    %1743 = vmatpush.xpose.msra.mxu0 0.0
    %1744 = vmatpush.xpose.msra.mxu0 0.0
    %1745 = vmatpush.xpose.msra.mxu0 0.0
    %1746 = vmatpush.xpose.msra.mxu0 0.0
    %1747 = vmatpush.xpose.msra.mxu0 0.0
    %1748 = vmatpush.xpose.msra.mxu0 0.0
    %1749 = vmatpush.xpose.msra.mxu0 0.0
    %1750 = vmatpush.xpose.msra.mxu0 0.0
    %1751 = vmatpush.xpose.msra.mxu0 0.0
    %1752 = vmatpush.xpose.msra.mxu0 0.0
    %1753 = vmatpush.xpose.msra.mxu0 0.0
    %1754 = vmatpush.xpose.msra.mxu0 0.0
    %1755 = vmatpush.xpose.msra.mxu0 0.0
    %1756 = vmatpush.xpose.msra.mxu0 %v1740
    %1757 = vmatpush.xpose.msra.mxu0 %v1738
    %1758 = vmatmul.f32.gmra.mxu0 %v1734
    %v1759 = vpop.f32.mrf.mxu0
    %v1760 = vadd.f32 0.0, %v1759
    %1761 = vmatmul.f32.gmra.mxu0 %v1736
    %v1762 = vpop.f32.mrf.mxu0
    %v1763 = vadd.f32 0.0, %v1762
    %1764 = vdwg.mxu0
    %v1765 = vmul.f32 %v1721, 0.35355338
    %v1766 = vmul.f32 %v1724, 0.35355338
    %v1767 = vmul.f32 %v1760, 0.35355338
    %v1768 = vmul.f32 %v1763, 0.35355338
    %v1769 = vsel %vm287, %v1765, -inf
    %1770 = vmax.xlane.f32.xlu0 %v1769
    %v1771 = vpop.xlane.xlu0 %1770
    %v1772 = vsel %vm287, %v1766, -inf
    %1773 = vmax.xlane.f32.xlu0 %v1772
    %v1774 = vpop.xlane.xlu0 %1773
    %v1775 = vsel %vm287, %v1767, -inf
    %1776 = vmax.xlane.f32.xlu0 %v1775
    %v1777 = vpop.xlane.xlu0 %1776
    %v1778 = vsel %vm287, %v1768, -inf
    %1779 = vmax.xlane.f32.xlu0 %v1778
    %v1780 = vpop.xlane.xlu0 %1779
    %v1781 = vsub.f32 %v1765, %v1771
    %v1782 = vsub.f32 %v1766, %v1774
    %v1783 = vsub.f32 %v1767, %v1777
    %v1784 = vsub.f32 %v1768, %v1780
    %v1785 = vmul.f32 %v1781, 1.442695
    %v1786 = vpow.pop %v1785
    %v1787 = vmul.f32 %v1782, 1.442695
    %v1788 = vpow.pop %v1787
    %v1789 = vmul.f32 %v1783, 1.442695
    %v1790 = vpow.pop %v1789
    %v1791 = vmul.f32 %v1784, 1.442695
    %v1792 = vpow.pop %v1791
    %v1793 = vsel %vm287, %v1786, 0.0
    %1794 = vadd.xlane.f32.xlu0 %v1793
    %v1795 = vpop.xlane.xlu0 %1794
    %v1796 = vsel %vm287, %v1788, 0.0
    %1797 = vadd.xlane.f32.xlu0 %v1796
    %v1798 = vpop.xlane.xlu0 %1797
    %v1799 = vsel %vm287, %v1790, 0.0
    %1800 = vadd.xlane.f32.xlu0 %v1799
    %v1801 = vpop.xlane.xlu0 %1800
    %v1802 = vsel %vm287, %v1792, 0.0
    %1803 = vadd.xlane.f32.xlu0 %v1802
    %v1804 = vpop.xlane.xlu0 %1803
    %v1805 = vrcp.pop %v1795
    %v1806 = vrcp.pop %v1798
    %v1807 = vrcp.pop %v1801
    %v1808 = vrcp.pop %v1804
    %v1809 = vmul.f32 %v1786, %v1805
    %v1810 = vmul.f32 %v1788, %v1806
    %v1811 = vmul.f32 %v1790, %v1807
    %v1812 = vmul.f32 %v1792, %v1808
    %1813 = vrot.lane.b32.xlu0 %v1480, 56
    %v1814 = vpop.permute.xlu0 %1813
    %1815 = vrot.lane.b32.xlu0 %v1483, 56
    %v1816 = vpop.permute.xlu0 %1815
    %v1820 = vsel %vm287, %v1809, 0
    %v1823 = vsel %vm287, %v1810, 0
    %1825 = vmatpush.msra.mxu0 0.0
    %1826 = vmatpush.msra.mxu0 0.0
    %1827 = vmatpush.msra.mxu0 0.0
    %1828 = vmatpush.msra.mxu0 0.0
    %1829 = vmatpush.msra.mxu0 0.0
    %1830 = vmatpush.msra.mxu0 0.0
    %1831 = vmatpush.msra.mxu0 0.0
    %1832 = vmatpush.msra.mxu0 0.0
    %1833 = vmatpush.msra.mxu0 0.0
    %1834 = vmatpush.msra.mxu0 0.0
    %1835 = vmatpush.msra.mxu0 0.0
    %1836 = vmatpush.msra.mxu0 0.0
    %1837 = vmatpush.msra.mxu0 0.0
    %1838 = vmatpush.msra.mxu0 0.0
    %1839 = vmatpush.msra.mxu0 %v1816
    %1840 = vmatpush.msra.mxu0 %v1814
    %1841 = vmatmul.f32.gmra.mxu0 %v1820
    %v1842 = vpop.f32.mrf.mxu0
    %v1843 = vadd.f32 0.0, %v1842
    %1844 = vmatmul.f32.gmra.mxu0 %v1823
    %v1845 = vpop.f32.mrf.mxu0
    %v1846 = vadd.f32 0.0, %v1845
    %1847 = vdwg.mxu0
    %1848 = vrot.lane.b32.xlu0 %v1486, 56
    %v1849 = vpop.permute.xlu0 %1848
    %1850 = vrot.lane.b32.xlu0 %v1489, 56
    %v1851 = vpop.permute.xlu0 %1850
    %v1855 = vsel %vm287, %v1811, 0
    %v1858 = vsel %vm287, %v1812, 0
    %1860 = vmatpush.msra.mxu0 0.0
    %1861 = vmatpush.msra.mxu0 0.0
    %1862 = vmatpush.msra.mxu0 0.0
    %1863 = vmatpush.msra.mxu0 0.0
    %1864 = vmatpush.msra.mxu0 0.0
    %1865 = vmatpush.msra.mxu0 0.0
    %1866 = vmatpush.msra.mxu0 0.0
    %1867 = vmatpush.msra.mxu0 0.0
    %1868 = vmatpush.msra.mxu0 0.0
    %1869 = vmatpush.msra.mxu0 0.0
    %1870 = vmatpush.msra.mxu0 0.0
    %1871 = vmatpush.msra.mxu0 0.0
    %1872 = vmatpush.msra.mxu0 0.0
    %1873 = vmatpush.msra.mxu0 0.0
    %1874 = vmatpush.msra.mxu0 %v1851
    %1875 = vmatpush.msra.mxu0 %v1849
    %1876 = vmatmul.f32.gmra.mxu0 %v1855
    %v1877 = vpop.f32.mrf.mxu0
    %v1878 = vadd.f32 0.0, %v1877
    %1879 = vmatmul.f32.gmra.mxu0 %v1858
    %v1880 = vpop.f32.mrf.mxu0
    %v1881 = vadd.f32 0.0, %v1880
    %1882 = vdwg.mxu0
    %1887 = vrot.lane.b32.xlu0 %v1843, 8
    %v1888 = vpop.permute.xlu0 %1887
    %1889 = vrot.lane.b32.xlu0 %v1846, 8
    %v1890 = vpop.permute.xlu0 %1889
    %1891 = vrot.lane.b32.xlu0 %v1878, 8
    %v1892 = vpop.permute.xlu0 %1891
    %1893 = vrot.lane.b32.xlu0 %v1881, 8
    %v1894 = vpop.permute.xlu0 %1893
    %1899 = vst.msk [vmem:[#allocation2] sm:$0xff] %vm618, %v1888
    %1900 = vst.msk [vmem:[#allocation2 + $0x8] sm:$0xff] %vm618, %v1890
    %1901 = vst.msk [vmem:[#allocation2 + $0x10] sm:$0xff] %vm618, %v1892
    %1902 = vst.msk [vmem:[#allocation2 + $0x18] sm:$0xff] %vm618, %v1894
    %1903 = vrot.lane.b32.xlu0 %v1480, 112
    %v1904 = vpop.permute.xlu0 %1903
    %1905 = vrot.lane.b32.xlu0 %v1483, 112
    %v1906 = vpop.permute.xlu0 %1905
    %1907 = vrot.lane.b32.xlu0 %v1480, 80
    %v1908 = vpop.permute.xlu0 %1907
    %1909 = vrot.lane.b32.xlu0 %v1483, 80
    %v1910 = vpop.permute.xlu0 %1909
    %v1911 = vsel %vm214, %v1904, 0
    %v1913 = vsel %vm214, %v1906, 0
    %v1915 = vsel %vm214, %v1908, 0
    %v1917 = vsel %vm214, %v1910, 0
    %1919 = vmatpush.xpose.msra.mxu0 0.0
    %1920 = vmatpush.xpose.msra.mxu0 0.0
    %1921 = vmatpush.xpose.msra.mxu0 0.0
    %1922 = vmatpush.xpose.msra.mxu0 0.0
    %1923 = vmatpush.xpose.msra.mxu0 0.0
    %1924 = vmatpush.xpose.msra.mxu0 0.0
    %1925 = vmatpush.xpose.msra.mxu0 0.0
    %1926 = vmatpush.xpose.msra.mxu0 0.0
    %1927 = vmatpush.xpose.msra.mxu0 0.0
    %1928 = vmatpush.xpose.msra.mxu0 0.0
    %1929 = vmatpush.xpose.msra.mxu0 0.0
    %1930 = vmatpush.xpose.msra.mxu0 0.0
    %1931 = vmatpush.xpose.msra.mxu0 0.0
    %1932 = vmatpush.xpose.msra.mxu0 0.0
    %1933 = vmatpush.xpose.msra.mxu0 %v1917
    %1934 = vmatpush.xpose.msra.mxu0 %v1915
    %1935 = vmatmul.f32.gmra.mxu0 %v1911
    %v1936 = vpop.f32.mrf.mxu0
    %v1937 = vadd.f32 0.0, %v1936
    %1938 = vmatmul.f32.gmra.mxu0 %v1913
    %v1939 = vpop.f32.mrf.mxu0
    %v1940 = vadd.f32 0.0, %v1939
    %1941 = vdwg.mxu0
    %1942 = vrot.lane.b32.xlu0 %v1486, 112
    %v1943 = vpop.permute.xlu0 %1942
    %1944 = vrot.lane.b32.xlu0 %v1489, 112
    %v1945 = vpop.permute.xlu0 %1944
    %1946 = vrot.lane.b32.xlu0 %v1486, 80
    %v1947 = vpop.permute.xlu0 %1946
    %1948 = vrot.lane.b32.xlu0 %v1489, 80
    %v1949 = vpop.permute.xlu0 %1948
    %v1950 = vsel %vm214, %v1943, 0
    %v1952 = vsel %vm214, %v1945, 0
    %v1954 = vsel %vm214, %v1947, 0
    %v1956 = vsel %vm214, %v1949, 0
    %1958 = vmatpush.xpose.msra.mxu0 0.0
    %1959 = vmatpush.xpose.msra.mxu0 0.0
    %1960 = vmatpush.xpose.msra.mxu0 0.0
    %1961 = vmatpush.xpose.msra.mxu0 0.0
    %1962 = vmatpush.xpose.msra.mxu0 0.0
    %1963 = vmatpush.xpose.msra.mxu0 0.0
    %1964 = vmatpush.xpose.msra.mxu0 0.0
    %1965 = vmatpush.xpose.msra.mxu0 0.0
    %1966 = vmatpush.xpose.msra.mxu0 0.0
    %1967 = vmatpush.xpose.msra.mxu0 0.0
    %1968 = vmatpush.xpose.msra.mxu0 0.0
    %1969 = vmatpush.xpose.msra.mxu0 0.0
    %1970 = vmatpush.xpose.msra.mxu0 0.0
    %1971 = vmatpush.xpose.msra.mxu0 0.0
    %1972 = vmatpush.xpose.msra.mxu0 %v1956
    %1973 = vmatpush.xpose.msra.mxu0 %v1954
    %1974 = vmatmul.f32.gmra.mxu0 %v1950
    %v1975 = vpop.f32.mrf.mxu0
    %v1976 = vadd.f32 0.0, %v1975
    %1977 = vmatmul.f32.gmra.mxu0 %v1952
    %v1978 = vpop.f32.mrf.mxu0
    %v1979 = vadd.f32 0.0, %v1978
    %1980 = vdwg.mxu0
    %v1981 = vmul.f32 %v1937, 0.35355338
    %v1982 = vmul.f32 %v1940, 0.35355338
    %v1983 = vmul.f32 %v1976, 0.35355338
    %v1984 = vmul.f32 %v1979, 0.35355338
    %v1985 = vsel %vm287, %v1981, -inf
    %1986 = vmax.xlane.f32.xlu0 %v1985
    %v1987 = vpop.xlane.xlu0 %1986
    %v1988 = vsel %vm287, %v1982, -inf
    %1989 = vmax.xlane.f32.xlu0 %v1988
    %v1990 = vpop.xlane.xlu0 %1989
    %v1991 = vsel %vm287, %v1983, -inf
    %1992 = vmax.xlane.f32.xlu0 %v1991
    %v1993 = vpop.xlane.xlu0 %1992
    %v1994 = vsel %vm287, %v1984, -inf
    %1995 = vmax.xlane.f32.xlu0 %v1994
    %v1996 = vpop.xlane.xlu0 %1995
    %v1997 = vsub.f32 %v1981, %v1987
    %v1998 = vsub.f32 %v1982, %v1990
    %v1999 = vsub.f32 %v1983, %v1993
    %v2000 = vsub.f32 %v1984, %v1996
    %v2001 = vmul.f32 %v1997, 1.442695
    %v2002 = vpow.pop %v2001
    %v2003 = vmul.f32 %v1998, 1.442695
    %v2004 = vpow.pop %v2003
    %v2005 = vmul.f32 %v1999, 1.442695
    %v2006 = vpow.pop %v2005
    %v2007 = vmul.f32 %v2000, 1.442695
    %v2008 = vpow.pop %v2007
    %v2009 = vsel %vm287, %v2002, 0.0
    %2010 = vadd.xlane.f32.xlu0 %v2009
    %v2011 = vpop.xlane.xlu0 %2010
    %v2012 = vsel %vm287, %v2004, 0.0
    %2013 = vadd.xlane.f32.xlu0 %v2012
    %v2014 = vpop.xlane.xlu0 %2013
    %v2015 = vsel %vm287, %v2006, 0.0
    %2016 = vadd.xlane.f32.xlu0 %v2015
    %v2017 = vpop.xlane.xlu0 %2016
    %v2018 = vsel %vm287, %v2008, 0.0
    %2019 = vadd.xlane.f32.xlu0 %v2018
    %v2020 = vpop.xlane.xlu0 %2019
    %v2021 = vrcp.pop %v2011
    %v2022 = vrcp.pop %v2014
    %v2023 = vrcp.pop %v2017
    %v2024 = vrcp.pop %v2020
    %v2025 = vmul.f32 %v2002, %v2021
    %v2026 = vmul.f32 %v2004, %v2022
    %v2027 = vmul.f32 %v2006, %v2023
    %v2028 = vmul.f32 %v2008, %v2024
    %2029 = vrot.lane.b32.xlu0 %v1480, 48
    %v2030 = vpop.permute.xlu0 %2029
    %2031 = vrot.lane.b32.xlu0 %v1483, 48
    %v2032 = vpop.permute.xlu0 %2031
    %v2036 = vsel %vm287, %v2025, 0
    %v2039 = vsel %vm287, %v2026, 0
    %2041 = vmatpush.msra.mxu0 0.0
    %2042 = vmatpush.msra.mxu0 0.0
    %2043 = vmatpush.msra.mxu0 0.0
    %2044 = vmatpush.msra.mxu0 0.0
    %2045 = vmatpush.msra.mxu0 0.0
    %2046 = vmatpush.msra.mxu0 0.0
    %2047 = vmatpush.msra.mxu0 0.0
    %2048 = vmatpush.msra.mxu0 0.0
    %2049 = vmatpush.msra.mxu0 0.0
    %2050 = vmatpush.msra.mxu0 0.0
    %2051 = vmatpush.msra.mxu0 0.0
    %2052 = vmatpush.msra.mxu0 0.0
    %2053 = vmatpush.msra.mxu0 0.0
    %2054 = vmatpush.msra.mxu0 0.0
    %2055 = vmatpush.msra.mxu0 %v2032
    %2056 = vmatpush.msra.mxu0 %v2030
    %2057 = vmatmul.f32.gmra.mxu0 %v2036
    %v2058 = vpop.f32.mrf.mxu0
    %v2059 = vadd.f32 0.0, %v2058
    %2060 = vmatmul.f32.gmra.mxu0 %v2039
    %v2061 = vpop.f32.mrf.mxu0
    %v2062 = vadd.f32 0.0, %v2061
    %2063 = vdwg.mxu0
    %2064 = vrot.lane.b32.xlu0 %v1486, 48
    %v2065 = vpop.permute.xlu0 %2064
    %2066 = vrot.lane.b32.xlu0 %v1489, 48
    %v2067 = vpop.permute.xlu0 %2066
    %v2071 = vsel %vm287, %v2027, 0
    %v2074 = vsel %vm287, %v2028, 0
    %2076 = vmatpush.msra.mxu0 0.0
    %2077 = vmatpush.msra.mxu0 0.0
    %2078 = vmatpush.msra.mxu0 0.0
    %2079 = vmatpush.msra.mxu0 0.0
    %2080 = vmatpush.msra.mxu0 0.0
    %2081 = vmatpush.msra.mxu0 0.0
    %2082 = vmatpush.msra.mxu0 0.0
    %2083 = vmatpush.msra.mxu0 0.0
    %2084 = vmatpush.msra.mxu0 0.0
    %2085 = vmatpush.msra.mxu0 0.0
    %2086 = vmatpush.msra.mxu0 0.0
    %2087 = vmatpush.msra.mxu0 0.0
    %2088 = vmatpush.msra.mxu0 0.0
    %2089 = vmatpush.msra.mxu0 0.0
    %2090 = vmatpush.msra.mxu0 %v2067
    %2091 = vmatpush.msra.mxu0 %v2065
    %2092 = vmatmul.f32.gmra.mxu0 %v2071
    %v2093 = vpop.f32.mrf.mxu0
    %v2094 = vadd.f32 0.0, %v2093
    %2095 = vmatmul.f32.gmra.mxu0 %v2074
    %v2096 = vpop.f32.mrf.mxu0
    %v2097 = vadd.f32 0.0, %v2096
    %2098 = vdwg.mxu0
    %2103 = vrot.lane.b32.xlu0 %v2059, 16
    %v2104 = vpop.permute.xlu0 %2103
    %2105 = vrot.lane.b32.xlu0 %v2062, 16
    %v2106 = vpop.permute.xlu0 %2105
    %2107 = vrot.lane.b32.xlu0 %v2094, 16
    %v2108 = vpop.permute.xlu0 %2107
    %2109 = vrot.lane.b32.xlu0 %v2097, 16
    %v2110 = vpop.permute.xlu0 %2109
    %2115 = vst.msk [vmem:[#allocation2] sm:$0xff] %vm835, %v2104
    %2116 = vst.msk [vmem:[#allocation2 + $0x8] sm:$0xff] %vm835, %v2106
    %2117 = vst.msk [vmem:[#allocation2 + $0x10] sm:$0xff] %vm835, %v2108
    %2118 = vst.msk [vmem:[#allocation2 + $0x18] sm:$0xff] %vm835, %v2110
    %2119 = vrot.lane.b32.xlu0 %v1480, 104
    %v2120 = vpop.permute.xlu0 %2119
    %2121 = vrot.lane.b32.xlu0 %v1483, 104
    %v2122 = vpop.permute.xlu0 %2121
    %2123 = vrot.lane.b32.xlu0 %v1480, 72
    %v2124 = vpop.permute.xlu0 %2123
    %2125 = vrot.lane.b32.xlu0 %v1483, 72
    %v2126 = vpop.permute.xlu0 %2125
    %v2127 = vsel %vm214, %v2120, 0
    %v2129 = vsel %vm214, %v2122, 0
    %v2131 = vsel %vm214, %v2124, 0
    %v2133 = vsel %vm214, %v2126, 0
    %2135 = vmatpush.xpose.msra.mxu0 0.0
    %2136 = vmatpush.xpose.msra.mxu0 0.0
    %2137 = vmatpush.xpose.msra.mxu0 0.0
    %2138 = vmatpush.xpose.msra.mxu0 0.0
    %2139 = vmatpush.xpose.msra.mxu0 0.0
    %2140 = vmatpush.xpose.msra.mxu0 0.0
    %2141 = vmatpush.xpose.msra.mxu0 0.0
    %2142 = vmatpush.xpose.msra.mxu0 0.0
    %2143 = vmatpush.xpose.msra.mxu0 0.0
    %2144 = vmatpush.xpose.msra.mxu0 0.0
    %2145 = vmatpush.xpose.msra.mxu0 0.0
    %2146 = vmatpush.xpose.msra.mxu0 0.0
    %2147 = vmatpush.xpose.msra.mxu0 0.0
    %2148 = vmatpush.xpose.msra.mxu0 0.0
    %2149 = vmatpush.xpose.msra.mxu0 %v2133
    %2150 = vmatpush.xpose.msra.mxu0 %v2131
    %2151 = vmatmul.f32.gmra.mxu0 %v2127
    %v2152 = vpop.f32.mrf.mxu0
    %v2153 = vadd.f32 0.0, %v2152
    %2154 = vmatmul.f32.gmra.mxu0 %v2129
    %v2155 = vpop.f32.mrf.mxu0
    %v2156 = vadd.f32 0.0, %v2155
    %2157 = vdwg.mxu0
    %2158 = vrot.lane.b32.xlu0 %v1486, 104
    %v2159 = vpop.permute.xlu0 %2158
    %2160 = vrot.lane.b32.xlu0 %v1489, 104
    %v2161 = vpop.permute.xlu0 %2160
    %2162 = vrot.lane.b32.xlu0 %v1486, 72
    %v2163 = vpop.permute.xlu0 %2162
    %2164 = vrot.lane.b32.xlu0 %v1489, 72
    %v2165 = vpop.permute.xlu0 %2164
    %v2166 = vsel %vm214, %v2159, 0
    %v2168 = vsel %vm214, %v2161, 0
    %v2170 = vsel %vm214, %v2163, 0
    %v2172 = vsel %vm214, %v2165, 0
    %2174 = vmatpush.xpose.msra.mxu0 0.0
    %2175 = vmatpush.xpose.msra.mxu0 0.0
    %2176 = vmatpush.xpose.msra.mxu0 0.0
    %2177 = vmatpush.xpose.msra.mxu0 0.0
    %2178 = vmatpush.xpose.msra.mxu0 0.0
    %2179 = vmatpush.xpose.msra.mxu0 0.0
    %2180 = vmatpush.xpose.msra.mxu0 0.0
    %2181 = vmatpush.xpose.msra.mxu0 0.0
    %2182 = vmatpush.xpose.msra.mxu0 0.0
    %2183 = vmatpush.xpose.msra.mxu0 0.0
    %2184 = vmatpush.xpose.msra.mxu0 0.0
    %2185 = vmatpush.xpose.msra.mxu0 0.0
    %2186 = vmatpush.xpose.msra.mxu0 0.0
    %2187 = vmatpush.xpose.msra.mxu0 0.0
    %2188 = vmatpush.xpose.msra.mxu0 %v2172
    %2189 = vmatpush.xpose.msra.mxu0 %v2170
    %2190 = vmatmul.f32.gmra.mxu0 %v2166
    %v2191 = vpop.f32.mrf.mxu0
    %v2192 = vadd.f32 0.0, %v2191
    %2193 = vmatmul.f32.gmra.mxu0 %v2168
    %v2194 = vpop.f32.mrf.mxu0
    %v2195 = vadd.f32 0.0, %v2194
    %2196 = vdwg.mxu0
    %v2197 = vmul.f32 %v2153, 0.35355338
    %v2198 = vmul.f32 %v2156, 0.35355338
    %v2199 = vmul.f32 %v2192, 0.35355338
    %v2200 = vmul.f32 %v2195, 0.35355338
    %v2201 = vsel %vm287, %v2197, -inf
    %2202 = vmax.xlane.f32.xlu0 %v2201
    %v2203 = vpop.xlane.xlu0 %2202
    %v2204 = vsel %vm287, %v2198, -inf
    %2205 = vmax.xlane.f32.xlu0 %v2204
    %v2206 = vpop.xlane.xlu0 %2205
    %v2207 = vsel %vm287, %v2199, -inf
    %2208 = vmax.xlane.f32.xlu0 %v2207
    %v2209 = vpop.xlane.xlu0 %2208
    %v2210 = vsel %vm287, %v2200, -inf
    %2211 = vmax.xlane.f32.xlu0 %v2210
    %v2212 = vpop.xlane.xlu0 %2211
    %v2213 = vsub.f32 %v2197, %v2203
    %v2214 = vsub.f32 %v2198, %v2206
    %v2215 = vsub.f32 %v2199, %v2209
    %v2216 = vsub.f32 %v2200, %v2212
    %v2217 = vmul.f32 %v2213, 1.442695
    %v2218 = vpow.pop %v2217
    %v2219 = vmul.f32 %v2214, 1.442695
    %v2220 = vpow.pop %v2219
    %v2221 = vmul.f32 %v2215, 1.442695
    %v2222 = vpow.pop %v2221
    %v2223 = vmul.f32 %v2216, 1.442695
    %v2224 = vpow.pop %v2223
    %v2225 = vsel %vm287, %v2218, 0.0
    %2226 = vadd.xlane.f32.xlu0 %v2225
    %v2227 = vpop.xlane.xlu0 %2226
    %v2228 = vsel %vm287, %v2220, 0.0
    %2229 = vadd.xlane.f32.xlu0 %v2228
    %v2230 = vpop.xlane.xlu0 %2229
    %v2231 = vsel %vm287, %v2222, 0.0
    %2232 = vadd.xlane.f32.xlu0 %v2231
    %v2233 = vpop.xlane.xlu0 %2232
    %v2234 = vsel %vm287, %v2224, 0.0
    %2235 = vadd.xlane.f32.xlu0 %v2234
    %v2236 = vpop.xlane.xlu0 %2235
    %v2237 = vrcp.pop %v2227
    %v2238 = vrcp.pop %v2230
    %v2239 = vrcp.pop %v2233
    %v2240 = vrcp.pop %v2236
    %v2241 = vmul.f32 %v2218, %v2237
    %v2242 = vmul.f32 %v2220, %v2238
    %v2243 = vmul.f32 %v2222, %v2239
    %v2244 = vmul.f32 %v2224, %v2240
    %2245 = vrot.lane.b32.xlu0 %v1480, 40
    %v2246 = vpop.permute.xlu0 %2245
    %2247 = vrot.lane.b32.xlu0 %v1483, 40
    %v2248 = vpop.permute.xlu0 %2247
    %v2252 = vsel %vm287, %v2241, 0
    %v2255 = vsel %vm287, %v2242, 0
    %2257 = vmatpush.msra.mxu0 0.0
    %2258 = vmatpush.msra.mxu0 0.0
    %2259 = vmatpush.msra.mxu0 0.0
    %2260 = vmatpush.msra.mxu0 0.0
    %2261 = vmatpush.msra.mxu0 0.0
    %2262 = vmatpush.msra.mxu0 0.0
    %2263 = vmatpush.msra.mxu0 0.0
    %2264 = vmatpush.msra.mxu0 0.0
    %2265 = vmatpush.msra.mxu0 0.0
    %2266 = vmatpush.msra.mxu0 0.0
    %2267 = vmatpush.msra.mxu0 0.0
    %2268 = vmatpush.msra.mxu0 0.0
    %2269 = vmatpush.msra.mxu0 0.0
    %2270 = vmatpush.msra.mxu0 0.0
    %2271 = vmatpush.msra.mxu0 %v2248
    %2272 = vmatpush.msra.mxu0 %v2246
    %2273 = vmatmul.f32.gmra.mxu0 %v2252
    %v2274 = vpop.f32.mrf.mxu0
    %v2275 = vadd.f32 0.0, %v2274
    %2276 = vmatmul.f32.gmra.mxu0 %v2255
    %v2277 = vpop.f32.mrf.mxu0
    %v2278 = vadd.f32 0.0, %v2277
    %2279 = vdwg.mxu0
    %2280 = vrot.lane.b32.xlu0 %v1486, 40
    %v2281 = vpop.permute.xlu0 %2280
    %2282 = vrot.lane.b32.xlu0 %v1489, 40
    %v2283 = vpop.permute.xlu0 %2282
    %v2287 = vsel %vm287, %v2243, 0
    %v2290 = vsel %vm287, %v2244, 0
    %2292 = vmatpush.msra.mxu0 0.0
    %2293 = vmatpush.msra.mxu0 0.0
    %2294 = vmatpush.msra.mxu0 0.0
    %2295 = vmatpush.msra.mxu0 0.0
    %2296 = vmatpush.msra.mxu0 0.0
    %2297 = vmatpush.msra.mxu0 0.0
    %2298 = vmatpush.msra.mxu0 0.0
    %2299 = vmatpush.msra.mxu0 0.0
    %2300 = vmatpush.msra.mxu0 0.0
    %2301 = vmatpush.msra.mxu0 0.0
    %2302 = vmatpush.msra.mxu0 0.0
    %2303 = vmatpush.msra.mxu0 0.0
    %2304 = vmatpush.msra.mxu0 0.0
    %2305 = vmatpush.msra.mxu0 0.0
    %2306 = vmatpush.msra.mxu0 %v2283
    %2307 = vmatpush.msra.mxu0 %v2281
    %2308 = vmatmul.f32.gmra.mxu0 %v2287
    %v2309 = vpop.f32.mrf.mxu0
    %v2310 = vadd.f32 0.0, %v2309
    %2311 = vmatmul.f32.gmra.mxu0 %v2290
    %v2312 = vpop.f32.mrf.mxu0
    %v2313 = vadd.f32 0.0, %v2312
    %2314 = vdwg.mxu0
    %2319 = vrot.lane.b32.xlu0 %v2275, 24
    %v2320 = vpop.permute.xlu0 %2319
    %2321 = vrot.lane.b32.xlu0 %v2278, 24
    %v2322 = vpop.permute.xlu0 %2321
    %2323 = vrot.lane.b32.xlu0 %v2310, 24
    %v2324 = vpop.permute.xlu0 %2323
    %2325 = vrot.lane.b32.xlu0 %v2313, 24
    %v2326 = vpop.permute.xlu0 %2325
    %2331 = vst.msk [vmem:[#allocation2] sm:$0xff] %vm1052, %v2320
    %2332 = vst.msk [vmem:[#allocation2 + $0x8] sm:$0xff] %vm1052, %v2322
    %2333 = vst.msk [vmem:[#allocation2 + $0x10] sm:$0xff] %vm1052, %v2324
    %2334 = vst.msk [vmem:[#allocation2 + $0x18] sm:$0xff] %vm1052, %v2326
    %v2335 = vld [vmem:[#allocation2] sm:$0xff]
    %v2336 = vld [vmem:[#allocation2 + $0x8] sm:$0xff]
    %v2337 = vld [vmem:[#allocation2 + $0x10] sm:$0xff]
    %v2338 = vld [vmem:[#allocation2 + $0x18] sm:$0xff]
    %s2339 = scalar_lea.vmem %s4, 32
    %v2340 = vld [vmem:[%s2339] sm:$0xff]
    %v2341 = vld [vmem:[%s2339 + $0x8] sm:$0xff]
    %v2342 = vld [vmem:[%s2339 + $0x10] sm:$0xff]
    %v2343 = vld [vmem:[%s2339 + $0x18] sm:$0xff]
    %s2344 = scalar_lea.vmem [#allocation8], 1
    %v2345 = vld [vmem:[%s2344] sm:$0x1]
    %v2347 = vperm.slane %v2345, 0
    %v2350 = vsel %vm166, %v2335, 0
    %v2353 = vsel %vm166, %v2336, 0
    %v2356 = vsel %vm166, %v2337, 0
    %v2359 = vsel %vm166, %v2338, 0
    %2361 = vmatpush.msra.mxu0 0.0
    %2362 = vmatpush.msra.mxu0 0.0
    %2363 = vmatpush.msra.mxu0 0.0
    %2364 = vmatpush.msra.mxu0 0.0
    %2365 = vmatpush.msra.mxu0 0.0
    %2366 = vmatpush.msra.mxu0 0.0
    %2367 = vmatpush.msra.mxu0 0.0
    %2368 = vmatpush.msra.mxu0 0.0
    %2369 = vmatpush.msra.mxu0 0.0
    %2370 = vmatpush.msra.mxu0 0.0
    %2371 = vmatpush.msra.mxu0 0.0
    %2372 = vmatpush.msra.mxu0 0.0
    %2373 = vmatpush.msra.mxu0 %v2343
    %2374 = vmatpush.msra.mxu0 %v2342
    %2375 = vmatpush.msra.mxu0 %v2341
    %2376 = vmatpush.msra.mxu0 %v2340
    %2377 = vmatmul.f32.gmra.mxu0 %v2350
    %v2378 = vpop.f32.mrf.mxu0
    %v2379 = vadd.f32 %v2347, %v2378
    %2380 = vmatmul.f32.gmra.mxu0 %v2353
    %v2381 = vpop.f32.mrf.mxu0
    %v2382 = vadd.f32 %v2347, %v2381
    %2383 = vmatmul.f32.gmra.mxu0 %v2356
    %v2384 = vpop.f32.mrf.mxu0
    %v2385 = vadd.f32 %v2347, %v2384
    %2386 = vmatmul.f32.gmra.mxu0 %v2359
    %v2387 = vpop.f32.mrf.mxu0
    %v2388 = vadd.f32 %v2347, %v2387
    %2389 = vdwg.mxu0
    %v2390 = vadd.f32 %v1436, %v2379
    %v2391 = vadd.f32 %v1437, %v2382
    %v2392 = vadd.f32 %v1438, %v2385
    %v2393 = vadd.f32 %v1439, %v2388
    %s2394 = scalar_lea.vmem %s6, 1
    %v2395 = vld [vmem:[%s2394] sm:$0x1]
    %s2396 = scalar_lea.vmem [#allocation9], 1
    %v2397 = vld [vmem:[%s2396] sm:$0x1]
    %v2398 = vsel %vm166, %v2390, 0.0
    %2399 = vadd.xlane.f32.xlu0 %v2398
    %v2400 = vpop.xlane.xlu0 %2399
    %v2401 = vsel %vm166, %v2391, 0.0
    %2402 = vadd.xlane.f32.xlu0 %v2401
    %v2403 = vpop.xlane.xlu0 %2402
    %v2404 = vsel %vm166, %v2392, 0.0
    %2405 = vadd.xlane.f32.xlu0 %v2404
    %v2406 = vpop.xlane.xlu0 %2405
    %v2407 = vsel %vm166, %v2393, 0.0
    %2408 = vadd.xlane.f32.xlu0 %v2407
    %v2409 = vpop.xlane.xlu0 %2408
    %v2410 = vmul.f32 %v2400, %v1134
    %v2411 = vmul.f32 %v2403, %v1134
    %v2412 = vmul.f32 %v2406, %v1134
    %v2413 = vmul.f32 %v2409, %v1134
    %v2414 = vsub.f32 %v2390, %v2410
    %v2415 = vsub.f32 %v2391, %v2411
    %v2416 = vsub.f32 %v2392, %v2412
    %v2417 = vsub.f32 %v2393, %v2413
    %v2418 = vmul.f32 %v2414, %v2414
    %v2419 = vmul.f32 %v2415, %v2415
    %v2420 = vmul.f32 %v2416, %v2416
    %v2421 = vmul.f32 %v2417, %v2417
    %v2422 = vsel %vm166, %v2418, 0.0
    %2423 = vadd.xlane.f32.xlu0 %v2422
    %v2424 = vpop.xlane.xlu0 %2423
    %v2425 = vsel %vm166, %v2419, 0.0
    %2426 = vadd.xlane.f32.xlu0 %v2425
    %v2427 = vpop.xlane.xlu0 %2426
    %v2428 = vsel %vm166, %v2420, 0.0
    %2429 = vadd.xlane.f32.xlu0 %v2428
    %v2430 = vpop.xlane.xlu0 %2429
    %v2431 = vsel %vm166, %v2421, 0.0
    %2432 = vadd.xlane.f32.xlu0 %v2431
    %v2433 = vpop.xlane.xlu0 %2432
    %v2434 = vmul.f32 %v2424, %v1134
    %v2435 = vmul.f32 %v2427, %v1134
    %v2436 = vmul.f32 %v2430, %v1134
    %v2437 = vmul.f32 %v2433, %v1134
    %v2438 = vadd.f32 %v2434, 1e-05
    %v2439 = vadd.f32 %v2435, 1e-05
    %v2440 = vadd.f32 %v2436, 1e-05
    %v2441 = vadd.f32 %v2437, 1e-05
    %v2442 = vrsqrt.pop %v2438
    %v2443 = vmul.f32 %v2442, %v2438
    %v2444 = vmul.f32 %v2443, %v2442
    %v2445 = vmul.f32 0.5, %v2444
    %v2446 = vsub.f32 1.5, %v2445
    %v2447 = vmul.f32 %v2442, %v2446
    %vm2448 = vweird.f32 %v2438
    %vm2449 = vweird.f32 %v2442
    %vm2450 = vmor %vm2448, %vm2449
    %v2451 = vsel %vm2450, %v2442, %v2447
    %v2452 = vrsqrt.pop %v2439
    %v2453 = vmul.f32 %v2452, %v2439
    %v2454 = vmul.f32 %v2453, %v2452
    %v2455 = vmul.f32 0.5, %v2454
    %v2456 = vsub.f32 1.5, %v2455
    %v2457 = vmul.f32 %v2452, %v2456
    %vm2458 = vweird.f32 %v2439
    %vm2459 = vweird.f32 %v2452
    %vm2460 = vmor %vm2458, %vm2459
    %v2461 = vsel %vm2460, %v2452, %v2457
    %v2462 = vrsqrt.pop %v2440
    %v2463 = vmul.f32 %v2462, %v2440
    %v2464 = vmul.f32 %v2463, %v2462
    %v2465 = vmul.f32 0.5, %v2464
    %v2466 = vsub.f32 1.5, %v2465
    %v2467 = vmul.f32 %v2462, %v2466
    %vm2468 = vweird.f32 %v2440
    %vm2469 = vweird.f32 %v2462
    %vm2470 = vmor %vm2468, %vm2469
    %v2471 = vsel %vm2470, %v2462, %v2467
    %v2472 = vrsqrt.pop %v2441
    %v2473 = vmul.f32 %v2472, %v2441
    %v2474 = vmul.f32 %v2473, %v2472
    %v2475 = vmul.f32 0.5, %v2474
    %v2476 = vsub.f32 1.5, %v2475
    %v2477 = vmul.f32 %v2472, %v2476
    %vm2478 = vweird.f32 %v2441
    %vm2479 = vweird.f32 %v2472
    %vm2480 = vmor %vm2478, %vm2479
    %v2481 = vsel %vm2480, %v2472, %v2477
    %v2482 = vmul.f32 %v2414, %v2451
    %v2483 = vmul.f32 %v2415, %v2461
    %v2484 = vmul.f32 %v2416, %v2471
    %v2485 = vmul.f32 %v2417, %v2481
    %v2487 = vperm.slane %v2395, 0
    %v2489 = vmul.f32 %v2482, %v2487
    %v2490 = vmul.f32 %v2483, %v2487
    %v2491 = vmul.f32 %v2484, %v2487
    %v2492 = vmul.f32 %v2485, %v2487
    %v2494 = vperm.slane %v2397, 0
    %v2496 = vadd.f32 %v2489, %v2494
    %v2497 = vadd.f32 %v2490, %v2494
    %v2498 = vadd.f32 %v2491, %v2494
    %v2499 = vadd.f32 %v2492, %v2494
    %s2500 = scalar_lea.vmem %s8, 32
    %v2501 = vld [vmem:[%s2500] sm:$0xff]
    %v2502 = vld [vmem:[%s2500 + $0x8] sm:$0xff]
    %v2503 = vld [vmem:[%s2500 + $0x10] sm:$0xff]
    %v2504 = vld [vmem:[%s2500 + $0x18] sm:$0xff]
    %s2505 = scalar_lea.vmem %s9, 1
    %v2506 = vld [vmem:[%s2505] sm:$0x1]
    %v2508 = vperm.slane %v2506, 0
    %v2511 = vsel %vm166, %v2496, 0
    %v2514 = vsel %vm166, %v2497, 0
    %v2517 = vsel %vm166, %v2498, 0
    %v2520 = vsel %vm166, %v2499, 0
    %2522 = vmatpush.msra.mxu0 0.0
    %2523 = vmatpush.msra.mxu0 0.0
    %2524 = vmatpush.msra.mxu0 0.0
    %2525 = vmatpush.msra.mxu0 0.0
    %2526 = vmatpush.msra.mxu0 0.0
    %2527 = vmatpush.msra.mxu0 0.0
    %2528 = vmatpush.msra.mxu0 0.0
    %2529 = vmatpush.msra.mxu0 0.0
    %2530 = vmatpush.msra.mxu0 0.0
    %2531 = vmatpush.msra.mxu0 0.0
    %2532 = vmatpush.msra.mxu0 0.0
    %2533 = vmatpush.msra.mxu0 0.0
    %2534 = vmatpush.msra.mxu0 %v2504
    %2535 = vmatpush.msra.mxu0 %v2503
    %2536 = vmatpush.msra.mxu0 %v2502
    %2537 = vmatpush.msra.mxu0 %v2501
    %2538 = vmatmul.f32.gmra.mxu0 %v2511
    %v2539 = vpop.f32.mrf.mxu0
    %v2540 = vadd.f32 %v2508, %v2539
    %2541 = vmatmul.f32.gmra.mxu0 %v2514
    %v2542 = vpop.f32.mrf.mxu0
    %v2543 = vadd.f32 %v2508, %v2542
    %2544 = vmatmul.f32.gmra.mxu0 %v2517
    %v2545 = vpop.f32.mrf.mxu0
    %v2546 = vadd.f32 %v2508, %v2545
    %2547 = vmatmul.f32.gmra.mxu0 %v2520
    %v2548 = vpop.f32.mrf.mxu0
    %v2549 = vadd.f32 %v2508, %v2548
    %2550 = vdwg.mxu0
    %v2551 = vmax.f32 %v2540, 0.0
    %v2552 = vmax.f32 %v2543, 0.0
    %v2553 = vmax.f32 %v2546, 0.0
    %v2554 = vmax.f32 %v2549, 0.0
    %s2555 = scalar_lea.vmem %s10, 64
    %v2556 = vld [vmem:[%s2555] sm:$0xff]
    %v2557 = vld [vmem:[%s2555 + $0x8] sm:$0xff]
    %v2558 = vld [vmem:[%s2555 + $0x10] sm:$0xff]
    %v2559 = vld [vmem:[%s2555 + $0x18] sm:$0xff]
    %v2560 = vld [vmem:[%s2555 + $0x20] sm:$0xff]
    %v2561 = vld [vmem:[%s2555 + $0x28] sm:$0xff]
    %v2562 = vld [vmem:[%s2555 + $0x30] sm:$0xff]
    %v2563 = vld [vmem:[%s2555 + $0x38] sm:$0xff]
    %s2564 = scalar_lea.vmem %s11, 1
    %v2565 = vld [vmem:[%s2564] sm:$0x1]
    %v2567 = vperm.slane %v2565, 0
    %v2570 = vsel %vm1290, %v2551, 0
    %v2573 = vsel %vm1290, %v2552, 0
    %v2576 = vsel %vm1290, %v2553, 0
    %v2579 = vsel %vm1290, %v2554, 0
    %2581 = vmatpush.msra.mxu0 0.0
    %2582 = vmatpush.msra.mxu0 0.0
    %2583 = vmatpush.msra.mxu0 0.0
    %2584 = vmatpush.msra.mxu0 0.0
    %2585 = vmatpush.msra.mxu0 0.0
    %2586 = vmatpush.msra.mxu0 0.0
    %2587 = vmatpush.msra.mxu0 0.0
    %2588 = vmatpush.msra.mxu0 0.0
    %2589 = vmatpush.msra.mxu0 %v2563
    %2590 = vmatpush.msra.mxu0 %v2562
    %2591 = vmatpush.msra.mxu0 %v2561
    %2592 = vmatpush.msra.mxu0 %v2560
    %2593 = vmatpush.msra.mxu0 %v2559
    %2594 = vmatpush.msra.mxu0 %v2558
    %2595 = vmatpush.msra.mxu0 %v2557
    %2596 = vmatpush.msra.mxu0 %v2556
    %2597 = vmatmul.f32.gmra.mxu0 %v2570
    %v2598 = vpop.f32.mrf.mxu0
    %v2599 = vadd.f32 %v2567, %v2598
    %2600 = vmatmul.f32.gmra.mxu0 %v2573
    %v2601 = vpop.f32.mrf.mxu0
    %v2602 = vadd.f32 %v2567, %v2601
    %2603 = vmatmul.f32.gmra.mxu0 %v2576
    %v2604 = vpop.f32.mrf.mxu0
    %v2605 = vadd.f32 %v2567, %v2604
    %2606 = vmatmul.f32.gmra.mxu0 %v2579
    %v2607 = vpop.f32.mrf.mxu0
    %v2608 = vadd.f32 %v2567, %v2607
    %2609 = vdwg.mxu0
    %v2610 = vadd.f32 %v2496, %v2599
    %v2611 = vadd.f32 %v2497, %v2602
    %v2612 = vadd.f32 %v2498, %v2605
    %v2613 = vadd.f32 %v2499, %v2608
    %s2614 = scalar_lea.vmem %s12, 1
    %v2615 = vld [vmem:[%s2614] sm:$0x1]
    %s2616 = scalar_lea.vmem [#allocation11], 1
    %v2617 = vld [vmem:[%s2616] sm:$0x1]
    %v2618 = vsel %vm166, %v2610, 0.0
    %2619 = vadd.xlane.f32.xlu0 %v2618
    %v2620 = vpop.xlane.xlu0 %2619
    %v2621 = vsel %vm166, %v2611, 0.0
    %2622 = vadd.xlane.f32.xlu0 %v2621
    %v2623 = vpop.xlane.xlu0 %2622
    %v2624 = vsel %vm166, %v2612, 0.0
    %2625 = vadd.xlane.f32.xlu0 %v2624
    %v2626 = vpop.xlane.xlu0 %2625
    %v2627 = vsel %vm166, %v2613, 0.0
    %2628 = vadd.xlane.f32.xlu0 %v2627
    %v2629 = vpop.xlane.xlu0 %2628
    %v2630 = vmul.f32 %v2620, %v1134
    %v2631 = vmul.f32 %v2623, %v1134
    %v2632 = vmul.f32 %v2626, %v1134
    %v2633 = vmul.f32 %v2629, %v1134
    %v2634 = vsub.f32 %v2610, %v2630
    %v2635 = vsub.f32 %v2611, %v2631
    %v2636 = vsub.f32 %v2612, %v2632
    %v2637 = vsub.f32 %v2613, %v2633
    %v2638 = vmul.f32 %v2634, %v2634
    %v2639 = vmul.f32 %v2635, %v2635
    %v2640 = vmul.f32 %v2636, %v2636
    %v2641 = vmul.f32 %v2637, %v2637
    %v2642 = vsel %vm166, %v2638, 0.0
    %2643 = vadd.xlane.f32.xlu0 %v2642
    %v2644 = vpop.xlane.xlu0 %2643
    %v2645 = vsel %vm166, %v2639, 0.0
    %2646 = vadd.xlane.f32.xlu0 %v2645
    %v2647 = vpop.xlane.xlu0 %2646
    %v2648 = vsel %vm166, %v2640, 0.0
    %2649 = vadd.xlane.f32.xlu0 %v2648
    %v2650 = vpop.xlane.xlu0 %2649
    %v2651 = vsel %vm166, %v2641, 0.0
    %2652 = vadd.xlane.f32.xlu0 %v2651
    %v2653 = vpop.xlane.xlu0 %2652
    %v2654 = vmul.f32 %v2644, %v1134
    %v2655 = vmul.f32 %v2647, %v1134
    %v2656 = vmul.f32 %v2650, %v1134
    %v2657 = vmul.f32 %v2653, %v1134
    %v2658 = vadd.f32 %v2654, 1e-05
    %v2659 = vadd.f32 %v2655, 1e-05
    %v2660 = vadd.f32 %v2656, 1e-05
    %v2661 = vadd.f32 %v2657, 1e-05
    %v2662 = vrsqrt.pop %v2658
    %v2663 = vmul.f32 %v2662, %v2658
    %v2664 = vmul.f32 %v2663, %v2662
    %v2665 = vmul.f32 0.5, %v2664
    %v2666 = vsub.f32 1.5, %v2665
    %v2667 = vmul.f32 %v2662, %v2666
    %vm2668 = vweird.f32 %v2658
    %vm2669 = vweird.f32 %v2662
    %vm2670 = vmor %vm2668, %vm2669
    %v2671 = vsel %vm2670, %v2662, %v2667
    %v2672 = vrsqrt.pop %v2659
    %v2673 = vmul.f32 %v2672, %v2659
    %v2674 = vmul.f32 %v2673, %v2672
    %v2675 = vmul.f32 0.5, %v2674
    %v2676 = vsub.f32 1.5, %v2675
    %v2677 = vmul.f32 %v2672, %v2676
    %vm2678 = vweird.f32 %v2659
    %vm2679 = vweird.f32 %v2672
    %vm2680 = vmor %vm2678, %vm2679
    %v2681 = vsel %vm2680, %v2672, %v2677
    %v2682 = vrsqrt.pop %v2660
    %v2683 = vmul.f32 %v2682, %v2660
    %v2684 = vmul.f32 %v2683, %v2682
    %v2685 = vmul.f32 0.5, %v2684
    %v2686 = vsub.f32 1.5, %v2685
    %v2687 = vmul.f32 %v2682, %v2686
    %vm2688 = vweird.f32 %v2660
    %vm2689 = vweird.f32 %v2682
    %vm2690 = vmor %vm2688, %vm2689
    %v2691 = vsel %vm2690, %v2682, %v2687
    %v2692 = vrsqrt.pop %v2661
    %v2693 = vmul.f32 %v2692, %v2661
    %v2694 = vmul.f32 %v2693, %v2692
    %v2695 = vmul.f32 0.5, %v2694
    %v2696 = vsub.f32 1.5, %v2695
    %v2697 = vmul.f32 %v2692, %v2696
    %vm2698 = vweird.f32 %v2661
    %vm2699 = vweird.f32 %v2692
    %vm2700 = vmor %vm2698, %vm2699
    %v2701 = vsel %vm2700, %v2692, %v2697
    %v2702 = vmul.f32 %v2634, %v2671
    %v2703 = vmul.f32 %v2635, %v2681
    %v2704 = vmul.f32 %v2636, %v2691
    %v2705 = vmul.f32 %v2637, %v2701
    %v2707 = vperm.slane %v2615, 0
    %v2709 = vmul.f32 %v2702, %v2707
    %v2710 = vmul.f32 %v2703, %v2707
    %v2711 = vmul.f32 %v2704, %v2707
    %v2712 = vmul.f32 %v2705, %v2707
    %v2714 = vperm.slane %v2617, 0
    %v2716 = vadd.f32 %v2709, %v2714
    %v2717 = vadd.f32 %v2710, %v2714
    %v2718 = vadd.f32 %v2711, %v2714
    %v2719 = vadd.f32 %v2712, %v2714
    %2720 = vst.msk [vmem:[#allocation2] sm:$0xff] %vm166, %v2716
    %2721 = vst.msk [vmem:[#allocation2 + $0x8] sm:$0xff] %vm166, %v2717
    %2722 = vst.msk [vmem:[#allocation2 + $0x10] sm:$0xff] %vm166, %v2718
    %2723 = vst.msk [vmem:[#allocation2 + $0x18] sm:$0xff] %vm166, %v2719
    %v2724 = vld [vmem:[%s15] sm:$0x1]
    %v2726 = vperm.slane %v2724, 0
    %v2728 = vadd.f32 %v2726, 0.0
    %v2729 = vld [vmem:[#allocation2] sm:$0x1]
    %v2730 = vld [vmem:[#allocation2 + $0x10] sm:$0x1]
    %v2731 = vld [vmem:[#allocation12] sm:$0xff]
    %v2732 = vld [vmem:[#allocation12 + $0x8] sm:$0xff]
    %v2733 = vld [vmem:[#allocation12 + $0x10] sm:$0xff]
    %v2734 = vld [vmem:[#allocation12 + $0x18] sm:$0xff]
    %v2737 = vrot.slane %v2730, 7
    %vm2738 = vcmask 1041409
    %v2739 = vsel %vm2738, %v2737, %v2729
    %v2740 = vsel %vm166, %v2739, 0
    %2742 = vmatpush.msra.mxu0 0.0
    %2743 = vmatpush.msra.mxu0 0.0
    %2744 = vmatpush.msra.mxu0 0.0
    %2745 = vmatpush.msra.mxu0 0.0
    %2746 = vmatpush.msra.mxu0 0.0
    %2747 = vmatpush.msra.mxu0 0.0
    %2748 = vmatpush.msra.mxu0 0.0
    %2749 = vmatpush.msra.mxu0 0.0
    %2750 = vmatpush.msra.mxu0 0.0
    %2751 = vmatpush.msra.mxu0 0.0
    %2752 = vmatpush.msra.mxu0 0.0
    %2753 = vmatpush.msra.mxu0 0.0
    %2754 = vmatpush.msra.mxu0 %v2734
    %2755 = vmatpush.msra.mxu0 %v2733
    %2756 = vmatpush.msra.mxu0 %v2732
    %2757 = vmatpush.msra.mxu0 %v2731
    %2758 = vmatmul.f32.gmra.mxu0 %v2740
    %v2759 = vpop.f32.mrf.mxu0
    %v2760 = vadd.f32 0.0, %v2759
    %2761 = vdwg.mxu0
    %v2762 = vadd.f32 %v2728, %v2760
    %v2763 = vld [vmem:[#allocation2 + $0x1] sm:$0x1]
    %v2764 = vld [vmem:[#allocation2 + $0x11] sm:$0x1]
    %s2765 = scalar_lea.vmem [#allocation12], 32
    %v2766 = vld [vmem:[%s2765] sm:$0xff]
    %v2767 = vld [vmem:[%s2765 + $0x8] sm:$0xff]
    %v2768 = vld [vmem:[%s2765 + $0x10] sm:$0xff]
    %v2769 = vld [vmem:[%s2765 + $0x18] sm:$0xff]
    %v2772 = vrot.slane %v2764, 7
    %v2773 = vsel %vm2738, %v2772, %v2763
    %v2774 = vsel %vm166, %v2773, 0
    %2776 = vmatpush.msra.mxu0 0.0
    %2777 = vmatpush.msra.mxu0 0.0
    %2778 = vmatpush.msra.mxu0 0.0
    %2779 = vmatpush.msra.mxu0 0.0
    %2780 = vmatpush.msra.mxu0 0.0
    %2781 = vmatpush.msra.mxu0 0.0
    %2782 = vmatpush.msra.mxu0 0.0
    %2783 = vmatpush.msra.mxu0 0.0
    %2784 = vmatpush.msra.mxu0 0.0
    %2785 = vmatpush.msra.mxu0 0.0
    %2786 = vmatpush.msra.mxu0 0.0
    %2787 = vmatpush.msra.mxu0 0.0
    %2788 = vmatpush.msra.mxu0 %v2769
    %2789 = vmatpush.msra.mxu0 %v2768
    %2790 = vmatpush.msra.mxu0 %v2767
    %2791 = vmatpush.msra.mxu0 %v2766
    %2792 = vmatmul.f32.gmra.mxu0 %v2774
    %v2793 = vpop.f32.mrf.mxu0
    %v2794 = vadd.f32 0.0, %v2793
    %2795 = vdwg.mxu0
    %v2796 = vadd.f32 %v2762, %v2794
    %v2797 = vld [vmem:[#allocation2 + $0x2] sm:$0x1]
    %v2798 = vld [vmem:[#allocation2 + $0x12] sm:$0x1]
    %s2799 = scalar_lea.vmem [#allocation12], 64
    %v2800 = vld [vmem:[%s2799] sm:$0xff]
    %v2801 = vld [vmem:[%s2799 + $0x8] sm:$0xff]
    %v2802 = vld [vmem:[%s2799 + $0x10] sm:$0xff]
    %v2803 = vld [vmem:[%s2799 + $0x18] sm:$0xff]
    %v2806 = vrot.slane %v2798, 7
    %v2807 = vsel %vm2738, %v2806, %v2797
    %v2808 = vsel %vm166, %v2807, 0
    %2810 = vmatpush.msra.mxu0 0.0
    %2811 = vmatpush.msra.mxu0 0.0
    %2812 = vmatpush.msra.mxu0 0.0
    %2813 = vmatpush.msra.mxu0 0.0
    %2814 = vmatpush.msra.mxu0 0.0
    %2815 = vmatpush.msra.mxu0 0.0
    %2816 = vmatpush.msra.mxu0 0.0
    %2817 = vmatpush.msra.mxu0 0.0
    %2818 = vmatpush.msra.mxu0 0.0
    %2819 = vmatpush.msra.mxu0 0.0
    %2820 = vmatpush.msra.mxu0 0.0
    %2821 = vmatpush.msra.mxu0 0.0
    %2822 = vmatpush.msra.mxu0 %v2803
    %2823 = vmatpush.msra.mxu0 %v2802
    %2824 = vmatpush.msra.mxu0 %v2801
    %2825 = vmatpush.msra.mxu0 %v2800
    %2826 = vmatmul.f32.gmra.mxu0 %v2808
    %v2827 = vpop.f32.mrf.mxu0
    %v2828 = vadd.f32 0.0, %v2827
    %2829 = vdwg.mxu0
    %v2830 = vadd.f32 %v2796, %v2828
    %v2831 = vld [vmem:[#allocation2 + $0x3] sm:$0x1]
    %v2832 = vld [vmem:[#allocation2 + $0x13] sm:$0x1]
    %s2833 = scalar_lea.vmem [#allocation12], 96
    %v2834 = vld [vmem:[%s2833] sm:$0xff]
    %v2835 = vld [vmem:[%s2833 + $0x8] sm:$0xff]
    %v2836 = vld [vmem:[%s2833 + $0x10] sm:$0xff]
    %v2837 = vld [vmem:[%s2833 + $0x18] sm:$0xff]
    %v2840 = vrot.slane %v2832, 7
    %v2841 = vsel %vm2738, %v2840, %v2831
    %v2842 = vsel %vm166, %v2841, 0
    %2844 = vmatpush.msra.mxu0 0.0
    %2845 = vmatpush.msra.mxu0 0.0
    %2846 = vmatpush.msra.mxu0 0.0
    %2847 = vmatpush.msra.mxu0 0.0
    %2848 = vmatpush.msra.mxu0 0.0
    %2849 = vmatpush.msra.mxu0 0.0
    %2850 = vmatpush.msra.mxu0 0.0
    %2851 = vmatpush.msra.mxu0 0.0
    %2852 = vmatpush.msra.mxu0 0.0
    %2853 = vmatpush.msra.mxu0 0.0
    %2854 = vmatpush.msra.mxu0 0.0
    %2855 = vmatpush.msra.mxu0 0.0
    %2856 = vmatpush.msra.mxu0 %v2837
    %2857 = vmatpush.msra.mxu0 %v2836
    %2858 = vmatpush.msra.mxu0 %v2835
    %2859 = vmatpush.msra.mxu0 %v2834
    %2860 = vmatmul.f32.gmra.mxu0 %v2842
    %v2861 = vpop.f32.mrf.mxu0
    %v2862 = vadd.f32 0.0, %v2861
    %2863 = vdwg.mxu0
    %v2864 = vadd.f32 %v2830, %v2862
    %v2865 = vld [vmem:[#allocation2 + $0x4] sm:$0x1]
    %v2866 = vld [vmem:[#allocation2 + $0x14] sm:$0x1]
    %s2867 = scalar_lea.vmem [#allocation12], 128
    %v2868 = vld [vmem:[%s2867] sm:$0xff]
    %v2869 = vld [vmem:[%s2867 + $0x8] sm:$0xff]
    %v2870 = vld [vmem:[%s2867 + $0x10] sm:$0xff]
    %v2871 = vld [vmem:[%s2867 + $0x18] sm:$0xff]
    %v2874 = vrot.slane %v2866, 7
    %v2875 = vsel %vm2738, %v2874, %v2865
    %v2876 = vsel %vm166, %v2875, 0
    %2878 = vmatpush.msra.mxu0 0.0
    %2879 = vmatpush.msra.mxu0 0.0
    %2880 = vmatpush.msra.mxu0 0.0
    %2881 = vmatpush.msra.mxu0 0.0
    %2882 = vmatpush.msra.mxu0 0.0
    %2883 = vmatpush.msra.mxu0 0.0
    %2884 = vmatpush.msra.mxu0 0.0
    %2885 = vmatpush.msra.mxu0 0.0
    %2886 = vmatpush.msra.mxu0 0.0
    %2887 = vmatpush.msra.mxu0 0.0
    %2888 = vmatpush.msra.mxu0 0.0
    %2889 = vmatpush.msra.mxu0 0.0
    %2890 = vmatpush.msra.mxu0 %v2871
    %2891 = vmatpush.msra.mxu0 %v2870
    %2892 = vmatpush.msra.mxu0 %v2869
    %2893 = vmatpush.msra.mxu0 %v2868
    %2894 = vmatmul.f32.gmra.mxu0 %v2876
    %v2895 = vpop.f32.mrf.mxu0
    %v2896 = vadd.f32 0.0, %v2895
    %2897 = vdwg.mxu0
    %v2898 = vadd.f32 %v2864, %v2896
    %v2899 = vld [vmem:[#allocation2 + $0x5] sm:$0x1]
    %v2900 = vld [vmem:[#allocation2 + $0x15] sm:$0x1]
    %s2901 = scalar_lea.vmem [#allocation12], 160
    %v2902 = vld [vmem:[%s2901] sm:$0xff]
    %v2903 = vld [vmem:[%s2901 + $0x8] sm:$0xff]
    %v2904 = vld [vmem:[%s2901 + $0x10] sm:$0xff]
    %v2905 = vld [vmem:[%s2901 + $0x18] sm:$0xff]
    %v2908 = vrot.slane %v2900, 7
    %v2909 = vsel %vm2738, %v2908, %v2899
    %v2910 = vsel %vm166, %v2909, 0
    %2912 = vmatpush.msra.mxu0 0.0
    %2913 = vmatpush.msra.mxu0 0.0
    %2914 = vmatpush.msra.mxu0 0.0
    %2915 = vmatpush.msra.mxu0 0.0
    %2916 = vmatpush.msra.mxu0 0.0
    %2917 = vmatpush.msra.mxu0 0.0
    %2918 = vmatpush.msra.mxu0 0.0
    %2919 = vmatpush.msra.mxu0 0.0
    %2920 = vmatpush.msra.mxu0 0.0
    %2921 = vmatpush.msra.mxu0 0.0
    %2922 = vmatpush.msra.mxu0 0.0
    %2923 = vmatpush.msra.mxu0 0.0
    %2924 = vmatpush.msra.mxu0 %v2905
    %2925 = vmatpush.msra.mxu0 %v2904
    %2926 = vmatpush.msra.mxu0 %v2903
    %2927 = vmatpush.msra.mxu0 %v2902
    %2928 = vmatmul.f32.gmra.mxu0 %v2910
    %v2929 = vpop.f32.mrf.mxu0
    %v2930 = vadd.f32 0.0, %v2929
    %2931 = vdwg.mxu0
    %v2932 = vadd.f32 %v2898, %v2930
    %v2933 = vld [vmem:[#allocation2 + $0x6] sm:$0x1]
    %v2934 = vld [vmem:[#allocation2 + $0x16] sm:$0x1]
    %s2935 = scalar_lea.vmem [#allocation12], 192
    %v2936 = vld [vmem:[%s2935] sm:$0xff]
    %v2937 = vld [vmem:[%s2935 + $0x8] sm:$0xff]
    %v2938 = vld [vmem:[%s2935 + $0x10] sm:$0xff]
    %v2939 = vld [vmem:[%s2935 + $0x18] sm:$0xff]
    %v2942 = vrot.slane %v2934, 7
    %v2943 = vsel %vm2738, %v2942, %v2933
    %v2944 = vsel %vm166, %v2943, 0
    %2946 = vmatpush.msra.mxu0 0.0
    %2947 = vmatpush.msra.mxu0 0.0
    %2948 = vmatpush.msra.mxu0 0.0
    %2949 = vmatpush.msra.mxu0 0.0
    %2950 = vmatpush.msra.mxu0 0.0
    %2951 = vmatpush.msra.mxu0 0.0
    %2952 = vmatpush.msra.mxu0 0.0
    %2953 = vmatpush.msra.mxu0 0.0
    %2954 = vmatpush.msra.mxu0 0.0
    %2955 = vmatpush.msra.mxu0 0.0
    %2956 = vmatpush.msra.mxu0 0.0
    %2957 = vmatpush.msra.mxu0 0.0
    %2958 = vmatpush.msra.mxu0 %v2939
    %2959 = vmatpush.msra.mxu0 %v2938
    %2960 = vmatpush.msra.mxu0 %v2937
    %2961 = vmatpush.msra.mxu0 %v2936
    %2962 = vmatmul.f32.gmra.mxu0 %v2944
    %v2963 = vpop.f32.mrf.mxu0
    %v2964 = vadd.f32 0.0, %v2963
    %2965 = vdwg.mxu0
    %v2966 = vadd.f32 %v2932, %v2964
    %v2967 = vld [vmem:[#allocation2 + $0x7] sm:$0x1]
    %v2968 = vld [vmem:[#allocation2 + $0x17] sm:$0x1]
    %s2969 = scalar_lea.vmem [#allocation12], 224
    %v2970 = vld [vmem:[%s2969] sm:$0xff]
    %v2971 = vld [vmem:[%s2969 + $0x8] sm:$0xff]
    %v2972 = vld [vmem:[%s2969 + $0x10] sm:$0xff]
    %v2973 = vld [vmem:[%s2969 + $0x18] sm:$0xff]
    %v2976 = vrot.slane %v2968, 7
    %v2977 = vsel %vm2738, %v2976, %v2967
    %v2978 = vsel %vm166, %v2977, 0
    %2980 = vmatpush.msra.mxu0 0.0
    %2981 = vmatpush.msra.mxu0 0.0
    %2982 = vmatpush.msra.mxu0 0.0
    %2983 = vmatpush.msra.mxu0 0.0
    %2984 = vmatpush.msra.mxu0 0.0
    %2985 = vmatpush.msra.mxu0 0.0
    %2986 = vmatpush.msra.mxu0 0.0
    %2987 = vmatpush.msra.mxu0 0.0
    %2988 = vmatpush.msra.mxu0 0.0
    %2989 = vmatpush.msra.mxu0 0.0
    %2990 = vmatpush.msra.mxu0 0.0
    %2991 = vmatpush.msra.mxu0 0.0
    %2992 = vmatpush.msra.mxu0 %v2973
    %2993 = vmatpush.msra.mxu0 %v2972
    %2994 = vmatpush.msra.mxu0 %v2971
    %2995 = vmatpush.msra.mxu0 %v2970
    %2996 = vmatmul.f32.gmra.mxu0 %v2978
    %v2997 = vpop.f32.mrf.mxu0
    %v2998 = vadd.f32 0.0, %v2997
    %2999 = vdwg.mxu0
    %v3000 = vadd.f32 %v2966, %v2998
    %v3001 = vld [vmem:[#allocation2 + $0x8] sm:$0x1]
    %v3002 = vld [vmem:[#allocation2 + $0x18] sm:$0x1]
    %s3003 = scalar_lea.vmem [#allocation12], 256
    %v3004 = vld [vmem:[%s3003] sm:$0xff]
    %v3005 = vld [vmem:[%s3003 + $0x8] sm:$0xff]
    %v3006 = vld [vmem:[%s3003 + $0x10] sm:$0xff]
    %v3007 = vld [vmem:[%s3003 + $0x18] sm:$0xff]
    %v3010 = vrot.slane %v3002, 7
    %v3011 = vsel %vm2738, %v3010, %v3001
    %v3012 = vsel %vm166, %v3011, 0
    %3014 = vmatpush.msra.mxu0 0.0
    %3015 = vmatpush.msra.mxu0 0.0
    %3016 = vmatpush.msra.mxu0 0.0
    %3017 = vmatpush.msra.mxu0 0.0
    %3018 = vmatpush.msra.mxu0 0.0
    %3019 = vmatpush.msra.mxu0 0.0
    %3020 = vmatpush.msra.mxu0 0.0
    %3021 = vmatpush.msra.mxu0 0.0
    %3022 = vmatpush.msra.mxu0 0.0
    %3023 = vmatpush.msra.mxu0 0.0
    %3024 = vmatpush.msra.mxu0 0.0
    %3025 = vmatpush.msra.mxu0 0.0
    %3026 = vmatpush.msra.mxu0 %v3007
    %3027 = vmatpush.msra.mxu0 %v3006
    %3028 = vmatpush.msra.mxu0 %v3005
    %3029 = vmatpush.msra.mxu0 %v3004
    %3030 = vmatmul.f32.gmra.mxu0 %v3012
    %v3031 = vpop.f32.mrf.mxu0
    %v3032 = vadd.f32 0.0, %v3031
    %3033 = vdwg.mxu0
    %v3034 = vadd.f32 %v3000, %v3032
    %v3035 = vld [vmem:[#allocation2 + $0x9] sm:$0x1]
    %v3036 = vld [vmem:[#allocation2 + $0x19] sm:$0x1]
    %s3037 = scalar_lea.vmem [#allocation12], 288
    %v3038 = vld [vmem:[%s3037] sm:$0xff]
    %v3039 = vld [vmem:[%s3037 + $0x8] sm:$0xff]
    %v3040 = vld [vmem:[%s3037 + $0x10] sm:$0xff]
    %v3041 = vld [vmem:[%s3037 + $0x18] sm:$0xff]
    %v3044 = vrot.slane %v3036, 7
    %v3045 = vsel %vm2738, %v3044, %v3035
    %v3046 = vsel %vm166, %v3045, 0
    %3048 = vmatpush.msra.mxu0 0.0
    %3049 = vmatpush.msra.mxu0 0.0
    %3050 = vmatpush.msra.mxu0 0.0
    %3051 = vmatpush.msra.mxu0 0.0
    %3052 = vmatpush.msra.mxu0 0.0
    %3053 = vmatpush.msra.mxu0 0.0
    %3054 = vmatpush.msra.mxu0 0.0
    %3055 = vmatpush.msra.mxu0 0.0
    %3056 = vmatpush.msra.mxu0 0.0
    %3057 = vmatpush.msra.mxu0 0.0
    %3058 = vmatpush.msra.mxu0 0.0
    %3059 = vmatpush.msra.mxu0 0.0
    %3060 = vmatpush.msra.mxu0 %v3041
    %3061 = vmatpush.msra.mxu0 %v3040
    %3062 = vmatpush.msra.mxu0 %v3039
    %3063 = vmatpush.msra.mxu0 %v3038
    %3064 = vmatmul.f32.gmra.mxu0 %v3046
    %v3065 = vpop.f32.mrf.mxu0
    %v3066 = vadd.f32 0.0, %v3065
    %3067 = vdwg.mxu0
    %v3068 = vadd.f32 %v3034, %v3066
    %v3069 = vld [vmem:[#allocation2 + $0xa] sm:$0x1]
    %v3070 = vld [vmem:[#allocation2 + $0x1a] sm:$0x1]
    %s3071 = scalar_lea.vmem [#allocation12], 320
    %v3072 = vld [vmem:[%s3071] sm:$0xff]
    %v3073 = vld [vmem:[%s3071 + $0x8] sm:$0xff]
    %v3074 = vld [vmem:[%s3071 + $0x10] sm:$0xff]
    %v3075 = vld [vmem:[%s3071 + $0x18] sm:$0xff]
    %v3078 = vrot.slane %v3070, 7
    %v3079 = vsel %vm2738, %v3078, %v3069
    %v3080 = vsel %vm166, %v3079, 0
    %3082 = vmatpush.msra.mxu0 0.0
    %3083 = vmatpush.msra.mxu0 0.0
    %3084 = vmatpush.msra.mxu0 0.0
    %3085 = vmatpush.msra.mxu0 0.0
    %3086 = vmatpush.msra.mxu0 0.0
    %3087 = vmatpush.msra.mxu0 0.0
    %3088 = vmatpush.msra.mxu0 0.0
    %3089 = vmatpush.msra.mxu0 0.0
    %3090 = vmatpush.msra.mxu0 0.0
    %3091 = vmatpush.msra.mxu0 0.0
    %3092 = vmatpush.msra.mxu0 0.0
    %3093 = vmatpush.msra.mxu0 0.0
    %3094 = vmatpush.msra.mxu0 %v3075
    %3095 = vmatpush.msra.mxu0 %v3074
    %3096 = vmatpush.msra.mxu0 %v3073
    %3097 = vmatpush.msra.mxu0 %v3072
    %3098 = vmatmul.f32.gmra.mxu0 %v3080
    %v3099 = vpop.f32.mrf.mxu0
    %v3100 = vadd.f32 0.0, %v3099
    %3101 = vdwg.mxu0
    %v3102 = vadd.f32 %v3068, %v3100
    %v3103 = vld [vmem:[#allocation2 + $0xb] sm:$0x1]
    %v3104 = vld [vmem:[#allocation2 + $0x1b] sm:$0x1]
    %s3105 = scalar_lea.vmem [#allocation12], 352
    %v3106 = vld [vmem:[%s3105] sm:$0xff]
    %v3107 = vld [vmem:[%s3105 + $0x8] sm:$0xff]
    %v3108 = vld [vmem:[%s3105 + $0x10] sm:$0xff]
    %v3109 = vld [vmem:[%s3105 + $0x18] sm:$0xff]
    %v3112 = vrot.slane %v3104, 7
    %v3113 = vsel %vm2738, %v3112, %v3103
    %v3114 = vsel %vm166, %v3113, 0
    %3116 = vmatpush.msra.mxu0 0.0
    %3117 = vmatpush.msra.mxu0 0.0
    %3118 = vmatpush.msra.mxu0 0.0
    %3119 = vmatpush.msra.mxu0 0.0
    %3120 = vmatpush.msra.mxu0 0.0
    %3121 = vmatpush.msra.mxu0 0.0
    %3122 = vmatpush.msra.mxu0 0.0
    %3123 = vmatpush.msra.mxu0 0.0
    %3124 = vmatpush.msra.mxu0 0.0
    %3125 = vmatpush.msra.mxu0 0.0
    %3126 = vmatpush.msra.mxu0 0.0
    %3127 = vmatpush.msra.mxu0 0.0
    %3128 = vmatpush.msra.mxu0 %v3109
    %3129 = vmatpush.msra.mxu0 %v3108
    %3130 = vmatpush.msra.mxu0 %v3107
    %3131 = vmatpush.msra.mxu0 %v3106
    %3132 = vmatmul.f32.gmra.mxu0 %v3114
    %v3133 = vpop.f32.mrf.mxu0
    %v3134 = vadd.f32 0.0, %v3133
    %3135 = vdwg.mxu0
    %v3136 = vadd.f32 %v3102, %v3134
    %v3137 = vld [vmem:[#allocation2 + $0xc] sm:$0x1]
    %v3138 = vld [vmem:[#allocation2 + $0x1c] sm:$0x1]
    %s3139 = scalar_lea.vmem [#allocation12], 384
    %v3140 = vld [vmem:[%s3139] sm:$0xff]
    %v3141 = vld [vmem:[%s3139 + $0x8] sm:$0xff]
    %v3142 = vld [vmem:[%s3139 + $0x10] sm:$0xff]
    %v3143 = vld [vmem:[%s3139 + $0x18] sm:$0xff]
    %v3146 = vrot.slane %v3138, 7
    %v3147 = vsel %vm2738, %v3146, %v3137
    %v3148 = vsel %vm166, %v3147, 0
    %3150 = vmatpush.msra.mxu0 0.0
    %3151 = vmatpush.msra.mxu0 0.0
    %3152 = vmatpush.msra.mxu0 0.0
    %3153 = vmatpush.msra.mxu0 0.0
    %3154 = vmatpush.msra.mxu0 0.0
    %3155 = vmatpush.msra.mxu0 0.0
    %3156 = vmatpush.msra.mxu0 0.0
    %3157 = vmatpush.msra.mxu0 0.0
    %3158 = vmatpush.msra.mxu0 0.0
    %3159 = vmatpush.msra.mxu0 0.0
    %3160 = vmatpush.msra.mxu0 0.0
    %3161 = vmatpush.msra.mxu0 0.0
    %3162 = vmatpush.msra.mxu0 %v3143
    %3163 = vmatpush.msra.mxu0 %v3142
    %3164 = vmatpush.msra.mxu0 %v3141
    %3165 = vmatpush.msra.mxu0 %v3140
    %3166 = vmatmul.f32.gmra.mxu0 %v3148
    %v3167 = vpop.f32.mrf.mxu0
    %v3168 = vadd.f32 0.0, %v3167
    %3169 = vdwg.mxu0
    %v3170 = vadd.f32 %v3136, %v3168
    %v3171 = vld [vmem:[#allocation2 + $0xd] sm:$0x1]
    %v3172 = vld [vmem:[#allocation2 + $0x1d] sm:$0x1]
    %s3173 = scalar_lea.vmem [#allocation12], 416
    %v3174 = vld [vmem:[%s3173] sm:$0xff]
    %v3175 = vld [vmem:[%s3173 + $0x8] sm:$0xff]
    %v3176 = vld [vmem:[%s3173 + $0x10] sm:$0xff]
    %v3177 = vld [vmem:[%s3173 + $0x18] sm:$0xff]
    %v3180 = vrot.slane %v3172, 7
    %v3181 = vsel %vm2738, %v3180, %v3171
    %v3182 = vsel %vm166, %v3181, 0
    %3184 = vmatpush.msra.mxu0 0.0
    %3185 = vmatpush.msra.mxu0 0.0
    %3186 = vmatpush.msra.mxu0 0.0
    %3187 = vmatpush.msra.mxu0 0.0
    %3188 = vmatpush.msra.mxu0 0.0
    %3189 = vmatpush.msra.mxu0 0.0
    %3190 = vmatpush.msra.mxu0 0.0
    %3191 = vmatpush.msra.mxu0 0.0
    %3192 = vmatpush.msra.mxu0 0.0
    %3193 = vmatpush.msra.mxu0 0.0
    %3194 = vmatpush.msra.mxu0 0.0
    %3195 = vmatpush.msra.mxu0 0.0
    %3196 = vmatpush.msra.mxu0 %v3177
    %3197 = vmatpush.msra.mxu0 %v3176
    %3198 = vmatpush.msra.mxu0 %v3175
    %3199 = vmatpush.msra.mxu0 %v3174
    %3200 = vmatmul.f32.gmra.mxu0 %v3182
    %v3201 = vpop.f32.mrf.mxu0
    %v3202 = vadd.f32 0.0, %v3201
    %3203 = vdwg.mxu0
    %v3204 = vadd.f32 %v3170, %v3202
    %v3205 = vld [vmem:[#allocation2 + $0xe] sm:$0x1]
    %v3206 = vld [vmem:[#allocation2 + $0x1e] sm:$0x1]
    %s3207 = scalar_lea.vmem [#allocation12], 448
    %v3208 = vld [vmem:[%s3207] sm:$0xff]
    %v3209 = vld [vmem:[%s3207 + $0x8] sm:$0xff]
    %v3210 = vld [vmem:[%s3207 + $0x10] sm:$0xff]
    %v3211 = vld [vmem:[%s3207 + $0x18] sm:$0xff]
    %v3214 = vrot.slane %v3206, 7
    %v3215 = vsel %vm2738, %v3214, %v3205
    %v3216 = vsel %vm166, %v3215, 0
    %3218 = vmatpush.msra.mxu0 0.0
    %3219 = vmatpush.msra.mxu0 0.0
    %3220 = vmatpush.msra.mxu0 0.0
    %3221 = vmatpush.msra.mxu0 0.0
    %3222 = vmatpush.msra.mxu0 0.0
    %3223 = vmatpush.msra.mxu0 0.0
    %3224 = vmatpush.msra.mxu0 0.0
    %3225 = vmatpush.msra.mxu0 0.0
    %3226 = vmatpush.msra.mxu0 0.0
    %3227 = vmatpush.msra.mxu0 0.0
    %3228 = vmatpush.msra.mxu0 0.0
    %3229 = vmatpush.msra.mxu0 0.0
    %3230 = vmatpush.msra.mxu0 %v3211
    %3231 = vmatpush.msra.mxu0 %v3210
    %3232 = vmatpush.msra.mxu0 %v3209
    %3233 = vmatpush.msra.mxu0 %v3208
    %3234 = vmatmul.f32.gmra.mxu0 %v3216
    %v3235 = vpop.f32.mrf.mxu0
    %v3236 = vadd.f32 0.0, %v3235
    %3237 = vdwg.mxu0
    %v3238 = vadd.f32 %v3204, %v3236
    %v3239 = vld [vmem:[#allocation2 + $0xf] sm:$0x1]
    %v3240 = vld [vmem:[#allocation2 + $0x1f] sm:$0x1]
    %s3241 = scalar_lea.vmem [#allocation12], 480
    %v3242 = vld [vmem:[%s3241] sm:$0xff]
    %v3243 = vld [vmem:[%s3241 + $0x8] sm:$0xff]
    %v3244 = vld [vmem:[%s3241 + $0x10] sm:$0xff]
    %v3245 = vld [vmem:[%s3241 + $0x18] sm:$0xff]
    %v3248 = vrot.slane %v3240, 7
    %v3249 = vsel %vm2738, %v3248, %v3239
    %v3250 = vsel %vm166, %v3249, 0
    %3252 = vmatpush.msra.mxu0 0.0
    %3253 = vmatpush.msra.mxu0 0.0
    %3254 = vmatpush.msra.mxu0 0.0
    %3255 = vmatpush.msra.mxu0 0.0
    %3256 = vmatpush.msra.mxu0 0.0
    %3257 = vmatpush.msra.mxu0 0.0
    %3258 = vmatpush.msra.mxu0 0.0
    %3259 = vmatpush.msra.mxu0 0.0
    %3260 = vmatpush.msra.mxu0 0.0
    %3261 = vmatpush.msra.mxu0 0.0
    %3262 = vmatpush.msra.mxu0 0.0
    %3263 = vmatpush.msra.mxu0 0.0
    %3264 = vmatpush.msra.mxu0 %v3245
    %3265 = vmatpush.msra.mxu0 %v3244
    %3266 = vmatpush.msra.mxu0 %v3243
    %3267 = vmatpush.msra.mxu0 %v3242
    %3268 = vmatmul.f32.gmra.mxu0 %v3250
    %v3269 = vpop.f32.mrf.mxu0
    %v3270 = vadd.f32 0.0, %v3269
    %3271 = vdwg.mxu0
    %v3272 = vadd.f32 %v3238, %v3270
    %3273 = vst [vmem:[#allocation14] sm:$0x3] %v3272
    // Predicated region
    $region90: #{tpu_custom_call.1} parent=1 // pred_check
      _
    $region91: #{tpu_custom_call.1} parent=1 // pred_check_branch
      %3275 = sbr.rel (0) target = $region93
    $region92: #{tpu_custom_call.1} parent=1 // pred_region
      %3277 = vsyncadd [#allocation5], 0
      %s3279 = sshll.u32 [#allocation14], 4
      %s3280 = int_to_ptr.vmem [resolvable:$true] %s3279
      %s3281 = sshll.u32 %s16, 4
      %s3282 = int_to_ptr.hbm [resolvable:$true] %s3281
      %3284 = dma.vmem_to_hbm [thread:$0]  %s3280, 32, %s3282, [#allocation5]
    $region93: #{tpu_custom_call.1} parent=1 // pred_fallthru
      _
    // Predicated region
    $region94: #{tpu_custom_call.1} parent=1 // pred_check
      _
    $region95: #{tpu_custom_call.1} parent=1 // pred_check_branch
      %3286 = sbr.rel (0) target = $region97
    $region96: #{tpu_custom_call.1} parent=1 // pred_region
      %3288 = dma.done [#allocation5], 32
    $region97: #{tpu_custom_call.1} parent=1 // pred_fallthru
      _
    %3289 = vsyncpa [#allocation4], 1
    %3290 = vsyncpa [#allocation7], 1
    %3291 = vsyncpa [#allocation10], 1
    %3292 = vsyncpa [#allocation13], 1
    %3293 = vsyncpa [#allocation5], 1

</llo_original>
